<compile_context>
chip_gen: v5e
topology: v5e:2x2
jax: 0.10.0
libtpu: 0.0.40
codegen_flags: <defaults>
</compile_context>

<pallas_src>
import functools
import math

import jax
import jax.numpy as jnp
from jax.experimental import pallas as pl
from jax.experimental.pallas import tpu as pltpu

EPS = 1e-5                    # torch.nn.LayerNorm default
MXU_DTYPE = jnp.bfloat16      # matmul-operand dtype; jnp.float32 => exact reference math
NEG_BIAS = -1e30              # additive key-mask bias (finite, avoids -inf NaNs)


# ----------------------------------------------------------------------------
# Kernels
# ----------------------------------------------------------------------------
def _attn_kernel(x_ref, wqv_ref, rr_ref, rw_ref, cosq_ref, sinq_ref,
                 sinkT_ref, coskT_ref, bias_ref, out_ref):
    # x_ref     : (1, L, Dm)   hidden states for batch b
    # wqv_ref   : (Dm, 2*Dm)   fused Q|V projection (grid-invariant)
    # rr_ref    : (H, Dh)      r_r_bias
    # rw_ref    : (H, Dh)      r_w_bias
    # cosq_ref  : (L, Dh//2)   cos(q * f)
    # sinq_ref  : (L, Dh//2)   sin(q * f)
    # sinkT_ref : (Dh//2, L)   sin(k * f)^T   (MXU dtype)
    # coskT_ref : (Dh//2, L)   cos(k * f)^T   (MXU dtype)
    # bias_ref  : (1, 1, L)    additive key-mask bias (0 keep / -1e30 pad)
    # out_ref   : (1, L, Dm)   attention output, already in (B, L, Dm) layout
    H, Dh = rr_ref.shape
    Dm = x_ref.shape[2]
    Hh = cosq_ref.shape[1]

    x = x_ref[0]                                   # (L, Dm) f32
    x_mx = x.astype(MXU_DTYPE)

    # Fused Q|V projection: one MXU matmul with N = 2*Dm (lane dense).
    qv = jnp.dot(x_mx, wqv_ref[...], preferred_element_type=jnp.float32)  # (L, 2Dm)

    bias = bias_ref[0]                             # (1, L), broadcasts over query rows
    cos_q = cosq_ref[...]                          # (L, Hh) f32
    sin_q = sinq_ref[...]
    sin_kT = sinkT_ref[...]                        # (Hh, L) MXU dtype
    cos_kT = coskT_ref[...]

    for h in range(H):                             # static unrolled head loop
        lo = h * Dh
        q = qv[:, lo:lo + Dh]                      # (L, Dh) f32
        v = qv[:, Dm + lo:Dm + lo + Dh]            # (L, Dh) f32
        k = x_mx[:, lo:lo + Dh]                    # (L, Dh)  (k has no projection in ltp)
        rr = rr_ref[h:h + 1, :]                    # (1, Dh)
        rw = rw_ref[h:h + 1, :]

        # AC[q, k] = (q + r_r_bias) . k
        ac = jnp.dot((q + rr).astype(MXU_DTYPE), k.T,
                     preferred_element_type=jnp.float32)                  # (L, L)

        # BD[q, k] = (q + r_w_bias) . pos_embed[k - q + L]
        # (== torch  B_ + D_  followed by  _shift), via the exact sinusoid
        # angle-difference identity => pure MXU matmuls, no (L,L,Dh) table,
        # no (L,2L) shift intermediate.
        qrw = q + rw
        a = qrw[:, :Hh]                            # pairs with sin part
        b = qrw[:, Hh:2 * Hh]                      # pairs with cos part
        qs = (a * cos_q + b * sin_q).astype(MXU_DTYPE)
        qc = (b * cos_q - a * sin_q).astype(MXU_DTYPE)
        bd = (jnp.dot(qs, sin_kT, preferred_element_type=jnp.float32)
              + jnp.dot(qc, cos_kT, preferred_element_type=jnp.float32))  # (L, L)

        attn = ac + bd + bias                      # additive key mask (no -inf)
        amax = jnp.max(attn, axis=-1, keepdims=True)
        p = jnp.exp(attn - amax)
        denom = jnp.sum(p, axis=-1, keepdims=True)
        p = p * pl.reciprocal(denom, approx=True)  # softmax divide on the EUP

        out_h = jnp.dot(p.astype(MXU_DTYPE), v.astype(MXU_DTYPE),
                        preferred_element_type=jnp.float32)               # (L, Dh)
        out_ref[0, :, lo:lo + Dh] = out_h.astype(out_ref.dtype)


def _ffn_kernel(a_ref, r_ref, g1_ref, b1_ref, w1_ref, fb1_ref, w2_ref, fb2_ref,
                g2_ref, b2_ref, out_ref):
    # y   = LayerNorm1(attn_out + residual)
    # out = LayerNorm2(y + W2 @ relu(W1 @ y + b1) + b2)
    s = a_ref[...] + r_ref[...]                                           # (TM, Dm) f32
    mu = jnp.mean(s, axis=-1, keepdims=True)
    var = jnp.mean(jnp.square(s - mu), axis=-1, keepdims=True)
    y = (s - mu) * jax.lax.rsqrt(var + EPS) * g1_ref[...] + b1_ref[...]

    h = jnp.dot(y.astype(MXU_DTYPE), w1_ref[...],
                preferred_element_type=jnp.float32) + fb1_ref[...]
    h = jnp.maximum(h, 0.0)
    z = jnp.dot(h.astype(MXU_DTYPE), w2_ref[...],
                preferred_element_type=jnp.float32) + fb2_ref[...]

    s2 = y + z
    mu2 = jnp.mean(s2, axis=-1, keepdims=True)
    var2 = jnp.mean(jnp.square(s2 - mu2), axis=-1, keepdims=True)
    out_ref[...] = ((s2 - mu2) * jax.lax.rsqrt(var2 + EPS) * g2_ref[...]
                    + b2_ref[...]).astype(out_ref.dtype)


# ----------------------------------------------------------------------------
# Pallas wrappers
# ----------------------------------------------------------------------------
def rel_attention(x, mask_bias, wqv, r_r_bias, r_w_bias, trig):
    B, L, Dm = x.shape
    H, Dh = r_r_bias.shape
    cos_q, sin_q, sin_kT, cos_kT = trig
    Hh = cos_q.shape[1]

    return pl.pallas_call(
        _attn_kernel,
        out_shape=jax.ShapeDtypeStruct((B, L, Dm), jnp.float32),
        grid=(B,),
        in_specs=[
            pl.BlockSpec((1, L, Dm), lambda b: (b, 0, 0)),        # x
            pl.BlockSpec((Dm, 2 * Dm), lambda b: (0, 0)),         # Wqv (invariant)
            pl.BlockSpec((H, Dh), lambda b: (0, 0)),              # r_r_bias
            pl.BlockSpec((H, Dh), lambda b: (0, 0)),              # r_w_bias
            pl.BlockSpec((L, Hh), lambda b: (0, 0)),              # cos(q f)
            pl.BlockSpec((L, Hh), lambda b: (0, 0)),              # sin(q f)
            pl.BlockSpec((Hh, L), lambda b: (0, 0)),              # sin(k f)^T
            pl.BlockSpec((Hh, L), lambda b: (0, 0)),              # cos(k f)^T
            pl.BlockSpec((1, 1, L), lambda b: (b, 0, 0)),         # mask bias
        ],
        out_specs=pl.BlockSpec((1, L, Dm), lambda b: (b, 0, 0)),  # (B, L, Dm) directly
        compiler_params=pltpu.CompilerParams(dimension_semantics=("parallel",)),
    )(x, wqv, r_r_bias, r_w_bias, cos_q, sin_q, sin_kT, cos_kT, mask_bias)


def _row_tile(n_rows):
    for t in (512, 256, 128, 64, 32, 16, 8):
        if n_rows % t == 0:
            return t
    return n_rows


def ffn_block(attn_out, residual, p):
    B, L, Dm = attn_out.shape
    BL = B * L
    Hd = p["w1"].shape[1]
    TM = _row_tile(BL)

    a2 = attn_out.reshape(BL, Dm)
    r2 = residual.reshape(BL, Dm)

    out = pl.pallas_call(
        _ffn_kernel,
        out_shape=jax.ShapeDtypeStruct((BL, Dm), jnp.float32),
        grid=(BL // TM,),
        in_specs=[
            pl.BlockSpec((TM, Dm), lambda i: (i, 0)),             # attn_out rows
            pl.BlockSpec((TM, Dm), lambda i: (i, 0)),             # residual rows
            pl.BlockSpec((1, Dm), lambda i: (0, 0)),              # ln1 gamma
            pl.BlockSpec((1, Dm), lambda i: (0, 0)),              # ln1 beta
            pl.BlockSpec((Dm, Hd), lambda i: (0, 0)),             # W1 (invariant)
            pl.BlockSpec((1, Hd), lambda i: (0, 0)),              # b1
            pl.BlockSpec((Hd, Dm), lambda i: (0, 0)),             # W2 (invariant)
            pl.BlockSpec((1, Dm), lambda i: (0, 0)),              # b2
            pl.BlockSpec((1, Dm), lambda i: (0, 0)),              # ln2 gamma
            pl.BlockSpec((1, Dm), lambda i: (0, 0)),              # ln2 beta
        ],
        out_specs=pl.BlockSpec((TM, Dm), lambda i: (i, 0)),
        compiler_params=pltpu.CompilerParams(dimension_semantics=("parallel",)),
    )(a2, r2,
      p["ln1_g"].reshape(1, Dm), p["ln1_b"].reshape(1, Dm),
      p["w1"], p["fb1"].reshape(1, Hd),
      p["w2"], p["fb2"].reshape(1, Dm),
      p["ln2_g"].reshape(1, Dm), p["ln2_b"].reshape(1, Dm))
    return out.reshape(B, L, Dm)


# ----------------------------------------------------------------------------
# Plain-JAX glue: trig tables for the relative term, mask bias
# ----------------------------------------------------------------------------
def rel_trig_tables(seq_len, head_dim):
    """cos/sin(pos * freq) tables for the angle-difference form of the relative
    sinusoidal embedding.  Equivalent to gathering RelativeEmbedding at offsets
    k - q (the padding_idx row is never reachable for |k - q| < L), so this also
    removes the original table-size / regeneration limitation."""
    half = head_dim // 2
    assert half >= 2, "head_dim must be >= 4"
    scale = math.log(10000.0) / (half - 1)
    freqs = jnp.exp(jnp.arange(half, dtype=jnp.float32) * -scale)         # (half,)
    ang = jnp.arange(seq_len, dtype=jnp.float32)[:, None] * freqs[None, :]  # (L, half)
    cos_t = jnp.cos(ang)
    sin_t = jnp.sin(ang)
    return cos_t, sin_t, sin_t.T.astype(MXU_DTYPE), cos_t.T.astype(MXU_DTYPE)


def length_to_mask_bias(length, max_len):
    keep = jnp.arange(max_len)[None, :] < length[:, None]                 # (B, L) bool
    bias = jnp.where(keep, 0.0, NEG_BIAS).astype(jnp.float32)
    return bias[:, None, :]                                               # (B, 1, L)


# ----------------------------------------------------------------------------
# Model
# ----------------------------------------------------------------------------
def layer_forward(x, mask_bias, trig, p):
    # after_norm=True path: x = norm1(attn(x) + x); x = norm2(ffn(x) + x)
    attn_out = rel_attention(x, mask_bias, p["wqv"], p["r_r_bias"],
                             p["r_w_bias"], trig)
    return ffn_block(attn_out, x, p)


def relative_transformer_forward(params, x, length, gold=None):
    B, L, Dm = x.shape
    _, Dh = params[0]["r_r_bias"].shape
    mask_bias = length_to_mask_bias(length, L)
    trig = rel_trig_tables(L, Dh)
    for p in params:
        x = layer_forward(x, mask_bias, trig, p)
    return x, length, gold


def init_params(key, num_layers, input_size, hidden_size, num_heads):
    Dh = input_size // num_heads
    params = []
    for layer in range(num_layers):
        k = jax.random.fold_in(key, layer)
        ks = jax.random.split(k, 8)
        # qv_linear weight (no bias): qv = x @ Wqv, Wqv (Dm, 2*Dm), [Q | V] columns.
        wqv = (jax.random.normal(ks[0], (input_size, 2 * input_size), jnp.float32)
               * (1.0 / math.sqrt(input_size)))
        xav = math.sqrt(2.0 / (num_heads + Dh))
        r_r = jax.random.normal(ks[1], (num_heads, Dh), jnp.float32) * xav
        r_w = jax.random.normal(ks[2], (num_heads, Dh), jnp.float32) * xav
        w1 = (jax.random.normal(ks[3], (input_size, hidden_size), jnp.float32)
              * (1.0 / math.sqrt(input_size)))
        fb1 = jax.random.normal(ks[4], (hidden_size,), jnp.float32) * 0.01
        w2 = (jax.random.normal(ks[5], (hidden_size, input_size), jnp.float32)
              * (1.0 / math.sqrt(hidden_size)))
        fb2 = jax.random.normal(ks[6], (input_size,), jnp.float32) * 0.01
        params.append(dict(
            wqv=wqv.astype(MXU_DTYPE),            # bf16 weights halve HBM/VMEM traffic
            r_r_bias=r_r, r_w_bias=r_w,
            ln1_g=jnp.ones((input_size,), jnp.float32),
            ln1_b=jnp.zeros((input_size,), jnp.float32),
            ln2_g=jnp.ones((input_size,), jnp.float32),
            ln2_b=jnp.zeros((input_size,), jnp.float32),
            w1=w1.astype(MXU_DTYPE), fb1=fb1,
            w2=w2.astype(MXU_DTYPE), fb2=fb2,
        ))
    return params


if __name__ == "__main__":
    B, L, Dm, H = 2, 8, 32, 4
    hidden_size, num_layers = 64, 2

    key = jax.random.PRNGKey(0)
    kx, kp = jax.random.split(key)
    x = jax.random.normal(kx, (B, L, Dm), jnp.float32)
    length = jnp.array([8, 5], dtype=jnp.int32)

    params = init_params(kp, num_layers, Dm, hidden_size, H)

    fwd = jax.jit(relative_transformer_forward)
    out, out_len, gold = fwd(params, x, length)
    jax.block_until_ready(out)
    assert out.shape == (B, L, Dm)
    assert bool(jnp.all(jnp.isfinite(out)))
    print("KERNEL_OK")
</pallas_src>

<mosaic_0001>
module attributes {stable_mosaic.version = 11 : i64} {
  func.func @_attn_kernel(%arg0: i32, %arg1: memref<1x8x32xf32, #tpu.memory_space<vmem>>, %arg2: memref<32x64xbf16, #tpu.memory_space<vmem>>, %arg3: memref<4x8xf32, #tpu.memory_space<vmem>>, %arg4: memref<4x8xf32, #tpu.memory_space<vmem>>, %arg5: memref<8x4xf32, #tpu.memory_space<vmem>>, %arg6: memref<8x4xf32, #tpu.memory_space<vmem>>, %arg7: memref<4x8xbf16, #tpu.memory_space<vmem>>, %arg8: memref<4x8xbf16, #tpu.memory_space<vmem>>, %arg9: memref<1x1x8xf32, #tpu.memory_space<vmem>>, %arg10: memref<1x8x32xf32, #tpu.memory_space<vmem>>) attributes {dimension_semantics = [#tpu.dimension_semantics<parallel>], iteration_bounds = array<i64: 2>, scalar_prefetch = 0 : i64, scratch_operands = 0 : i64, tpu.core_type = #tpu.core_type<tc>, window_params = [{transform_indices = @transform_0, window_bounds = array<i64: 1, 8, 32>}, {pipeline_mode = #tpu.pipeline_mode<synchronous>, transform_indices = @transform_1, window_bounds = array<i64: 32, 64>}, {pipeline_mode = #tpu.pipeline_mode<synchronous>, transform_indices = @transform_2, window_bounds = array<i64: 4, 8>}, {pipeline_mode = #tpu.pipeline_mode<synchronous>, transform_indices = @transform_3, window_bounds = array<i64: 4, 8>}, {pipeline_mode = #tpu.pipeline_mode<synchronous>, transform_indices = @transform_4, window_bounds = array<i64: 8, 4>}, {pipeline_mode = #tpu.pipeline_mode<synchronous>, transform_indices = @transform_5, window_bounds = array<i64: 8, 4>}, {pipeline_mode = #tpu.pipeline_mode<synchronous>, transform_indices = @transform_6, window_bounds = array<i64: 4, 8>}, {pipeline_mode = #tpu.pipeline_mode<synchronous>, transform_indices = @transform_7, window_bounds = array<i64: 4, 8>}, {transform_indices = @transform_8, window_bounds = array<i64: 1, 1, 8>}, {transform_indices = @transform_9, window_bounds = array<i64: 1, 8, 32>}]} {
    %c0 = arith.constant 0 : index
    %c0_0 = arith.constant 0 : index
    %c0_1 = arith.constant 0 : index
    %0 = vector.load %arg1[%c0, %c0_0, %c0_1] : memref<1x8x32xf32, #tpu.memory_space<vmem>>, vector<1x8x32xf32>
    %1 = vector.shape_cast %0 : vector<1x8x32xf32> to vector<8x32xf32>
    %2 = arith.truncf %1 : vector<8x32xf32> to vector<8x32xbf16>
    %c0_2 = arith.constant 0 : index
    %c0_3 = arith.constant 0 : index
    %3 = vector.load %arg2[%c0_2, %c0_3] : memref<32x64xbf16, #tpu.memory_space<vmem>>, vector<32x64xbf16>
    %cst = arith.constant dense<0.000000e+00> : vector<8x64xf32>
    %4 = tpu.matmul %2, %3, %cst {dimension_numbers = #tpu.dot_dimension_numbers<[1], [0], [0], [1], [0, 0, 1, 1], [], []>} : vector<8x32xbf16>, vector<32x64xbf16>, vector<8x64xf32> -> vector<8x64xf32>
    %c0_4 = arith.constant 0 : index
    %c0_5 = arith.constant 0 : index
    %c0_6 = arith.constant 0 : index
    %5 = vector.load %arg9[%c0_4, %c0_5, %c0_6] : memref<1x1x8xf32, #tpu.memory_space<vmem>>, vector<1x1x8xf32>
    %6 = vector.shape_cast %5 : vector<1x1x8xf32> to vector<1x8xf32>
    %c0_7 = arith.constant 0 : index
    %c0_8 = arith.constant 0 : index
    %7 = vector.load %arg5[%c0_7, %c0_8] : memref<8x4xf32, #tpu.memory_space<vmem>>, vector<8x4xf32>
    %c0_9 = arith.constant 0 : index
    %c0_10 = arith.constant 0 : index
    %8 = vector.load %arg6[%c0_9, %c0_10] : memref<8x4xf32, #tpu.memory_space<vmem>>, vector<8x4xf32>
    %c0_11 = arith.constant 0 : index
    %c0_12 = arith.constant 0 : index
    %9 = vector.load %arg7[%c0_11, %c0_12] : memref<4x8xbf16, #tpu.memory_space<vmem>>, vector<4x8xbf16>
    %c0_13 = arith.constant 0 : index
    %c0_14 = arith.constant 0 : index
    %10 = vector.load %arg8[%c0_13, %c0_14] : memref<4x8xbf16, #tpu.memory_space<vmem>>, vector<4x8xbf16>
    %11 = vector.extract_strided_slice %4 {offsets = [0, 0], sizes = [8, 8], strides = [1, 1]} : vector<8x64xf32> to vector<8x8xf32>
    %12 = vector.extract_strided_slice %4 {offsets = [0, 32], sizes = [8, 8], strides = [1, 1]} : vector<8x64xf32> to vector<8x8xf32>
    %13 = vector.extract_strided_slice %2 {offsets = [0, 0], sizes = [8, 8], strides = [1, 1]} : vector<8x32xbf16> to vector<8x8xbf16>
    %c0_15 = arith.constant 0 : index
    %c0_16 = arith.constant 0 : index
    %14 = vector.load %arg3[%c0_15, %c0_16] : memref<4x8xf32, #tpu.memory_space<vmem>>, vector<1x8xf32>
    %c0_17 = arith.constant 0 : index
    %c0_18 = arith.constant 0 : index
    %15 = vector.load %arg4[%c0_17, %c0_18] : memref<4x8xf32, #tpu.memory_space<vmem>>, vector<1x8xf32>
    %16 = vector.broadcast %14 : vector<1x8xf32> to vector<8x8xf32>
    %17 = arith.addf %11, %16 : vector<8x8xf32>
    %18 = arith.truncf %17 : vector<8x8xf32> to vector<8x8xbf16>
    %19 = tpu.transpose %13, [1, 0] : vector<8x8xbf16> -> vector<8x8xbf16>
    %cst_19 = arith.constant dense<0.000000e+00> : vector<8x8xf32>
    %20 = tpu.matmul %18, %19, %cst_19 {dimension_numbers = #tpu.dot_dimension_numbers<[1], [0], [0], [1], [0, 0, 1, 1], [], []>} : vector<8x8xbf16>, vector<8x8xbf16>, vector<8x8xf32> -> vector<8x8xf32>
    %21 = vector.broadcast %15 : vector<1x8xf32> to vector<8x8xf32>
    %22 = arith.addf %11, %21 : vector<8x8xf32>
    %23 = vector.extract_strided_slice %22 {offsets = [0, 0], sizes = [8, 4], strides = [1, 1]} : vector<8x8xf32> to vector<8x4xf32>
    %24 = vector.extract_strided_slice %22 {offsets = [0, 4], sizes = [8, 4], strides = [1, 1]} : vector<8x8xf32> to vector<8x4xf32>
    %25 = arith.mulf %23, %7 : vector<8x4xf32>
    %26 = arith.mulf %24, %8 : vector<8x4xf32>
    %27 = arith.addf %25, %26 : vector<8x4xf32>
    %28 = arith.truncf %27 : vector<8x4xf32> to vector<8x4xbf16>
    %29 = arith.mulf %24, %7 : vector<8x4xf32>
    %30 = arith.mulf %23, %8 : vector<8x4xf32>
    %31 = arith.subf %29, %30 : vector<8x4xf32>
    %32 = arith.truncf %31 : vector<8x4xf32> to vector<8x4xbf16>
    %cst_20 = arith.constant dense<0.000000e+00> : vector<8x8xf32>
    %33 = tpu.matmul %28, %9, %cst_20 {dimension_numbers = #tpu.dot_dimension_numbers<[1], [0], [0], [1], [0, 0, 1, 1], [], []>} : vector<8x4xbf16>, vector<4x8xbf16>, vector<8x8xf32> -> vector<8x8xf32>
    %cst_21 = arith.constant dense<0.000000e+00> : vector<8x8xf32>
    %34 = tpu.matmul %32, %10, %cst_21 {dimension_numbers = #tpu.dot_dimension_numbers<[1], [0], [0], [1], [0, 0, 1, 1], [], []>} : vector<8x4xbf16>, vector<4x8xbf16>, vector<8x8xf32> -> vector<8x8xf32>
    %35 = arith.addf %33, %34 : vector<8x8xf32>
    %36 = arith.addf %20, %35 : vector<8x8xf32>
    %37 = vector.broadcast %6 : vector<1x8xf32> to vector<8x8xf32>
    %38 = arith.addf %36, %37 : vector<8x8xf32>
    %cst_22 = arith.constant dense<0xFF800000> : vector<8xf32>
    %39 = vector.multi_reduction <maximumf>, %38, %cst_22 [1] : vector<8x8xf32> to vector<8xf32>
    %40 = vector.shape_cast %39 : vector<8xf32> to vector<8x1xf32>
    %41 = vector.broadcast %40 : vector<8x1xf32> to vector<8x8xf32>
    %42 = arith.subf %38, %41 : vector<8x8xf32>
    %43 = math.exp %42 : vector<8x8xf32>
    %cst_23 = arith.constant dense<0.000000e+00> : vector<8xf32>
    %44 = vector.multi_reduction <add>, %43, %cst_23 [1] : vector<8x8xf32> to vector<8xf32>
    %45 = vector.shape_cast %44 : vector<8xf32> to vector<8x1xf32>
    %46 = tpu.reciprocal %45 {approx = true} : vector<8x1xf32> -> vector<8x1xf32>
    %47 = vector.broadcast %46 : vector<8x1xf32> to vector<8x8xf32>
    %48 = arith.mulf %43, %47 : vector<8x8xf32>
    %49 = arith.truncf %48 : vector<8x8xf32> to vector<8x8xbf16>
    %50 = arith.truncf %12 : vector<8x8xf32> to vector<8x8xbf16>
    %cst_24 = arith.constant dense<0.000000e+00> : vector<8x8xf32>
    %51 = tpu.matmul %49, %50, %cst_24 {dimension_numbers = #tpu.dot_dimension_numbers<[1], [0], [0], [1], [0, 0, 1, 1], [], []>} : vector<8x8xbf16>, vector<8x8xbf16>, vector<8x8xf32> -> vector<8x8xf32>
    %c0_25 = arith.constant 0 : index
    %c0_26 = arith.constant 0 : index
    %c0_27 = arith.constant 0 : index
    %52 = vector.load %arg10[%c0_25, %c0_26, %c0_27] : memref<1x8x32xf32, #tpu.memory_space<vmem>>, vector<1x8x8xf32>
    %53 = vector.shape_cast %52 : vector<1x8x8xf32> to vector<8x8xf32>
    %54 = vector.shape_cast %51 : vector<8x8xf32> to vector<1x8x8xf32>
    tpu.vector_store %arg10[%c0_25, %c0_26, %c0_27], %54 {strides = array<i32>} : memref<1x8x32xf32, #tpu.memory_space<vmem>>, vector<1x8x8xf32>,
    %55 = vector.extract_strided_slice %4 {offsets = [0, 8], sizes = [8, 8], strides = [1, 1]} : vector<8x64xf32> to vector<8x8xf32>
    %56 = vector.extract_strided_slice %4 {offsets = [0, 40], sizes = [8, 8], strides = [1, 1]} : vector<8x64xf32> to vector<8x8xf32>
    %57 = vector.extract_strided_slice %2 {offsets = [0, 8], sizes = [8, 8], strides = [1, 1]} : vector<8x32xbf16> to vector<8x8xbf16>
    %c1 = arith.constant 1 : index
    %c0_28 = arith.constant 0 : index
    %58 = vector.load %arg3[%c1, %c0_28] : memref<4x8xf32, #tpu.memory_space<vmem>>, vector<1x8xf32>
    %c1_29 = arith.constant 1 : index
    %c0_30 = arith.constant 0 : index
    %59 = vector.load %arg4[%c1_29, %c0_30] : memref<4x8xf32, #tpu.memory_space<vmem>>, vector<1x8xf32>
    %60 = vector.broadcast %58 : vector<1x8xf32> to vector<8x8xf32>
    %61 = arith.addf %55, %60 : vector<8x8xf32>
    %62 = arith.truncf %61 : vector<8x8xf32> to vector<8x8xbf16>
    %63 = tpu.transpose %57, [1, 0] : vector<8x8xbf16> -> vector<8x8xbf16>
    %cst_31 = arith.constant dense<0.000000e+00> : vector<8x8xf32>
    %64 = tpu.matmul %62, %63, %cst_31 {dimension_numbers = #tpu.dot_dimension_numbers<[1], [0], [0], [1], [0, 0, 1, 1], [], []>} : vector<8x8xbf16>, vector<8x8xbf16>, vector<8x8xf32> -> vector<8x8xf32>
    %65 = vector.broadcast %59 : vector<1x8xf32> to vector<8x8xf32>
    %66 = arith.addf %55, %65 : vector<8x8xf32>
    %67 = vector.extract_strided_slice %66 {offsets = [0, 0], sizes = [8, 4], strides = [1, 1]} : vector<8x8xf32> to vector<8x4xf32>
    %68 = vector.extract_strided_slice %66 {offsets = [0, 4], sizes = [8, 4], strides = [1, 1]} : vector<8x8xf32> to vector<8x4xf32>
    %69 = arith.mulf %67, %7 : vector<8x4xf32>
    %70 = arith.mulf %68, %8 : vector<8x4xf32>
    %71 = arith.addf %69, %70 : vector<8x4xf32>
    %72 = arith.truncf %71 : vector<8x4xf32> to vector<8x4xbf16>
    %73 = arith.mulf %68, %7 : vector<8x4xf32>
    %74 = arith.mulf %67, %8 : vector<8x4xf32>
    %75 = arith.subf %73, %74 : vector<8x4xf32>
    %76 = arith.truncf %75 : vector<8x4xf32> to vector<8x4xbf16>
    %cst_32 = arith.constant dense<0.000000e+00> : vector<8x8xf32>
    %77 = tpu.matmul %72, %9, %cst_32 {dimension_numbers = #tpu.dot_dimension_numbers<[1], [0], [0], [1], [0, 0, 1, 1], [], []>} : vector<8x4xbf16>, vector<4x8xbf16>, vector<8x8xf32> -> vector<8x8xf32>
    %cst_33 = arith.constant dense<0.000000e+00> : vector<8x8xf32>
    %78 = tpu.matmul %76, %10, %cst_33 {dimension_numbers = #tpu.dot_dimension_numbers<[1], [0], [0], [1], [0, 0, 1, 1], [], []>} : vector<8x4xbf16>, vector<4x8xbf16>, vector<8x8xf32> -> vector<8x8xf32>
    %79 = arith.addf %77, %78 : vector<8x8xf32>
    %80 = arith.addf %64, %79 : vector<8x8xf32>
    %81 = vector.broadcast %6 : vector<1x8xf32> to vector<8x8xf32>
    %82 = arith.addf %80, %81 : vector<8x8xf32>
    %cst_34 = arith.constant dense<0xFF800000> : vector<8xf32>
    %83 = vector.multi_reduction <maximumf>, %82, %cst_34 [1] : vector<8x8xf32> to vector<8xf32>
    %84 = vector.shape_cast %83 : vector<8xf32> to vector<8x1xf32>
    %85 = vector.broadcast %84 : vector<8x1xf32> to vector<8x8xf32>
    %86 = arith.subf %82, %85 : vector<8x8xf32>
    %87 = math.exp %86 : vector<8x8xf32>
    %cst_35 = arith.constant dense<0.000000e+00> : vector<8xf32>
    %88 = vector.multi_reduction <add>, %87, %cst_35 [1] : vector<8x8xf32> to vector<8xf32>
    %89 = vector.shape_cast %88 : vector<8xf32> to vector<8x1xf32>
    %90 = tpu.reciprocal %89 {approx = true} : vector<8x1xf32> -> vector<8x1xf32>
    %91 = vector.broadcast %90 : vector<8x1xf32> to vector<8x8xf32>
    %92 = arith.mulf %87, %91 : vector<8x8xf32>
    %93 = arith.truncf %92 : vector<8x8xf32> to vector<8x8xbf16>
    %94 = arith.truncf %56 : vector<8x8xf32> to vector<8x8xbf16>
    %cst_36 = arith.constant dense<0.000000e+00> : vector<8x8xf32>
    %95 = tpu.matmul %93, %94, %cst_36 {dimension_numbers = #tpu.dot_dimension_numbers<[1], [0], [0], [1], [0, 0, 1, 1], [], []>} : vector<8x8xbf16>, vector<8x8xbf16>, vector<8x8xf32> -> vector<8x8xf32>
    %c0_37 = arith.constant 0 : index
    %c0_38 = arith.constant 0 : index
    %c8 = arith.constant 8 : index
    %96 = vector.load %arg10[%c0_37, %c0_38, %c8] : memref<1x8x32xf32, #tpu.memory_space<vmem>>, vector<1x8x8xf32>
    %97 = vector.shape_cast %96 : vector<1x8x8xf32> to vector<8x8xf32>
    %98 = vector.shape_cast %95 : vector<8x8xf32> to vector<1x8x8xf32>
    tpu.vector_store %arg10[%c0_37, %c0_38, %c8], %98 {strides = array<i32>} : memref<1x8x32xf32, #tpu.memory_space<vmem>>, vector<1x8x8xf32>,
    %99 = vector.extract_strided_slice %4 {offsets = [0, 16], sizes = [8, 8], strides = [1, 1]} : vector<8x64xf32> to vector<8x8xf32>
    %100 = vector.extract_strided_slice %4 {offsets = [0, 48], sizes = [8, 8], strides = [1, 1]} : vector<8x64xf32> to vector<8x8xf32>
    %101 = vector.extract_strided_slice %2 {offsets = [0, 16], sizes = [8, 8], strides = [1, 1]} : vector<8x32xbf16> to vector<8x8xbf16>
    %c2 = arith.constant 2 : index
    %c0_39 = arith.constant 0 : index
    %102 = vector.load %arg3[%c2, %c0_39] : memref<4x8xf32, #tpu.memory_space<vmem>>, vector<1x8xf32>
    %c2_40 = arith.constant 2 : index
    %c0_41 = arith.constant 0 : index
    %103 = vector.load %arg4[%c2_40, %c0_41] : memref<4x8xf32, #tpu.memory_space<vmem>>, vector<1x8xf32>
    %104 = vector.broadcast %102 : vector<1x8xf32> to vector<8x8xf32>
    %105 = arith.addf %99, %104 : vector<8x8xf32>
    %106 = arith.truncf %105 : vector<8x8xf32> to vector<8x8xbf16>
    %107 = tpu.transpose %101, [1, 0] : vector<8x8xbf16> -> vector<8x8xbf16>
    %cst_42 = arith.constant dense<0.000000e+00> : vector<8x8xf32>
    %108 = tpu.matmul %106, %107, %cst_42 {dimension_numbers = #tpu.dot_dimension_numbers<[1], [0], [0], [1], [0, 0, 1, 1], [], []>} : vector<8x8xbf16>, vector<8x8xbf16>, vector<8x8xf32> -> vector<8x8xf32>
    %109 = vector.broadcast %103 : vector<1x8xf32> to vector<8x8xf32>
    %110 = arith.addf %99, %109 : vector<8x8xf32>
    %111 = vector.extract_strided_slice %110 {offsets = [0, 0], sizes = [8, 4], strides = [1, 1]} : vector<8x8xf32> to vector<8x4xf32>
    %112 = vector.extract_strided_slice %110 {offsets = [0, 4], sizes = [8, 4], strides = [1, 1]} : vector<8x8xf32> to vector<8x4xf32>
    %113 = arith.mulf %111, %7 : vector<8x4xf32>
    %114 = arith.mulf %112, %8 : vector<8x4xf32>
    %115 = arith.addf %113, %114 : vector<8x4xf32>
    %116 = arith.truncf %115 : vector<8x4xf32> to vector<8x4xbf16>
    %117 = arith.mulf %112, %7 : vector<8x4xf32>
    %118 = arith.mulf %111, %8 : vector<8x4xf32>
    %119 = arith.subf %117, %118 : vector<8x4xf32>
    %120 = arith.truncf %119 : vector<8x4xf32> to vector<8x4xbf16>
    %cst_43 = arith.constant dense<0.000000e+00> : vector<8x8xf32>
    %121 = tpu.matmul %116, %9, %cst_43 {dimension_numbers = #tpu.dot_dimension_numbers<[1], [0], [0], [1], [0, 0, 1, 1], [], []>} : vector<8x4xbf16>, vector<4x8xbf16>, vector<8x8xf32> -> vector<8x8xf32>
    %cst_44 = arith.constant dense<0.000000e+00> : vector<8x8xf32>
    %122 = tpu.matmul %120, %10, %cst_44 {dimension_numbers = #tpu.dot_dimension_numbers<[1], [0], [0], [1], [0, 0, 1, 1], [], []>} : vector<8x4xbf16>, vector<4x8xbf16>, vector<8x8xf32> -> vector<8x8xf32>
    %123 = arith.addf %121, %122 : vector<8x8xf32>
    %124 = arith.addf %108, %123 : vector<8x8xf32>
    %125 = vector.broadcast %6 : vector<1x8xf32> to vector<8x8xf32>
    %126 = arith.addf %124, %125 : vector<8x8xf32>
    %cst_45 = arith.constant dense<0xFF800000> : vector<8xf32>
    %127 = vector.multi_reduction <maximumf>, %126, %cst_45 [1] : vector<8x8xf32> to vector<8xf32>
    %128 = vector.shape_cast %127 : vector<8xf32> to vector<8x1xf32>
    %129 = vector.broadcast %128 : vector<8x1xf32> to vector<8x8xf32>
    %130 = arith.subf %126, %129 : vector<8x8xf32>
    %131 = math.exp %130 : vector<8x8xf32>
    %cst_46 = arith.constant dense<0.000000e+00> : vector<8xf32>
    %132 = vector.multi_reduction <add>, %131, %cst_46 [1] : vector<8x8xf32> to vector<8xf32>
    %133 = vector.shape_cast %132 : vector<8xf32> to vector<8x1xf32>
    %134 = tpu.reciprocal %133 {approx = true} : vector<8x1xf32> -> vector<8x1xf32>
    %135 = vector.broadcast %134 : vector<8x1xf32> to vector<8x8xf32>
    %136 = arith.mulf %131, %135 : vector<8x8xf32>
    %137 = arith.truncf %136 : vector<8x8xf32> to vector<8x8xbf16>
    %138 = arith.truncf %100 : vector<8x8xf32> to vector<8x8xbf16>
    %cst_47 = arith.constant dense<0.000000e+00> : vector<8x8xf32>
    %139 = tpu.matmul %137, %138, %cst_47 {dimension_numbers = #tpu.dot_dimension_numbers<[1], [0], [0], [1], [0, 0, 1, 1], [], []>} : vector<8x8xbf16>, vector<8x8xbf16>, vector<8x8xf32> -> vector<8x8xf32>
    %c0_48 = arith.constant 0 : index
    %c0_49 = arith.constant 0 : index
    %c16 = arith.constant 16 : index
    %140 = vector.load %arg10[%c0_48, %c0_49, %c16] : memref<1x8x32xf32, #tpu.memory_space<vmem>>, vector<1x8x8xf32>
    %141 = vector.shape_cast %140 : vector<1x8x8xf32> to vector<8x8xf32>
    %142 = vector.shape_cast %139 : vector<8x8xf32> to vector<1x8x8xf32>
    tpu.vector_store %arg10[%c0_48, %c0_49, %c16], %142 {strides = array<i32>} : memref<1x8x32xf32, #tpu.memory_space<vmem>>, vector<1x8x8xf32>,
    %143 = vector.extract_strided_slice %4 {offsets = [0, 24], sizes = [8, 8], strides = [1, 1]} : vector<8x64xf32> to vector<8x8xf32>
    %144 = vector.extract_strided_slice %4 {offsets = [0, 56], sizes = [8, 8], strides = [1, 1]} : vector<8x64xf32> to vector<8x8xf32>
    %145 = vector.extract_strided_slice %2 {offsets = [0, 24], sizes = [8, 8], strides = [1, 1]} : vector<8x32xbf16> to vector<8x8xbf16>
    %c3 = arith.constant 3 : index
    %c0_50 = arith.constant 0 : index
    %146 = vector.load %arg3[%c3, %c0_50] : memref<4x8xf32, #tpu.memory_space<vmem>>, vector<1x8xf32>
    %c3_51 = arith.constant 3 : index
    %c0_52 = arith.constant 0 : index
    %147 = vector.load %arg4[%c3_51, %c0_52] : memref<4x8xf32, #tpu.memory_space<vmem>>, vector<1x8xf32>
    %148 = vector.broadcast %146 : vector<1x8xf32> to vector<8x8xf32>
    %149 = arith.addf %143, %148 : vector<8x8xf32>
    %150 = arith.truncf %149 : vector<8x8xf32> to vector<8x8xbf16>
    %151 = tpu.transpose %145, [1, 0] : vector<8x8xbf16> -> vector<8x8xbf16>
    %cst_53 = arith.constant dense<0.000000e+00> : vector<8x8xf32>
    %152 = tpu.matmul %150, %151, %cst_53 {dimension_numbers = #tpu.dot_dimension_numbers<[1], [0], [0], [1], [0, 0, 1, 1], [], []>} : vector<8x8xbf16>, vector<8x8xbf16>, vector<8x8xf32> -> vector<8x8xf32>
    %153 = vector.broadcast %147 : vector<1x8xf32> to vector<8x8xf32>
    %154 = arith.addf %143, %153 : vector<8x8xf32>
    %155 = vector.extract_strided_slice %154 {offsets = [0, 0], sizes = [8, 4], strides = [1, 1]} : vector<8x8xf32> to vector<8x4xf32>
    %156 = vector.extract_strided_slice %154 {offsets = [0, 4], sizes = [8, 4], strides = [1, 1]} : vector<8x8xf32> to vector<8x4xf32>
    %157 = arith.mulf %155, %7 : vector<8x4xf32>
    %158 = arith.mulf %156, %8 : vector<8x4xf32>
    %159 = arith.addf %157, %158 : vector<8x4xf32>
    %160 = arith.truncf %159 : vector<8x4xf32> to vector<8x4xbf16>
    %161 = arith.mulf %156, %7 : vector<8x4xf32>
    %162 = arith.mulf %155, %8 : vector<8x4xf32>
    %163 = arith.subf %161, %162 : vector<8x4xf32>
    %164 = arith.truncf %163 : vector<8x4xf32> to vector<8x4xbf16>
    %cst_54 = arith.constant dense<0.000000e+00> : vector<8x8xf32>
    %165 = tpu.matmul %160, %9, %cst_54 {dimension_numbers = #tpu.dot_dimension_numbers<[1], [0], [0], [1], [0, 0, 1, 1], [], []>} : vector<8x4xbf16>, vector<4x8xbf16>, vector<8x8xf32> -> vector<8x8xf32>
    %cst_55 = arith.constant dense<0.000000e+00> : vector<8x8xf32>
    %166 = tpu.matmul %164, %10, %cst_55 {dimension_numbers = #tpu.dot_dimension_numbers<[1], [0], [0], [1], [0, 0, 1, 1], [], []>} : vector<8x4xbf16>, vector<4x8xbf16>, vector<8x8xf32> -> vector<8x8xf32>
    %167 = arith.addf %165, %166 : vector<8x8xf32>
    %168 = arith.addf %152, %167 : vector<8x8xf32>
    %169 = vector.broadcast %6 : vector<1x8xf32> to vector<8x8xf32>
    %170 = arith.addf %168, %169 : vector<8x8xf32>
    %cst_56 = arith.constant dense<0xFF800000> : vector<8xf32>
    %171 = vector.multi_reduction <maximumf>, %170, %cst_56 [1] : vector<8x8xf32> to vector<8xf32>
    %172 = vector.shape_cast %171 : vector<8xf32> to vector<8x1xf32>
    %173 = vector.broadcast %172 : vector<8x1xf32> to vector<8x8xf32>
    %174 = arith.subf %170, %173 : vector<8x8xf32>
    %175 = math.exp %174 : vector<8x8xf32>
    %cst_57 = arith.constant dense<0.000000e+00> : vector<8xf32>
    %176 = vector.multi_reduction <add>, %175, %cst_57 [1] : vector<8x8xf32> to vector<8xf32>
    %177 = vector.shape_cast %176 : vector<8xf32> to vector<8x1xf32>
    %178 = tpu.reciprocal %177 {approx = true} : vector<8x1xf32> -> vector<8x1xf32>
    %179 = vector.broadcast %178 : vector<8x1xf32> to vector<8x8xf32>
    %180 = arith.mulf %175, %179 : vector<8x8xf32>
    %181 = arith.truncf %180 : vector<8x8xf32> to vector<8x8xbf16>
    %182 = arith.truncf %144 : vector<8x8xf32> to vector<8x8xbf16>
    %cst_58 = arith.constant dense<0.000000e+00> : vector<8x8xf32>
    %183 = tpu.matmul %181, %182, %cst_58 {dimension_numbers = #tpu.dot_dimension_numbers<[1], [0], [0], [1], [0, 0, 1, 1], [], []>} : vector<8x8xbf16>, vector<8x8xbf16>, vector<8x8xf32> -> vector<8x8xf32>
    %c0_59 = arith.constant 0 : index
    %c0_60 = arith.constant 0 : index
    %c24 = arith.constant 24 : index
    %184 = vector.load %arg10[%c0_59, %c0_60, %c24] : memref<1x8x32xf32, #tpu.memory_space<vmem>>, vector<1x8x8xf32>
    %185 = vector.shape_cast %184 : vector<1x8x8xf32> to vector<8x8xf32>
    %186 = vector.shape_cast %183 : vector<8x8xf32> to vector<1x8x8xf32>
    tpu.vector_store %arg10[%c0_59, %c0_60, %c24], %186 {strides = array<i32>} : memref<1x8x32xf32, #tpu.memory_space<vmem>>, vector<1x8x8xf32>,
    return
  }
  func.func @transform_0(%arg0: i32) -> (i32, i32, i32) {
    %c0_i32 = arith.constant 0 : i32
    %c0_i32_0 = arith.constant 0 : i32
    %c0_i32_1 = arith.constant 0 : i32
    return %arg0, %c0_i32, %c0_i32_0 : i32, i32, i32
  }
  func.func @transform_1(%arg0: i32) -> (i32, i32) {
    %c0_i32 = arith.constant 0 : i32
    %c0_i32_0 = arith.constant 0 : i32
    %c0_i32_1 = arith.constant 0 : i32
    return %c0_i32, %c0_i32_0 : i32, i32
  }
  func.func @transform_2(%arg0: i32) -> (i32, i32) {
    %c0_i32 = arith.constant 0 : i32
    %c0_i32_0 = arith.constant 0 : i32
    %c0_i32_1 = arith.constant 0 : i32
    return %c0_i32, %c0_i32_0 : i32, i32
  }
  func.func @transform_3(%arg0: i32) -> (i32, i32) {
    %c0_i32 = arith.constant 0 : i32
    %c0_i32_0 = arith.constant 0 : i32
    %c0_i32_1 = arith.constant 0 : i32
    return %c0_i32, %c0_i32_0 : i32, i32
  }
  func.func @transform_4(%arg0: i32) -> (i32, i32) {
    %c0_i32 = arith.constant 0 : i32
    %c0_i32_0 = arith.constant 0 : i32
    %c0_i32_1 = arith.constant 0 : i32
    return %c0_i32, %c0_i32_0 : i32, i32
  }
  func.func @transform_5(%arg0: i32) -> (i32, i32) {
    %c0_i32 = arith.constant 0 : i32
    %c0_i32_0 = arith.constant 0 : i32
    %c0_i32_1 = arith.constant 0 : i32
    return %c0_i32, %c0_i32_0 : i32, i32
  }
  func.func @transform_6(%arg0: i32) -> (i32, i32) {
    %c0_i32 = arith.constant 0 : i32
    %c0_i32_0 = arith.constant 0 : i32
    %c0_i32_1 = arith.constant 0 : i32
    return %c0_i32, %c0_i32_0 : i32, i32
  }
  func.func @transform_7(%arg0: i32) -> (i32, i32) {
    %c0_i32 = arith.constant 0 : i32
    %c0_i32_0 = arith.constant 0 : i32
    %c0_i32_1 = arith.constant 0 : i32
    return %c0_i32, %c0_i32_0 : i32, i32
  }
  func.func @transform_8(%arg0: i32) -> (i32, i32, i32) {
    %c0_i32 = arith.constant 0 : i32
    %c0_i32_0 = arith.constant 0 : i32
    %c0_i32_1 = arith.constant 0 : i32
    return %arg0, %c0_i32, %c0_i32_0 : i32, i32, i32
  }
  func.func @transform_9(%arg0: i32) -> (i32, i32, i32) {
    %c0_i32 = arith.constant 0 : i32
    %c0_i32_0 = arith.constant 0 : i32
    %c0_i32_1 = arith.constant 0 : i32
    return %arg0, %c0_i32, %c0_i32_0 : i32, i32, i32
  }
}

module attributes {stable_mosaic.version = 11 : i64} {
  func.func @_attn_kernel(%arg0: i32, %arg1: memref<1x8x32xf32, #tpu.memory_space<vmem>>, %arg2: memref<32x64xbf16, #tpu.memory_space<vmem>>, %arg3: memref<4x8xf32, #tpu.memory_space<vmem>>, %arg4: memref<4x8xf32, #tpu.memory_space<vmem>>, %arg5: memref<8x4xf32, #tpu.memory_space<vmem>>, %arg6: memref<8x4xf32, #tpu.memory_space<vmem>>, %arg7: memref<4x8xbf16, #tpu.memory_space<vmem>>, %arg8: memref<4x8xbf16, #tpu.memory_space<vmem>>, %arg9: memref<1x1x8xf32, #tpu.memory_space<vmem>>, %arg10: memref<1x8x32xf32, #tpu.memory_space<vmem>>) attributes {dimension_semantics = [#tpu.dimension_semantics<parallel>], iteration_bounds = array<i64: 2>, scalar_prefetch = 0 : i64, scratch_operands = 0 : i64, tpu.core_type = #tpu.core_type<tc>, window_params = [{transform_indices = @transform_0, window_bounds = array<i64: 1, 8, 32>}, {pipeline_mode = #tpu.pipeline_mode<synchronous>, transform_indices = @transform_1, window_bounds = array<i64: 32, 64>}, {pipeline_mode = #tpu.pipeline_mode<synchronous>, transform_indices = @transform_2, window_bounds = array<i64: 4, 8>}, {pipeline_mode = #tpu.pipeline_mode<synchronous>, transform_indices = @transform_3, window_bounds = array<i64: 4, 8>}, {pipeline_mode = #tpu.pipeline_mode<synchronous>, transform_indices = @transform_4, window_bounds = array<i64: 8, 4>}, {pipeline_mode = #tpu.pipeline_mode<synchronous>, transform_indices = @transform_5, window_bounds = array<i64: 8, 4>}, {pipeline_mode = #tpu.pipeline_mode<synchronous>, transform_indices = @transform_6, window_bounds = array<i64: 4, 8>}, {pipeline_mode = #tpu.pipeline_mode<synchronous>, transform_indices = @transform_7, window_bounds = array<i64: 4, 8>}, {transform_indices = @transform_8, window_bounds = array<i64: 1, 1, 8>}, {transform_indices = @transform_9, window_bounds = array<i64: 1, 8, 32>}]} {
    %c0 = arith.constant 0 : index
    %c0_0 = arith.constant 0 : index
    %c0_1 = arith.constant 0 : index
    %0 = vector.load %arg1[%c0, %c0_0, %c0_1] : memref<1x8x32xf32, #tpu.memory_space<vmem>>, vector<1x8x32xf32>
    %1 = vector.shape_cast %0 : vector<1x8x32xf32> to vector<8x32xf32>
    %2 = arith.truncf %1 : vector<8x32xf32> to vector<8x32xbf16>
    %c0_2 = arith.constant 0 : index
    %c0_3 = arith.constant 0 : index
    %3 = vector.load %arg2[%c0_2, %c0_3] : memref<32x64xbf16, #tpu.memory_space<vmem>>, vector<32x64xbf16>
    %cst = arith.constant dense<0.000000e+00> : vector<8x64xf32>
    %4 = tpu.matmul %2, %3, %cst {dimension_numbers = #tpu.dot_dimension_numbers<[1], [0], [0], [1], [0, 0, 1, 1], [], []>} : vector<8x32xbf16>, vector<32x64xbf16>, vector<8x64xf32> -> vector<8x64xf32>
    %c0_4 = arith.constant 0 : index
    %c0_5 = arith.constant 0 : index
    %c0_6 = arith.constant 0 : index
    %5 = vector.load %arg9[%c0_4, %c0_5, %c0_6] : memref<1x1x8xf32, #tpu.memory_space<vmem>>, vector<1x1x8xf32>
    %6 = vector.shape_cast %5 : vector<1x1x8xf32> to vector<1x8xf32>
    %c0_7 = arith.constant 0 : index
    %c0_8 = arith.constant 0 : index
    %7 = vector.load %arg5[%c0_7, %c0_8] : memref<8x4xf32, #tpu.memory_space<vmem>>, vector<8x4xf32>
    %c0_9 = arith.constant 0 : index
    %c0_10 = arith.constant 0 : index
    %8 = vector.load %arg6[%c0_9, %c0_10] : memref<8x4xf32, #tpu.memory_space<vmem>>, vector<8x4xf32>
    %c0_11 = arith.constant 0 : index
    %c0_12 = arith.constant 0 : index
    %9 = vector.load %arg7[%c0_11, %c0_12] : memref<4x8xbf16, #tpu.memory_space<vmem>>, vector<4x8xbf16>
    %c0_13 = arith.constant 0 : index
    %c0_14 = arith.constant 0 : index
    %10 = vector.load %arg8[%c0_13, %c0_14] : memref<4x8xbf16, #tpu.memory_space<vmem>>, vector<4x8xbf16>
    %11 = vector.extract_strided_slice %4 {offsets = [0, 0], sizes = [8, 8], strides = [1, 1]} : vector<8x64xf32> to vector<8x8xf32>
    %12 = vector.extract_strided_slice %4 {offsets = [0, 32], sizes = [8, 8], strides = [1, 1]} : vector<8x64xf32> to vector<8x8xf32>
    %13 = vector.extract_strided_slice %2 {offsets = [0, 0], sizes = [8, 8], strides = [1, 1]} : vector<8x32xbf16> to vector<8x8xbf16>
    %c0_15 = arith.constant 0 : index
    %c0_16 = arith.constant 0 : index
    %14 = vector.load %arg3[%c0_15, %c0_16] : memref<4x8xf32, #tpu.memory_space<vmem>>, vector<1x8xf32>
    %c0_17 = arith.constant 0 : index
    %c0_18 = arith.constant 0 : index
    %15 = vector.load %arg4[%c0_17, %c0_18] : memref<4x8xf32, #tpu.memory_space<vmem>>, vector<1x8xf32>
    %16 = vector.broadcast %14 : vector<1x8xf32> to vector<8x8xf32>
    %17 = arith.addf %11, %16 : vector<8x8xf32>
    %18 = arith.truncf %17 : vector<8x8xf32> to vector<8x8xbf16>
    %19 = tpu.transpose %13, [1, 0] : vector<8x8xbf16> -> vector<8x8xbf16>
    %cst_19 = arith.constant dense<0.000000e+00> : vector<8x8xf32>
    %20 = tpu.matmul %18, %19, %cst_19 {dimension_numbers = #tpu.dot_dimension_numbers<[1], [0], [0], [1], [0, 0, 1, 1], [], []>} : vector<8x8xbf16>, vector<8x8xbf16>, vector<8x8xf32> -> vector<8x8xf32>
    %21 = vector.broadcast %15 : vector<1x8xf32> to vector<8x8xf32>
    %22 = arith.addf %11, %21 : vector<8x8xf32>
    %23 = vector.extract_strided_slice %22 {offsets = [0, 0], sizes = [8, 4], strides = [1, 1]} : vector<8x8xf32> to vector<8x4xf32>
    %24 = vector.extract_strided_slice %22 {offsets = [0, 4], sizes = [8, 4], strides = [1, 1]} : vector<8x8xf32> to vector<8x4xf32>
    %25 = arith.mulf %23, %7 : vector<8x4xf32>
    %26 = arith.mulf %24, %8 : vector<8x4xf32>
    %27 = arith.addf %25, %26 : vector<8x4xf32>
    %28 = arith.truncf %27 : vector<8x4xf32> to vector<8x4xbf16>
    %29 = arith.mulf %24, %7 : vector<8x4xf32>
    %30 = arith.mulf %23, %8 : vector<8x4xf32>
    %31 = arith.subf %29, %30 : vector<8x4xf32>
    %32 = arith.truncf %31 : vector<8x4xf32> to vector<8x4xbf16>
    %cst_20 = arith.constant dense<0.000000e+00> : vector<8x8xf32>
    %33 = tpu.matmul %28, %9, %cst_20 {dimension_numbers = #tpu.dot_dimension_numbers<[1], [0], [0], [1], [0, 0, 1, 1], [], []>} : vector<8x4xbf16>, vector<4x8xbf16>, vector<8x8xf32> -> vector<8x8xf32>
    %cst_21 = arith.constant dense<0.000000e+00> : vector<8x8xf32>
    %34 = tpu.matmul %32, %10, %cst_21 {dimension_numbers = #tpu.dot_dimension_numbers<[1], [0], [0], [1], [0, 0, 1, 1], [], []>} : vector<8x4xbf16>, vector<4x8xbf16>, vector<8x8xf32> -> vector<8x8xf32>
    %35 = arith.addf %33, %34 : vector<8x8xf32>
    %36 = arith.addf %20, %35 : vector<8x8xf32>
    %37 = vector.broadcast %6 : vector<1x8xf32> to vector<8x8xf32>
    %38 = arith.addf %36, %37 : vector<8x8xf32>
    %cst_22 = arith.constant dense<0xFF800000> : vector<8xf32>
    %39 = vector.multi_reduction <maximumf>, %38, %cst_22 [1] : vector<8x8xf32> to vector<8xf32>
    %40 = vector.shape_cast %39 : vector<8xf32> to vector<8x1xf32>
    %41 = vector.broadcast %40 : vector<8x1xf32> to vector<8x8xf32>
    %42 = arith.subf %38, %41 : vector<8x8xf32>
    %43 = math.exp %42 : vector<8x8xf32>
    %cst_23 = arith.constant dense<0.000000e+00> : vector<8xf32>
    %44 = vector.multi_reduction <add>, %43, %cst_23 [1] : vector<8x8xf32> to vector<8xf32>
    %45 = vector.shape_cast %44 : vector<8xf32> to vector<8x1xf32>
    %46 = tpu.reciprocal %45 {approx = true} : vector<8x1xf32> -> vector<8x1xf32>
    %47 = vector.broadcast %46 : vector<8x1xf32> to vector<8x8xf32>
    %48 = arith.mulf %43, %47 : vector<8x8xf32>
    %49 = arith.truncf %48 : vector<8x8xf32> to vector<8x8xbf16>
    %50 = arith.truncf %12 : vector<8x8xf32> to vector<8x8xbf16>
    %cst_24 = arith.constant dense<0.000000e+00> : vector<8x8xf32>
    %51 = tpu.matmul %49, %50, %cst_24 {dimension_numbers = #tpu.dot_dimension_numbers<[1], [0], [0], [1], [0, 0, 1, 1], [], []>} : vector<8x8xbf16>, vector<8x8xbf16>, vector<8x8xf32> -> vector<8x8xf32>
    %c0_25 = arith.constant 0 : index
    %c0_26 = arith.constant 0 : index
    %c0_27 = arith.constant 0 : index
    %52 = vector.load %arg10[%c0_25, %c0_26, %c0_27] : memref<1x8x32xf32, #tpu.memory_space<vmem>>, vector<1x8x8xf32>
    %53 = vector.shape_cast %52 : vector<1x8x8xf32> to vector<8x8xf32>
    %54 = vector.shape_cast %51 : vector<8x8xf32> to vector<1x8x8xf32>
    tpu.vector_store %arg10[%c0_25, %c0_26, %c0_27], %54 {strides = array<i32>} : memref<1x8x32xf32, #tpu.memory_space<vmem>>, vector<1x8x8xf32>,
    %55 = vector.extract_strided_slice %4 {offsets = [0, 8], sizes = [8, 8], strides = [1, 1]} : vector<8x64xf32> to vector<8x8xf32>
    %56 = vector.extract_strided_slice %4 {offsets = [0, 40], sizes = [8, 8], strides = [1, 1]} : vector<8x64xf32> to vector<8x8xf32>
    %57 = vector.extract_strided_slice %2 {offsets = [0, 8], sizes = [8, 8], strides = [1, 1]} : vector<8x32xbf16> to vector<8x8xbf16>
    %c1 = arith.constant 1 : index
    %c0_28 = arith.constant 0 : index
    %58 = vector.load %arg3[%c1, %c0_28] : memref<4x8xf32, #tpu.memory_space<vmem>>, vector<1x8xf32>
    %c1_29 = arith.constant 1 : index
    %c0_30 = arith.constant 0 : index
    %59 = vector.load %arg4[%c1_29, %c0_30] : memref<4x8xf32, #tpu.memory_space<vmem>>, vector<1x8xf32>
    %60 = vector.broadcast %58 : vector<1x8xf32> to vector<8x8xf32>
    %61 = arith.addf %55, %60 : vector<8x8xf32>
    %62 = arith.truncf %61 : vector<8x8xf32> to vector<8x8xbf16>
    %63 = tpu.transpose %57, [1, 0] : vector<8x8xbf16> -> vector<8x8xbf16>
    %cst_31 = arith.constant dense<0.000000e+00> : vector<8x8xf32>
    %64 = tpu.matmul %62, %63, %cst_31 {dimension_numbers = #tpu.dot_dimension_numbers<[1], [0], [0], [1], [0, 0, 1, 1], [], []>} : vector<8x8xbf16>, vector<8x8xbf16>, vector<8x8xf32> -> vector<8x8xf32>
    %65 = vector.broadcast %59 : vector<1x8xf32> to vector<8x8xf32>
    %66 = arith.addf %55, %65 : vector<8x8xf32>
    %67 = vector.extract_strided_slice %66 {offsets = [0, 0], sizes = [8, 4], strides = [1, 1]} : vector<8x8xf32> to vector<8x4xf32>
    %68 = vector.extract_strided_slice %66 {offsets = [0, 4], sizes = [8, 4], strides = [1, 1]} : vector<8x8xf32> to vector<8x4xf32>
    %69 = arith.mulf %67, %7 : vector<8x4xf32>
    %70 = arith.mulf %68, %8 : vector<8x4xf32>
    %71 = arith.addf %69, %70 : vector<8x4xf32>
    %72 = arith.truncf %71 : vector<8x4xf32> to vector<8x4xbf16>
    %73 = arith.mulf %68, %7 : vector<8x4xf32>
    %74 = arith.mulf %67, %8 : vector<8x4xf32>
    %75 = arith.subf %73, %74 : vector<8x4xf32>
    %76 = arith.truncf %75 : vector<8x4xf32> to vector<8x4xbf16>
    %cst_32 = arith.constant dense<0.000000e+00> : vector<8x8xf32>
    %77 = tpu.matmul %72, %9, %cst_32 {dimension_numbers = #tpu.dot_dimension_numbers<[1], [0], [0], [1], [0, 0, 1, 1], [], []>} : vector<8x4xbf16>, vector<4x8xbf16>, vector<8x8xf32> -> vector<8x8xf32>
    %cst_33 = arith.constant dense<0.000000e+00> : vector<8x8xf32>
    %78 = tpu.matmul %76, %10, %cst_33 {dimension_numbers = #tpu.dot_dimension_numbers<[1], [0], [0], [1], [0, 0, 1, 1], [], []>} : vector<8x4xbf16>, vector<4x8xbf16>, vector<8x8xf32> -> vector<8x8xf32>
    %79 = arith.addf %77, %78 : vector<8x8xf32>
    %80 = arith.addf %64, %79 : vector<8x8xf32>
    %81 = vector.broadcast %6 : vector<1x8xf32> to vector<8x8xf32>
    %82 = arith.addf %80, %81 : vector<8x8xf32>
    %cst_34 = arith.constant dense<0xFF800000> : vector<8xf32>
    %83 = vector.multi_reduction <maximumf>, %82, %cst_34 [1] : vector<8x8xf32> to vector<8xf32>
    %84 = vector.shape_cast %83 : vector<8xf32> to vector<8x1xf32>
    %85 = vector.broadcast %84 : vector<8x1xf32> to vector<8x8xf32>
    %86 = arith.subf %82, %85 : vector<8x8xf32>
    %87 = math.exp %86 : vector<8x8xf32>
    %cst_35 = arith.constant dense<0.000000e+00> : vector<8xf32>
    %88 = vector.multi_reduction <add>, %87, %cst_35 [1] : vector<8x8xf32> to vector<8xf32>
    %89 = vector.shape_cast %88 : vector<8xf32> to vector<8x1xf32>
    %90 = tpu.reciprocal %89 {approx = true} : vector<8x1xf32> -> vector<8x1xf32>
    %91 = vector.broadcast %90 : vector<8x1xf32> to vector<8x8xf32>
    %92 = arith.mulf %87, %91 : vector<8x8xf32>
    %93 = arith.truncf %92 : vector<8x8xf32> to vector<8x8xbf16>
    %94 = arith.truncf %56 : vector<8x8xf32> to vector<8x8xbf16>
    %cst_36 = arith.constant dense<0.000000e+00> : vector<8x8xf32>
    %95 = tpu.matmul %93, %94, %cst_36 {dimension_numbers = #tpu.dot_dimension_numbers<[1], [0], [0], [1], [0, 0, 1, 1], [], []>} : vector<8x8xbf16>, vector<8x8xbf16>, vector<8x8xf32> -> vector<8x8xf32>
    %c0_37 = arith.constant 0 : index
    %c0_38 = arith.constant 0 : index
    %c8 = arith.constant 8 : index
    %96 = vector.load %arg10[%c0_37, %c0_38, %c8] : memref<1x8x32xf32, #tpu.memory_space<vmem>>, vector<1x8x8xf32>
    %97 = vector.shape_cast %96 : vector<1x8x8xf32> to vector<8x8xf32>
    %98 = vector.shape_cast %95 : vector<8x8xf32> to vector<1x8x8xf32>
    tpu.vector_store %arg10[%c0_37, %c0_38, %c8], %98 {strides = array<i32>} : memref<1x8x32xf32, #tpu.memory_space<vmem>>, vector<1x8x8xf32>,
    %99 = vector.extract_strided_slice %4 {offsets = [0, 16], sizes = [8, 8], strides = [1, 1]} : vector<8x64xf32> to vector<8x8xf32>
    %100 = vector.extract_strided_slice %4 {offsets = [0, 48], sizes = [8, 8], strides = [1, 1]} : vector<8x64xf32> to vector<8x8xf32>
    %101 = vector.extract_strided_slice %2 {offsets = [0, 16], sizes = [8, 8], strides = [1, 1]} : vector<8x32xbf16> to vector<8x8xbf16>
    %c2 = arith.constant 2 : index
    %c0_39 = arith.constant 0 : index
    %102 = vector.load %arg3[%c2, %c0_39] : memref<4x8xf32, #tpu.memory_space<vmem>>, vector<1x8xf32>
    %c2_40 = arith.constant 2 : index
    %c0_41 = arith.constant 0 : index
    %103 = vector.load %arg4[%c2_40, %c0_41] : memref<4x8xf32, #tpu.memory_space<vmem>>, vector<1x8xf32>
    %104 = vector.broadcast %102 : vector<1x8xf32> to vector<8x8xf32>
    %105 = arith.addf %99, %104 : vector<8x8xf32>
    %106 = arith.truncf %105 : vector<8x8xf32> to vector<8x8xbf16>
    %107 = tpu.transpose %101, [1, 0] : vector<8x8xbf16> -> vector<8x8xbf16>
    %cst_42 = arith.constant dense<0.000000e+00> : vector<8x8xf32>
    %108 = tpu.matmul %106, %107, %cst_42 {dimension_numbers = #tpu.dot_dimension_numbers<[1], [0], [0], [1], [0, 0, 1, 1], [], []>} : vector<8x8xbf16>, vector<8x8xbf16>, vector<8x8xf32> -> vector<8x8xf32>
    %109 = vector.broadcast %103 : vector<1x8xf32> to vector<8x8xf32>
    %110 = arith.addf %99, %109 : vector<8x8xf32>
    %111 = vector.extract_strided_slice %110 {offsets = [0, 0], sizes = [8, 4], strides = [1, 1]} : vector<8x8xf32> to vector<8x4xf32>
    %112 = vector.extract_strided_slice %110 {offsets = [0, 4], sizes = [8, 4], strides = [1, 1]} : vector<8x8xf32> to vector<8x4xf32>
    %113 = arith.mulf %111, %7 : vector<8x4xf32>
    %114 = arith.mulf %112, %8 : vector<8x4xf32>
    %115 = arith.addf %113, %114 : vector<8x4xf32>
    %116 = arith.truncf %115 : vector<8x4xf32> to vector<8x4xbf16>
    %117 = arith.mulf %112, %7 : vector<8x4xf32>
    %118 = arith.mulf %111, %8 : vector<8x4xf32>
    %119 = arith.subf %117, %118 : vector<8x4xf32>
    %120 = arith.truncf %119 : vector<8x4xf32> to vector<8x4xbf16>
    %cst_43 = arith.constant dense<0.000000e+00> : vector<8x8xf32>
    %121 = tpu.matmul %116, %9, %cst_43 {dimension_numbers = #tpu.dot_dimension_numbers<[1], [0], [0], [1], [0, 0, 1, 1], [], []>} : vector<8x4xbf16>, vector<4x8xbf16>, vector<8x8xf32> -> vector<8x8xf32>
    %cst_44 = arith.constant dense<0.000000e+00> : vector<8x8xf32>
    %122 = tpu.matmul %120, %10, %cst_44 {dimension_numbers = #tpu.dot_dimension_numbers<[1], [0], [0], [1], [0, 0, 1, 1], [], []>} : vector<8x4xbf16>, vector<4x8xbf16>, vector<8x8xf32> -> vector<8x8xf32>
    %123 = arith.addf %121, %122 : vector<8x8xf32>
    %124 = arith.addf %108, %123 : vector<8x8xf32>
    %125 = vector.broadcast %6 : vector<1x8xf32> to vector<8x8xf32>
    %126 = arith.addf %124, %125 : vector<8x8xf32>
    %cst_45 = arith.constant dense<0xFF800000> : vector<8xf32>
    %127 = vector.multi_reduction <maximumf>, %126, %cst_45 [1] : vector<8x8xf32> to vector<8xf32>
    %128 = vector.shape_cast %127 : vector<8xf32> to vector<8x1xf32>
    %129 = vector.broadcast %128 : vector<8x1xf32> to vector<8x8xf32>
    %130 = arith.subf %126, %129 : vector<8x8xf32>
    %131 = math.exp %130 : vector<8x8xf32>
    %cst_46 = arith.constant dense<0.000000e+00> : vector<8xf32>
    %132 = vector.multi_reduction <add>, %131, %cst_46 [1] : vector<8x8xf32> to vector<8xf32>
    %133 = vector.shape_cast %132 : vector<8xf32> to vector<8x1xf32>
    %134 = tpu.reciprocal %133 {approx = true} : vector<8x1xf32> -> vector<8x1xf32>
    %135 = vector.broadcast %134 : vector<8x1xf32> to vector<8x8xf32>
    %136 = arith.mulf %131, %135 : vector<8x8xf32>
    %137 = arith.truncf %136 : vector<8x8xf32> to vector<8x8xbf16>
    %138 = arith.truncf %100 : vector<8x8xf32> to vector<8x8xbf16>
    %cst_47 = arith.constant dense<0.000000e+00> : vector<8x8xf32>
    %139 = tpu.matmul %137, %138, %cst_47 {dimension_numbers = #tpu.dot_dimension_numbers<[1], [0], [0], [1], [0, 0, 1, 1], [], []>} : vector<8x8xbf16>, vector<8x8xbf16>, vector<8x8xf32> -> vector<8x8xf32>
    %c0_48 = arith.constant 0 : index
    %c0_49 = arith.constant 0 : index
    %c16 = arith.constant 16 : index
    %140 = vector.load %arg10[%c0_48, %c0_49, %c16] : memref<1x8x32xf32, #tpu.memory_space<vmem>>, vector<1x8x8xf32>
    %141 = vector.shape_cast %140 : vector<1x8x8xf32> to vector<8x8xf32>
    %142 = vector.shape_cast %139 : vector<8x8xf32> to vector<1x8x8xf32>
    tpu.vector_store %arg10[%c0_48, %c0_49, %c16], %142 {strides = array<i32>} : memref<1x8x32xf32, #tpu.memory_space<vmem>>, vector<1x8x8xf32>,
    %143 = vector.extract_strided_slice %4 {offsets = [0, 24], sizes = [8, 8], strides = [1, 1]} : vector<8x64xf32> to vector<8x8xf32>
    %144 = vector.extract_strided_slice %4 {offsets = [0, 56], sizes = [8, 8], strides = [1, 1]} : vector<8x64xf32> to vector<8x8xf32>
    %145 = vector.extract_strided_slice %2 {offsets = [0, 24], sizes = [8, 8], strides = [1, 1]} : vector<8x32xbf16> to vector<8x8xbf16>
    %c3 = arith.constant 3 : index
    %c0_50 = arith.constant 0 : index
    %146 = vector.load %arg3[%c3, %c0_50] : memref<4x8xf32, #tpu.memory_space<vmem>>, vector<1x8xf32>
    %c3_51 = arith.constant 3 : index
    %c0_52 = arith.constant 0 : index
    %147 = vector.load %arg4[%c3_51, %c0_52] : memref<4x8xf32, #tpu.memory_space<vmem>>, vector<1x8xf32>
    %148 = vector.broadcast %146 : vector<1x8xf32> to vector<8x8xf32>
    %149 = arith.addf %143, %148 : vector<8x8xf32>
    %150 = arith.truncf %149 : vector<8x8xf32> to vector<8x8xbf16>
    %151 = tpu.transpose %145, [1, 0] : vector<8x8xbf16> -> vector<8x8xbf16>
    %cst_53 = arith.constant dense<0.000000e+00> : vector<8x8xf32>
    %152 = tpu.matmul %150, %151, %cst_53 {dimension_numbers = #tpu.dot_dimension_numbers<[1], [0], [0], [1], [0, 0, 1, 1], [], []>} : vector<8x8xbf16>, vector<8x8xbf16>, vector<8x8xf32> -> vector<8x8xf32>
    %153 = vector.broadcast %147 : vector<1x8xf32> to vector<8x8xf32>
    %154 = arith.addf %143, %153 : vector<8x8xf32>
    %155 = vector.extract_strided_slice %154 {offsets = [0, 0], sizes = [8, 4], strides = [1, 1]} : vector<8x8xf32> to vector<8x4xf32>
    %156 = vector.extract_strided_slice %154 {offsets = [0, 4], sizes = [8, 4], strides = [1, 1]} : vector<8x8xf32> to vector<8x4xf32>
    %157 = arith.mulf %155, %7 : vector<8x4xf32>
    %158 = arith.mulf %156, %8 : vector<8x4xf32>
    %159 = arith.addf %157, %158 : vector<8x4xf32>
    %160 = arith.truncf %159 : vector<8x4xf32> to vector<8x4xbf16>
    %161 = arith.mulf %156, %7 : vector<8x4xf32>
    %162 = arith.mulf %155, %8 : vector<8x4xf32>
    %163 = arith.subf %161, %162 : vector<8x4xf32>
    %164 = arith.truncf %163 : vector<8x4xf32> to vector<8x4xbf16>
    %cst_54 = arith.constant dense<0.000000e+00> : vector<8x8xf32>
    %165 = tpu.matmul %160, %9, %cst_54 {dimension_numbers = #tpu.dot_dimension_numbers<[1], [0], [0], [1], [0, 0, 1, 1], [], []>} : vector<8x4xbf16>, vector<4x8xbf16>, vector<8x8xf32> -> vector<8x8xf32>
    %cst_55 = arith.constant dense<0.000000e+00> : vector<8x8xf32>
    %166 = tpu.matmul %164, %10, %cst_55 {dimension_numbers = #tpu.dot_dimension_numbers<[1], [0], [0], [1], [0, 0, 1, 1], [], []>} : vector<8x4xbf16>, vector<4x8xbf16>, vector<8x8xf32> -> vector<8x8xf32>
    %167 = arith.addf %165, %166 : vector<8x8xf32>
    %168 = arith.addf %152, %167 : vector<8x8xf32>
    %169 = vector.broadcast %6 : vector<1x8xf32> to vector<8x8xf32>
    %170 = arith.addf %168, %169 : vector<8x8xf32>
    %cst_56 = arith.constant dense<0xFF800000> : vector<8xf32>
    %171 = vector.multi_reduction <maximumf>, %170, %cst_56 [1] : vector<8x8xf32> to vector<8xf32>
    %172 = vector.shape_cast %171 : vector<8xf32> to vector<8x1xf32>
    %173 = vector.broadcast %172 : vector<8x1xf32> to vector<8x8xf32>
    %174 = arith.subf %170, %173 : vector<8x8xf32>
    %175 = math.exp %174 : vector<8x8xf32>
    %cst_57 = arith.constant dense<0.000000e+00> : vector<8xf32>
    %176 = vector.multi_reduction <add>, %175, %cst_57 [1] : vector<8x8xf32> to vector<8xf32>
    %177 = vector.shape_cast %176 : vector<8xf32> to vector<8x1xf32>
    %178 = tpu.reciprocal %177 {approx = true} : vector<8x1xf32> -> vector<8x1xf32>
    %179 = vector.broadcast %178 : vector<8x1xf32> to vector<8x8xf32>
    %180 = arith.mulf %175, %179 : vector<8x8xf32>
    %181 = arith.truncf %180 : vector<8x8xf32> to vector<8x8xbf16>
    %182 = arith.truncf %144 : vector<8x8xf32> to vector<8x8xbf16>
    %cst_58 = arith.constant dense<0.000000e+00> : vector<8x8xf32>
    %183 = tpu.matmul %181, %182, %cst_58 {dimension_numbers = #tpu.dot_dimension_numbers<[1], [0], [0], [1], [0, 0, 1, 1], [], []>} : vector<8x8xbf16>, vector<8x8xbf16>, vector<8x8xf32> -> vector<8x8xf32>
    %c0_59 = arith.constant 0 : index
    %c0_60 = arith.constant 0 : index
    %c24 = arith.constant 24 : index
    %184 = vector.load %arg10[%c0_59, %c0_60, %c24] : memref<1x8x32xf32, #tpu.memory_space<vmem>>, vector<1x8x8xf32>
    %185 = vector.shape_cast %184 : vector<1x8x8xf32> to vector<8x8xf32>
    %186 = vector.shape_cast %183 : vector<8x8xf32> to vector<1x8x8xf32>
    tpu.vector_store %arg10[%c0_59, %c0_60, %c24], %186 {strides = array<i32>} : memref<1x8x32xf32, #tpu.memory_space<vmem>>, vector<1x8x8xf32>,
    return
  }
  func.func @transform_0(%arg0: i32) -> (i32, i32, i32) {
    %c0_i32 = arith.constant 0 : i32
    %c0_i32_0 = arith.constant 0 : i32
    %c0_i32_1 = arith.constant 0 : i32
    return %arg0, %c0_i32, %c0_i32_0 : i32, i32, i32
  }
  func.func @transform_1(%arg0: i32) -> (i32, i32) {
    %c0_i32 = arith.constant 0 : i32
    %c0_i32_0 = arith.constant 0 : i32
    %c0_i32_1 = arith.constant 0 : i32
    return %c0_i32, %c0_i32_0 : i32, i32
  }
  func.func @transform_2(%arg0: i32) -> (i32, i32) {
    %c0_i32 = arith.constant 0 : i32
    %c0_i32_0 = arith.constant 0 : i32
    %c0_i32_1 = arith.constant 0 : i32
    return %c0_i32, %c0_i32_0 : i32, i32
  }
  func.func @transform_3(%arg0: i32) -> (i32, i32) {
    %c0_i32 = arith.constant 0 : i32
    %c0_i32_0 = arith.constant 0 : i32
    %c0_i32_1 = arith.constant 0 : i32
    return %c0_i32, %c0_i32_0 : i32, i32
  }
  func.func @transform_4(%arg0: i32) -> (i32, i32) {
    %c0_i32 = arith.constant 0 : i32
    %c0_i32_0 = arith.constant 0 : i32
    %c0_i32_1 = arith.constant 0 : i32
    return %c0_i32, %c0_i32_0 : i32, i32
  }
  func.func @transform_5(%arg0: i32) -> (i32, i32) {
    %c0_i32 = arith.constant 0 : i32
    %c0_i32_0 = arith.constant 0 : i32
    %c0_i32_1 = arith.constant 0 : i32
    return %c0_i32, %c0_i32_0 : i32, i32
  }
  func.func @transform_6(%arg0: i32) -> (i32, i32) {
    %c0_i32 = arith.constant 0 : i32
    %c0_i32_0 = arith.constant 0 : i32
    %c0_i32_1 = arith.constant 0 : i32
    return %c0_i32, %c0_i32_0 : i32, i32
  }
  func.func @transform_7(%arg0: i32) -> (i32, i32) {
    %c0_i32 = arith.constant 0 : i32
    %c0_i32_0 = arith.constant 0 : i32
    %c0_i32_1 = arith.constant 0 : i32
    return %c0_i32, %c0_i32_0 : i32, i32
  }
  func.func @transform_8(%arg0: i32) -> (i32, i32, i32) {
    %c0_i32 = arith.constant 0 : i32
    %c0_i32_0 = arith.constant 0 : i32
    %c0_i32_1 = arith.constant 0 : i32
    return %arg0, %c0_i32, %c0_i32_0 : i32, i32, i32
  }
  func.func @transform_9(%arg0: i32) -> (i32, i32, i32) {
    %c0_i32 = arith.constant 0 : i32
    %c0_i32_0 = arith.constant 0 : i32
    %c0_i32_1 = arith.constant 0 : i32
    return %arg0, %c0_i32, %c0_i32_0 : i32, i32, i32
  }
}

module attributes {stable_mosaic.version = 11 : i64} {
  func.func @_ffn_kernel(%arg0: i32, %arg1: memref<16x32xf32, #tpu.memory_space<vmem>>, %arg2: memref<16x32xf32, #tpu.memory_space<vmem>>, %arg3: memref<1x32xf32, #tpu.memory_space<vmem>>, %arg4: memref<1x32xf32, #tpu.memory_space<vmem>>, %arg5: memref<32x64xbf16, #tpu.memory_space<vmem>>, %arg6: memref<1x64xf32, #tpu.memory_space<vmem>>, %arg7: memref<64x32xbf16, #tpu.memory_space<vmem>>, %arg8: memref<1x32xf32, #tpu.memory_space<vmem>>, %arg9: memref<1x32xf32, #tpu.memory_space<vmem>>, %arg10: memref<1x32xf32, #tpu.memory_space<vmem>>, %arg11: memref<16x32xf32, #tpu.memory_space<vmem>>) attributes {dimension_semantics = [#tpu.dimension_semantics<parallel>], iteration_bounds = array<i64: 1>, scalar_prefetch = 0 : i64, scratch_operands = 0 : i64, tpu.core_type = #tpu.core_type<tc>, window_params = [{transform_indices = @transform_0, window_bounds = array<i64: 16, 32>}, {transform_indices = @transform_1, window_bounds = array<i64: 16, 32>}, {pipeline_mode = #tpu.pipeline_mode<synchronous>, transform_indices = @transform_2, window_bounds = array<i64: 1, 32>}, {pipeline_mode = #tpu.pipeline_mode<synchronous>, transform_indices = @transform_3, window_bounds = array<i64: 1, 32>}, {pipeline_mode = #tpu.pipeline_mode<synchronous>, transform_indices = @transform_4, window_bounds = array<i64: 32, 64>}, {pipeline_mode = #tpu.pipeline_mode<synchronous>, transform_indices = @transform_5, window_bounds = array<i64: 1, 64>}, {pipeline_mode = #tpu.pipeline_mode<synchronous>, transform_indices = @transform_6, window_bounds = array<i64: 64, 32>}, {pipeline_mode = #tpu.pipeline_mode<synchronous>, transform_indices = @transform_7, window_bounds = array<i64: 1, 32>}, {pipeline_mode = #tpu.pipeline_mode<synchronous>, transform_indices = @transform_8, window_bounds = array<i64: 1, 32>}, {pipeline_mode = #tpu.pipeline_mode<synchronous>, transform_indices = @transform_9, window_bounds = array<i64: 1, 32>}, {transform_indices = @transform_10, window_bounds = array<i64: 16, 32>}]} {
    %c0 = arith.constant 0 : index
    %c0_0 = arith.constant 0 : index
    %0 = vector.load %arg1[%c0, %c0_0] : memref<16x32xf32, #tpu.memory_space<vmem>>, vector<16x32xf32>
    %c0_1 = arith.constant 0 : index
    %c0_2 = arith.constant 0 : index
    %1 = vector.load %arg2[%c0_1, %c0_2] : memref<16x32xf32, #tpu.memory_space<vmem>>, vector<16x32xf32>
    %2 = arith.addf %0, %1 : vector<16x32xf32>
    %cst = arith.constant dense<0.000000e+00> : vector<16xf32>
    %3 = vector.multi_reduction <add>, %2, %cst [1] : vector<16x32xf32> to vector<16xf32>
    %4 = vector.shape_cast %3 : vector<16xf32> to vector<16x1xf32>
    %cst_3 = arith.constant 3.200000e+01 : f32
    %5 = vector.broadcast %cst_3 : f32 to vector<16x1xf32>
    %6 = arith.divf %4, %5 : vector<16x1xf32>
    %7 = vector.broadcast %6 : vector<16x1xf32> to vector<16x32xf32>
    %8 = arith.subf %2, %7 : vector<16x32xf32>
    %9 = arith.mulf %8, %8 : vector<16x32xf32>
    %cst_4 = arith.constant dense<0.000000e+00> : vector<16xf32>
    %10 = vector.multi_reduction <add>, %9, %cst_4 [1] : vector<16x32xf32> to vector<16xf32>
    %11 = vector.shape_cast %10 : vector<16xf32> to vector<16x1xf32>
    %cst_5 = arith.constant 3.200000e+01 : f32
    %12 = vector.broadcast %cst_5 : f32 to vector<16x1xf32>
    %13 = arith.divf %11, %12 : vector<16x1xf32>
    %14 = vector.broadcast %6 : vector<16x1xf32> to vector<16x32xf32>
    %15 = arith.subf %2, %14 : vector<16x32xf32>
    %cst_6 = arith.constant 9.99999974E-6 : f32
    %16 = vector.broadcast %cst_6 : f32 to vector<16x1xf32>
    %17 = arith.addf %13, %16 : vector<16x1xf32>
    %18 = math.rsqrt %17 : vector<16x1xf32>
    %19 = vector.broadcast %18 : vector<16x1xf32> to vector<16x32xf32>
    %20 = arith.mulf %15, %19 : vector<16x32xf32>
    %c0_7 = arith.constant 0 : index
    %c0_8 = arith.constant 0 : index
    %21 = vector.load %arg3[%c0_7, %c0_8] : memref<1x32xf32, #tpu.memory_space<vmem>>, vector<1x32xf32>
    %22 = vector.broadcast %21 : vector<1x32xf32> to vector<16x32xf32>
    %23 = arith.mulf %20, %22 : vector<16x32xf32>
    %c0_9 = arith.constant 0 : index
    %c0_10 = arith.constant 0 : index
    %24 = vector.load %arg4[%c0_9, %c0_10] : memref<1x32xf32, #tpu.memory_space<vmem>>, vector<1x32xf32>
    %25 = vector.broadcast %24 : vector<1x32xf32> to vector<16x32xf32>
    %26 = arith.addf %23, %25 : vector<16x32xf32>
    %27 = arith.truncf %26 : vector<16x32xf32> to vector<16x32xbf16>
    %c0_11 = arith.constant 0 : index
    %c0_12 = arith.constant 0 : index
    %28 = vector.load %arg5[%c0_11, %c0_12] : memref<32x64xbf16, #tpu.memory_space<vmem>>, vector<32x64xbf16>
    %cst_13 = arith.constant dense<0.000000e+00> : vector<16x64xf32>
    %29 = tpu.matmul %27, %28, %cst_13 {dimension_numbers = #tpu.dot_dimension_numbers<[1], [0], [0], [1], [0, 0, 1, 1], [], []>} : vector<16x32xbf16>, vector<32x64xbf16>, vector<16x64xf32> -> vector<16x64xf32>
    %c0_14 = arith.constant 0 : index
    %c0_15 = arith.constant 0 : index
    %30 = vector.load %arg6[%c0_14, %c0_15] : memref<1x64xf32, #tpu.memory_space<vmem>>, vector<1x64xf32>
    %31 = vector.broadcast %30 : vector<1x64xf32> to vector<16x64xf32>
    %32 = arith.addf %29, %31 : vector<16x64xf32>
    %cst_16 = arith.constant 0.000000e+00 : f32
    %33 = vector.broadcast %cst_16 : f32 to vector<16x64xf32>
    %34 = arith.maximumf %32, %33 : vector<16x64xf32>
    %35 = arith.truncf %34 : vector<16x64xf32> to vector<16x64xbf16>
    %c0_17 = arith.constant 0 : index
    %c0_18 = arith.constant 0 : index
    %36 = vector.load %arg7[%c0_17, %c0_18] : memref<64x32xbf16, #tpu.memory_space<vmem>>, vector<64x32xbf16>
    %cst_19 = arith.constant dense<0.000000e+00> : vector<16x32xf32>
    %37 = tpu.matmul %35, %36, %cst_19 {dimension_numbers = #tpu.dot_dimension_numbers<[1], [0], [0], [1], [0, 0, 1, 1], [], []>} : vector<16x64xbf16>, vector<64x32xbf16>, vector<16x32xf32> -> vector<16x32xf32>
    %c0_20 = arith.constant 0 : index
    %c0_21 = arith.constant 0 : index
    %38 = vector.load %arg8[%c0_20, %c0_21] : memref<1x32xf32, #tpu.memory_space<vmem>>, vector<1x32xf32>
    %39 = vector.broadcast %38 : vector<1x32xf32> to vector<16x32xf32>
    %40 = arith.addf %37, %39 : vector<16x32xf32>
    %41 = arith.addf %26, %40 : vector<16x32xf32>
    %cst_22 = arith.constant dense<0.000000e+00> : vector<16xf32>
    %42 = vector.multi_reduction <add>, %41, %cst_22 [1] : vector<16x32xf32> to vector<16xf32>
    %43 = vector.shape_cast %42 : vector<16xf32> to vector<16x1xf32>
    %cst_23 = arith.constant 3.200000e+01 : f32
    %44 = vector.broadcast %cst_23 : f32 to vector<16x1xf32>
    %45 = arith.divf %43, %44 : vector<16x1xf32>
    %46 = vector.broadcast %45 : vector<16x1xf32> to vector<16x32xf32>
    %47 = arith.subf %41, %46 : vector<16x32xf32>
    %48 = arith.mulf %47, %47 : vector<16x32xf32>
    %cst_24 = arith.constant dense<0.000000e+00> : vector<16xf32>
    %49 = vector.multi_reduction <add>, %48, %cst_24 [1] : vector<16x32xf32> to vector<16xf32>
    %50 = vector.shape_cast %49 : vector<16xf32> to vector<16x1xf32>
    %cst_25 = arith.constant 3.200000e+01 : f32
    %51 = vector.broadcast %cst_25 : f32 to vector<16x1xf32>
    %52 = arith.divf %50, %51 : vector<16x1xf32>
    %53 = vector.broadcast %45 : vector<16x1xf32> to vector<16x32xf32>
    %54 = arith.subf %41, %53 : vector<16x32xf32>
    %cst_26 = arith.constant 9.99999974E-6 : f32
    %55 = vector.broadcast %cst_26 : f32 to vector<16x1xf32>
    %56 = arith.addf %52, %55 : vector<16x1xf32>
    %57 = math.rsqrt %56 : vector<16x1xf32>
    %58 = vector.broadcast %57 : vector<16x1xf32> to vector<16x32xf32>
    %59 = arith.mulf %54, %58 : vector<16x32xf32>
    %c0_27 = arith.constant 0 : index
    %c0_28 = arith.constant 0 : index
    %60 = vector.load %arg9[%c0_27, %c0_28] : memref<1x32xf32, #tpu.memory_space<vmem>>, vector<1x32xf32>
    %61 = vector.broadcast %60 : vector<1x32xf32> to vector<16x32xf32>
    %62 = arith.mulf %59, %61 : vector<16x32xf32>
    %c0_29 = arith.constant 0 : index
    %c0_30 = arith.constant 0 : index
    %63 = vector.load %arg10[%c0_29, %c0_30] : memref<1x32xf32, #tpu.memory_space<vmem>>, vector<1x32xf32>
    %64 = vector.broadcast %63 : vector<1x32xf32> to vector<16x32xf32>
    %65 = arith.addf %62, %64 : vector<16x32xf32>
    %c0_31 = arith.constant 0 : index
    %c0_32 = arith.constant 0 : index
    %66 = vector.load %arg11[%c0_31, %c0_32] : memref<16x32xf32, #tpu.memory_space<vmem>>, vector<16x32xf32>
    tpu.vector_store %arg11[%c0_31, %c0_32], %65 {strides = array<i32>} : memref<16x32xf32, #tpu.memory_space<vmem>>, vector<16x32xf32>,
    return
  }
  func.func @transform_0(%arg0: i32) -> (i32, i32) {
    %c0_i32 = arith.constant 0 : i32
    %c0_i32_0 = arith.constant 0 : i32
    return %arg0, %c0_i32 : i32, i32
  }
  func.func @transform_1(%arg0: i32) -> (i32, i32) {
    %c0_i32 = arith.constant 0 : i32
    %c0_i32_0 = arith.constant 0 : i32
    return %arg0, %c0_i32 : i32, i32
  }
  func.func @transform_2(%arg0: i32) -> (i32, i32) {
    %c0_i32 = arith.constant 0 : i32
    %c0_i32_0 = arith.constant 0 : i32
    %c0_i32_1 = arith.constant 0 : i32
    return %c0_i32, %c0_i32_0 : i32, i32
  }
  func.func @transform_3(%arg0: i32) -> (i32, i32) {
    %c0_i32 = arith.constant 0 : i32
    %c0_i32_0 = arith.constant 0 : i32
    %c0_i32_1 = arith.constant 0 : i32
    return %c0_i32, %c0_i32_0 : i32, i32
  }
  func.func @transform_4(%arg0: i32) -> (i32, i32) {
    %c0_i32 = arith.constant 0 : i32
    %c0_i32_0 = arith.constant 0 : i32
    %c0_i32_1 = arith.constant 0 : i32
    return %c0_i32, %c0_i32_0 : i32, i32
  }
  func.func @transform_5(%arg0: i32) -> (i32, i32) {
    %c0_i32 = arith.constant 0 : i32
    %c0_i32_0 = arith.constant 0 : i32
    %c0_i32_1 = arith.constant 0 : i32
    return %c0_i32, %c0_i32_0 : i32, i32
  }
  func.func @transform_6(%arg0: i32) -> (i32, i32) {
    %c0_i32 = arith.constant 0 : i32
    %c0_i32_0 = arith.constant 0 : i32
    %c0_i32_1 = arith.constant 0 : i32
    return %c0_i32, %c0_i32_0 : i32, i32
  }
  func.func @transform_7(%arg0: i32) -> (i32, i32) {
    %c0_i32 = arith.constant 0 : i32
    %c0_i32_0 = arith.constant 0 : i32
    %c0_i32_1 = arith.constant 0 : i32
    return %c0_i32, %c0_i32_0 : i32, i32
  }
  func.func @transform_8(%arg0: i32) -> (i32, i32) {
    %c0_i32 = arith.constant 0 : i32
    %c0_i32_0 = arith.constant 0 : i32
    %c0_i32_1 = arith.constant 0 : i32
    return %c0_i32, %c0_i32_0 : i32, i32
  }
  func.func @transform_9(%arg0: i32) -> (i32, i32) {
    %c0_i32 = arith.constant 0 : i32
    %c0_i32_0 = arith.constant 0 : i32
    %c0_i32_1 = arith.constant 0 : i32
    return %c0_i32, %c0_i32_0 : i32, i32
  }
  func.func @transform_10(%arg0: i32) -> (i32, i32) {
    %c0_i32 = arith.constant 0 : i32
    %c0_i32_0 = arith.constant 0 : i32
    return %arg0, %c0_i32 : i32, i32
  }
}

module attributes {stable_mosaic.version = 11 : i64} {
  func.func @_ffn_kernel(%arg0: i32, %arg1: memref<16x32xf32, #tpu.memory_space<vmem>>, %arg2: memref<16x32xf32, #tpu.memory_space<vmem>>, %arg3: memref<1x32xf32, #tpu.memory_space<vmem>>, %arg4: memref<1x32xf32, #tpu.memory_space<vmem>>, %arg5: memref<32x64xbf16, #tpu.memory_space<vmem>>, %arg6: memref<1x64xf32, #tpu.memory_space<vmem>>, %arg7: memref<64x32xbf16, #tpu.memory_space<vmem>>, %arg8: memref<1x32xf32, #tpu.memory_space<vmem>>, %arg9: memref<1x32xf32, #tpu.memory_space<vmem>>, %arg10: memref<1x32xf32, #tpu.memory_space<vmem>>, %arg11: memref<16x32xf32, #tpu.memory_space<vmem>>) attributes {dimension_semantics = [#tpu.dimension_semantics<parallel>], iteration_bounds = array<i64: 1>, scalar_prefetch = 0 : i64, scratch_operands = 0 : i64, tpu.core_type = #tpu.core_type<tc>, window_params = [{transform_indices = @transform_0, window_bounds = array<i64: 16, 32>}, {transform_indices = @transform_1, window_bounds = array<i64: 16, 32>}, {pipeline_mode = #tpu.pipeline_mode<synchronous>, transform_indices = @transform_2, window_bounds = array<i64: 1, 32>}, {pipeline_mode = #tpu.pipeline_mode<synchronous>, transform_indices = @transform_3, window_bounds = array<i64: 1, 32>}, {pipeline_mode = #tpu.pipeline_mode<synchronous>, transform_indices = @transform_4, window_bounds = array<i64: 32, 64>}, {pipeline_mode = #tpu.pipeline_mode<synchronous>, transform_indices = @transform_5, window_bounds = array<i64: 1, 64>}, {pipeline_mode = #tpu.pipeline_mode<synchronous>, transform_indices = @transform_6, window_bounds = array<i64: 64, 32>}, {pipeline_mode = #tpu.pipeline_mode<synchronous>, transform_indices = @transform_7, window_bounds = array<i64: 1, 32>}, {pipeline_mode = #tpu.pipeline_mode<synchronous>, transform_indices = @transform_8, window_bounds = array<i64: 1, 32>}, {pipeline_mode = #tpu.pipeline_mode<synchronous>, transform_indices = @transform_9, window_bounds = array<i64: 1, 32>}, {transform_indices = @transform_10, window_bounds = array<i64: 16, 32>}]} {
    %c0 = arith.constant 0 : index
    %c0_0 = arith.constant 0 : index
    %0 = vector.load %arg1[%c0, %c0_0] : memref<16x32xf32, #tpu.memory_space<vmem>>, vector<16x32xf32>
    %c0_1 = arith.constant 0 : index
    %c0_2 = arith.constant 0 : index
    %1 = vector.load %arg2[%c0_1, %c0_2] : memref<16x32xf32, #tpu.memory_space<vmem>>, vector<16x32xf32>
    %2 = arith.addf %0, %1 : vector<16x32xf32>
    %cst = arith.constant dense<0.000000e+00> : vector<16xf32>
    %3 = vector.multi_reduction <add>, %2, %cst [1] : vector<16x32xf32> to vector<16xf32>
    %4 = vector.shape_cast %3 : vector<16xf32> to vector<16x1xf32>
    %cst_3 = arith.constant 3.200000e+01 : f32
    %5 = vector.broadcast %cst_3 : f32 to vector<16x1xf32>
    %6 = arith.divf %4, %5 : vector<16x1xf32>
    %7 = vector.broadcast %6 : vector<16x1xf32> to vector<16x32xf32>
    %8 = arith.subf %2, %7 : vector<16x32xf32>
    %9 = arith.mulf %8, %8 : vector<16x32xf32>
    %cst_4 = arith.constant dense<0.000000e+00> : vector<16xf32>
    %10 = vector.multi_reduction <add>, %9, %cst_4 [1] : vector<16x32xf32> to vector<16xf32>
    %11 = vector.shape_cast %10 : vector<16xf32> to vector<16x1xf32>
    %cst_5 = arith.constant 3.200000e+01 : f32
    %12 = vector.broadcast %cst_5 : f32 to vector<16x1xf32>
    %13 = arith.divf %11, %12 : vector<16x1xf32>
    %14 = vector.broadcast %6 : vector<16x1xf32> to vector<16x32xf32>
    %15 = arith.subf %2, %14 : vector<16x32xf32>
    %cst_6 = arith.constant 9.99999974E-6 : f32
    %16 = vector.broadcast %cst_6 : f32 to vector<16x1xf32>
    %17 = arith.addf %13, %16 : vector<16x1xf32>
    %18 = math.rsqrt %17 : vector<16x1xf32>
    %19 = vector.broadcast %18 : vector<16x1xf32> to vector<16x32xf32>
    %20 = arith.mulf %15, %19 : vector<16x32xf32>
    %c0_7 = arith.constant 0 : index
    %c0_8 = arith.constant 0 : index
    %21 = vector.load %arg3[%c0_7, %c0_8] : memref<1x32xf32, #tpu.memory_space<vmem>>, vector<1x32xf32>
    %22 = vector.broadcast %21 : vector<1x32xf32> to vector<16x32xf32>
    %23 = arith.mulf %20, %22 : vector<16x32xf32>
    %c0_9 = arith.constant 0 : index
    %c0_10 = arith.constant 0 : index
    %24 = vector.load %arg4[%c0_9, %c0_10] : memref<1x32xf32, #tpu.memory_space<vmem>>, vector<1x32xf32>
    %25 = vector.broadcast %24 : vector<1x32xf32> to vector<16x32xf32>
    %26 = arith.addf %23, %25 : vector<16x32xf32>
    %27 = arith.truncf %26 : vector<16x32xf32> to vector<16x32xbf16>
    %c0_11 = arith.constant 0 : index
    %c0_12 = arith.constant 0 : index
    %28 = vector.load %arg5[%c0_11, %c0_12] : memref<32x64xbf16, #tpu.memory_space<vmem>>, vector<32x64xbf16>
    %cst_13 = arith.constant dense<0.000000e+00> : vector<16x64xf32>
    %29 = tpu.matmul %27, %28, %cst_13 {dimension_numbers = #tpu.dot_dimension_numbers<[1], [0], [0], [1], [0, 0, 1, 1], [], []>} : vector<16x32xbf16>, vector<32x64xbf16>, vector<16x64xf32> -> vector<16x64xf32>
    %c0_14 = arith.constant 0 : index
    %c0_15 = arith.constant 0 : index
    %30 = vector.load %arg6[%c0_14, %c0_15] : memref<1x64xf32, #tpu.memory_space<vmem>>, vector<1x64xf32>
    %31 = vector.broadcast %30 : vector<1x64xf32> to vector<16x64xf32>
    %32 = arith.addf %29, %31 : vector<16x64xf32>
    %cst_16 = arith.constant 0.000000e+00 : f32
    %33 = vector.broadcast %cst_16 : f32 to vector<16x64xf32>
    %34 = arith.maximumf %32, %33 : vector<16x64xf32>
    %35 = arith.truncf %34 : vector<16x64xf32> to vector<16x64xbf16>
    %c0_17 = arith.constant 0 : index
    %c0_18 = arith.constant 0 : index
    %36 = vector.load %arg7[%c0_17, %c0_18] : memref<64x32xbf16, #tpu.memory_space<vmem>>, vector<64x32xbf16>
    %cst_19 = arith.constant dense<0.000000e+00> : vector<16x32xf32>
    %37 = tpu.matmul %35, %36, %cst_19 {dimension_numbers = #tpu.dot_dimension_numbers<[1], [0], [0], [1], [0, 0, 1, 1], [], []>} : vector<16x64xbf16>, vector<64x32xbf16>, vector<16x32xf32> -> vector<16x32xf32>
    %c0_20 = arith.constant 0 : index
    %c0_21 = arith.constant 0 : index
    %38 = vector.load %arg8[%c0_20, %c0_21] : memref<1x32xf32, #tpu.memory_space<vmem>>, vector<1x32xf32>
    %39 = vector.broadcast %38 : vector<1x32xf32> to vector<16x32xf32>
    %40 = arith.addf %37, %39 : vector<16x32xf32>
    %41 = arith.addf %26, %40 : vector<16x32xf32>
    %cst_22 = arith.constant dense<0.000000e+00> : vector<16xf32>
    %42 = vector.multi_reduction <add>, %41, %cst_22 [1] : vector<16x32xf32> to vector<16xf32>
    %43 = vector.shape_cast %42 : vector<16xf32> to vector<16x1xf32>
    %cst_23 = arith.constant 3.200000e+01 : f32
    %44 = vector.broadcast %cst_23 : f32 to vector<16x1xf32>
    %45 = arith.divf %43, %44 : vector<16x1xf32>
    %46 = vector.broadcast %45 : vector<16x1xf32> to vector<16x32xf32>
    %47 = arith.subf %41, %46 : vector<16x32xf32>
    %48 = arith.mulf %47, %47 : vector<16x32xf32>
    %cst_24 = arith.constant dense<0.000000e+00> : vector<16xf32>
    %49 = vector.multi_reduction <add>, %48, %cst_24 [1] : vector<16x32xf32> to vector<16xf32>
    %50 = vector.shape_cast %49 : vector<16xf32> to vector<16x1xf32>
    %cst_25 = arith.constant 3.200000e+01 : f32
    %51 = vector.broadcast %cst_25 : f32 to vector<16x1xf32>
    %52 = arith.divf %50, %51 : vector<16x1xf32>
    %53 = vector.broadcast %45 : vector<16x1xf32> to vector<16x32xf32>
    %54 = arith.subf %41, %53 : vector<16x32xf32>
    %cst_26 = arith.constant 9.99999974E-6 : f32
    %55 = vector.broadcast %cst_26 : f32 to vector<16x1xf32>
    %56 = arith.addf %52, %55 : vector<16x1xf32>
    %57 = math.rsqrt %56 : vector<16x1xf32>
    %58 = vector.broadcast %57 : vector<16x1xf32> to vector<16x32xf32>
    %59 = arith.mulf %54, %58 : vector<16x32xf32>
    %c0_27 = arith.constant 0 : index
    %c0_28 = arith.constant 0 : index
    %60 = vector.load %arg9[%c0_27, %c0_28] : memref<1x32xf32, #tpu.memory_space<vmem>>, vector<1x32xf32>
    %61 = vector.broadcast %60 : vector<1x32xf32> to vector<16x32xf32>
    %62 = arith.mulf %59, %61 : vector<16x32xf32>
    %c0_29 = arith.constant 0 : index
    %c0_30 = arith.constant 0 : index
    %63 = vector.load %arg10[%c0_29, %c0_30] : memref<1x32xf32, #tpu.memory_space<vmem>>, vector<1x32xf32>
    %64 = vector.broadcast %63 : vector<1x32xf32> to vector<16x32xf32>
    %65 = arith.addf %62, %64 : vector<16x32xf32>
    %c0_31 = arith.constant 0 : index
    %c0_32 = arith.constant 0 : index
    %66 = vector.load %arg11[%c0_31, %c0_32] : memref<16x32xf32, #tpu.memory_space<vmem>>, vector<16x32xf32>
    tpu.vector_store %arg11[%c0_31, %c0_32], %65 {strides = array<i32>} : memref<16x32xf32, #tpu.memory_space<vmem>>, vector<16x32xf32>,
    return
  }
  func.func @transform_0(%arg0: i32) -> (i32, i32) {
    %c0_i32 = arith.constant 0 : i32
    %c0_i32_0 = arith.constant 0 : i32
    return %arg0, %c0_i32 : i32, i32
  }
  func.func @transform_1(%arg0: i32) -> (i32, i32) {
    %c0_i32 = arith.constant 0 : i32
    %c0_i32_0 = arith.constant 0 : i32
    return %arg0, %c0_i32 : i32, i32
  }
  func.func @transform_2(%arg0: i32) -> (i32, i32) {
    %c0_i32 = arith.constant 0 : i32
    %c0_i32_0 = arith.constant 0 : i32
    %c0_i32_1 = arith.constant 0 : i32
    return %c0_i32, %c0_i32_0 : i32, i32
  }
  func.func @transform_3(%arg0: i32) -> (i32, i32) {
    %c0_i32 = arith.constant 0 : i32
    %c0_i32_0 = arith.constant 0 : i32
    %c0_i32_1 = arith.constant 0 : i32
    return %c0_i32, %c0_i32_0 : i32, i32
  }
  func.func @transform_4(%arg0: i32) -> (i32, i32) {
    %c0_i32 = arith.constant 0 : i32
    %c0_i32_0 = arith.constant 0 : i32
    %c0_i32_1 = arith.constant 0 : i32
    return %c0_i32, %c0_i32_0 : i32, i32
  }
  func.func @transform_5(%arg0: i32) -> (i32, i32) {
    %c0_i32 = arith.constant 0 : i32
    %c0_i32_0 = arith.constant 0 : i32
    %c0_i32_1 = arith.constant 0 : i32
    return %c0_i32, %c0_i32_0 : i32, i32
  }
  func.func @transform_6(%arg0: i32) -> (i32, i32) {
    %c0_i32 = arith.constant 0 : i32
    %c0_i32_0 = arith.constant 0 : i32
    %c0_i32_1 = arith.constant 0 : i32
    return %c0_i32, %c0_i32_0 : i32, i32
  }
  func.func @transform_7(%arg0: i32) -> (i32, i32) {
    %c0_i32 = arith.constant 0 : i32
    %c0_i32_0 = arith.constant 0 : i32
    %c0_i32_1 = arith.constant 0 : i32
    return %c0_i32, %c0_i32_0 : i32, i32
  }
  func.func @transform_8(%arg0: i32) -> (i32, i32) {
    %c0_i32 = arith.constant 0 : i32
    %c0_i32_0 = arith.constant 0 : i32
    %c0_i32_1 = arith.constant 0 : i32
    return %c0_i32, %c0_i32_0 : i32, i32
  }
  func.func @transform_9(%arg0: i32) -> (i32, i32) {
    %c0_i32 = arith.constant 0 : i32
    %c0_i32_0 = arith.constant 0 : i32
    %c0_i32_1 = arith.constant 0 : i32
    return %c0_i32, %c0_i32_0 : i32, i32
  }
  func.func @transform_10(%arg0: i32) -> (i32, i32) {
    %c0_i32 = arith.constant 0 : i32
    %c0_i32_0 = arith.constant 0 : i32
    return %arg0, %c0_i32 : i32, i32
  }
}

</mosaic_0001>

<llo_original>
// kernel: relative_transformer_forward.7
$region0: #{relative_transformer_forward.7}
  #allocation0 [shape = 'u32[]', space=smem, size = 0x4, offset = 0x4, fixed_abs, tag = 'smem constant byte address 0x4 - core index']
  #allocation1 [shape = 'u32[72,128]{1,0:T(1,128)}', space=vmem, size = 0x9000, scoped, tag = 'internal scratch']
  %s0 = inlined_call_operand.vmem [shape: f32[16,32], index: 0, kind: input, shape index: {}]
  %s1 = inlined_call_operand.vmem [shape: f32[16,32], index: 1, kind: input, shape index: {}]
  %s2 = inlined_call_operand.vmem [shape: f32[1,32], index: 2, kind: input, shape index: {}]
  %s3 = inlined_call_operand.vmem [shape: f32[1,32], index: 3, kind: input, shape index: {}]
  %s4 = inlined_call_operand.vmem [shape: bf16[32,64], index: 4, kind: input, shape index: {}]
  %s5 = inlined_call_operand.vmem [shape: f32[1,64], index: 5, kind: input, shape index: {}]
  %s6 = inlined_call_operand.vmem [shape: bf16[64,32], index: 6, kind: input, shape index: {}]
  %s7 = inlined_call_operand.vmem [shape: f32[1,32], index: 7, kind: input, shape index: {}]
  %s8 = inlined_call_operand.vmem [shape: f32[1,32], index: 8, kind: input, shape index: {}]
  %s9 = inlined_call_operand.vmem [shape: f32[1,32], index: 9, kind: input, shape index: {}]
  %s10 = inlined_call_operand.hbm [shape: f32[16,32], index: 10, kind: output, shape index: {}]
  %s11 = sld [smem:[#allocation0]]
  $region50: #{relative_transformer_forward.7} parent=0
    _
  %s13 = ssub.s32 1, %s11
  %s14 = scalar_select 0, %s13, %s11
  $region1: #{relative_transformer_forward.7} parent=0
    #allocation2 [shape = 'u8[8192]{0}', space=vmem, size = 0x2000, scoped, tag = 'output window, operand 0, single buffered']
    #allocation3 [shape = 's32[1]{0}', space=sflag, size = 0x4, scoped, tag = 'scoped memory for relative_transformer_forward.7']
    %15 = vsyncpa [#allocation3], 0
    // Predicated region
    $region2: #{relative_transformer_forward.7} parent=1 // pred_check
      _
    $region3: #{relative_transformer_forward.7} parent=1 // pred_check_branch
      %17 = sbr.rel (0) target = $region5
    $region4: #{relative_transformer_forward.7} parent=1 // pred_region
      _
    $region5: #{relative_transformer_forward.7} parent=1 // pred_fallthru
      _
    // Predicated region
    $region6: #{relative_transformer_forward.7} parent=1 // pred_check
      _
    $region7: #{relative_transformer_forward.7} parent=1 // pred_check_branch
      %19 = sbr.rel (0) target = $region9
    $region8: #{relative_transformer_forward.7} parent=1 // pred_region
      _
    $region9: #{relative_transformer_forward.7} parent=1 // pred_fallthru
      _
    // Predicated region
    $region10: #{relative_transformer_forward.7} parent=1 // pred_check
      _
    $region11: #{relative_transformer_forward.7} parent=1 // pred_check_branch
      %21 = sbr.rel (0) target = $region13
    $region12: #{relative_transformer_forward.7} parent=1 // pred_region
      _
    $region13: #{relative_transformer_forward.7} parent=1 // pred_fallthru
      _
    // Predicated region
    $region14: #{relative_transformer_forward.7} parent=1 // pred_check
      _
    $region15: #{relative_transformer_forward.7} parent=1 // pred_check_branch
      %23 = sbr.rel (0) target = $region17
    $region16: #{relative_transformer_forward.7} parent=1 // pred_region
      _
    $region17: #{relative_transformer_forward.7} parent=1 // pred_fallthru
      _
    // Predicated region
    $region18: #{relative_transformer_forward.7} parent=1 // pred_check
      _
    $region19: #{relative_transformer_forward.7} parent=1 // pred_check_branch
      %25 = sbr.rel (0) target = $region21
    $region20: #{relative_transformer_forward.7} parent=1 // pred_region
      _
    $region21: #{relative_transformer_forward.7} parent=1 // pred_fallthru
      _
    // Predicated region
    $region22: #{relative_transformer_forward.7} parent=1 // pred_check
      _
    $region23: #{relative_transformer_forward.7} parent=1 // pred_check_branch
      %27 = sbr.rel (0) target = $region25
    $region24: #{relative_transformer_forward.7} parent=1 // pred_region
      _
    $region25: #{relative_transformer_forward.7} parent=1 // pred_fallthru
      _
    // Predicated region
    $region26: #{relative_transformer_forward.7} parent=1 // pred_check
      _
    $region27: #{relative_transformer_forward.7} parent=1 // pred_check_branch
      %29 = sbr.rel (0) target = $region29
    $region28: #{relative_transformer_forward.7} parent=1 // pred_region
      _
    $region29: #{relative_transformer_forward.7} parent=1 // pred_fallthru
      _
    // Predicated region
    $region30: #{relative_transformer_forward.7} parent=1 // pred_check
      _
    $region31: #{relative_transformer_forward.7} parent=1 // pred_check_branch
      %31 = sbr.rel (0) target = $region33
    $region32: #{relative_transformer_forward.7} parent=1 // pred_region
      _
    $region33: #{relative_transformer_forward.7} parent=1 // pred_fallthru
      _
    // Predicated region
    $region34: #{relative_transformer_forward.7} parent=1 // pred_check
      _
    $region35: #{relative_transformer_forward.7} parent=1 // pred_check_branch
      %33 = sbr.rel (0) target = $region37
    $region36: #{relative_transformer_forward.7} parent=1 // pred_region
      _
    $region37: #{relative_transformer_forward.7} parent=1 // pred_fallthru
      _
    // Predicated region
    $region38: #{relative_transformer_forward.7} parent=1 // pred_check
      _
    $region39: #{relative_transformer_forward.7} parent=1 // pred_check_branch
      %35 = sbr.rel (0) target = $region41
    $region40: #{relative_transformer_forward.7} parent=1 // pred_region
      _
    $region41: #{relative_transformer_forward.7} parent=1 // pred_fallthru
      _
    %v37 = vld [vmem:[%s0] sm:$0xff]
    %v38 = vld [vmem:[%s0 + $0x8] sm:$0xff]
    %v39 = vld [vmem:[%s1] sm:$0xff]
    %v40 = vld [vmem:[%s1 + $0x8] sm:$0xff]
    %v41 = vadd.f32 %v37, %v39
    %v42 = vadd.f32 %v38, %v40
    %vm43 = vcmask 261120
    %v44 = vsel %vm43, %v41, 0.0
    %45 = vadd.xlane.f32.xlu0 %v44
    %v46 = vpop.xlane.xlu0 %45
    %v47 = vsel %vm43, %v42, 0.0
    %48 = vadd.xlane.f32.xlu0 %v47
    %v49 = vpop.xlane.xlu0 %48
    %v50 = vrcp.pop 32.0
    %v51 = vmul.f32 32.0, %v50
    %v52 = vsub.f32 1.0, %v51
    %v53 = vmul.f32 %v50, %v52
    %v54 = vadd.f32 %v50, %v53
    %vm55 = vweird.f32 %v50
    %v56 = vsel %vm55, %v50, %v54
    %v57 = vmul.f32 %v46, %v56
    %v58 = vmul.f32 %v49, %v56
    %v59 = vsub.f32 %v41, %v57
    %v60 = vsub.f32 %v42, %v58
    %v61 = vmul.f32 %v59, %v59
    %v62 = vmul.f32 %v60, %v60
    %v63 = vsel %vm43, %v61, 0.0
    %64 = vadd.xlane.f32.xlu0 %v63
    %v65 = vpop.xlane.xlu0 %64
    %v66 = vsel %vm43, %v62, 0.0
    %67 = vadd.xlane.f32.xlu0 %v66
    %v68 = vpop.xlane.xlu0 %67
    %v69 = vmul.f32 %v65, %v56
    %v70 = vmul.f32 %v68, %v56
    %v71 = vadd.f32 %v69, 1e-05
    %v72 = vadd.f32 %v70, 1e-05
    %v73 = vrsqrt.pop %v71
    %v74 = vmul.f32 %v73, %v71
    %v75 = vmul.f32 %v74, %v73
    %v76 = vmul.f32 0.5, %v75
    %v77 = vsub.f32 1.5, %v76
    %v78 = vmul.f32 %v73, %v77
    %vm79 = vweird.f32 %v71
    %vm80 = vweird.f32 %v73
    %vm81 = vmor %vm79, %vm80
    %v82 = vsel %vm81, %v73, %v78
    %v83 = vrsqrt.pop %v72
    %v84 = vmul.f32 %v83, %v72
    %v85 = vmul.f32 %v84, %v83
    %v86 = vmul.f32 0.5, %v85
    %v87 = vsub.f32 1.5, %v86
    %v88 = vmul.f32 %v83, %v87
    %vm89 = vweird.f32 %v72
    %vm90 = vweird.f32 %v83
    %vm91 = vmor %vm89, %vm90
    %v92 = vsel %vm91, %v83, %v88
    %v93 = vmul.f32 %v59, %v82
    %v94 = vmul.f32 %v60, %v92
    %v95 = vld [vmem:[%s2] sm:$0x1]
    %v97 = vperm.slane %v95, 0
    %v99 = vmul.f32 %v93, %v97
    %v100 = vmul.f32 %v94, %v97
    %v101 = vld [vmem:[%s3] sm:$0x1]
    %v103 = vperm.slane %v101, 0
    %v105 = vadd.f32 %v99, %v103
    %v106 = vadd.f32 %v100, %v103
    %v107 = vpack.c.bf16 %v106, %v105
    %v108 = vld [vmem:[%s4] sm:$0xf]
    %v109 = vld [vmem:[%s4 + $0x4] sm:$0xf]
    %v110 = vld [vmem:[%s4 + $0x8] sm:$0xf]
    %v111 = vld [vmem:[%s4 + $0xc] sm:$0xf]
    %v112 = vld [vmem:[%s5] sm:$0x1]
    %v114 = vperm.slane %v112, 0
    %v120 = vunpack.c.l.b16 %v108
    %v121 = vunpack.c.l.b16 %v109
    %v122 = vunpack.c.l.b16 %v110
    %v123 = vunpack.c.l.b16 %v111
    %v124 = vpack.c.b16 %v121, %v120
    %v125 = vpack.c.b16 %v123, %v122
    %v129 = vsel %vm43, %v107, 0
    %131 = vmatpush.bf16.msra.mxu0 0
    %132 = vmatpush.bf16.msra.mxu0 0
    %133 = vmatpush.bf16.msra.mxu0 0
    %134 = vmatpush.bf16.msra.mxu0 0
    %135 = vmatpush.bf16.msra.mxu0 0
    %136 = vmatpush.bf16.msra.mxu0 0
    %137 = vmatpush.bf16.msra.mxu0 %v125
    %138 = vmatpush.bf16.msra.mxu0 %v124
    %139 = vmatmul.bf16.gmra.mxu0 %v129
    %v140 = vpop.f32.mrf.mxu0
    %v141 = vadd.f32 %v114, %v140
    %v142 = vpop.f32.mrf.mxu0
    %v143 = vadd.f32 %v114, %v142
    %144 = vdwg.mxu0
    %v145 = vmax.f32 %v141, 0.0
    %v146 = vmax.f32 %v143, 0.0
    %v147 = vpack.c.bf16 %v146, %v145
    %v148 = vld [vmem:[%s6] sm:$0xf]
    %v149 = vld [vmem:[%s6 + $0x4] sm:$0xf]
    %v150 = vld [vmem:[%s6 + $0x8] sm:$0xf]
    %v151 = vld [vmem:[%s6 + $0xc] sm:$0xf]
    %v152 = vld [vmem:[%s6 + $0x10] sm:$0xf]
    %v153 = vld [vmem:[%s6 + $0x14] sm:$0xf]
    %v154 = vld [vmem:[%s6 + $0x18] sm:$0xf]
    %v155 = vld [vmem:[%s6 + $0x1c] sm:$0xf]
    %v156 = vld [vmem:[%s7] sm:$0x1]
    %v158 = vperm.slane %v156, 0
    %v168 = vunpack.c.l.b16 %v148
    %v169 = vunpack.c.l.b16 %v149
    %v170 = vunpack.c.l.b16 %v150
    %v171 = vunpack.c.l.b16 %v151
    %v172 = vunpack.c.l.b16 %v152
    %v173 = vunpack.c.l.b16 %v153
    %v174 = vunpack.c.l.b16 %v154
    %v175 = vunpack.c.l.b16 %v155
    %v176 = vpack.c.b16 %v169, %v168
    %v177 = vpack.c.b16 %v171, %v170
    %v178 = vpack.c.b16 %v173, %v172
    %v179 = vpack.c.b16 %v175, %v174
    %vm184 = vcmask 523264
    %v186 = vsel %vm184, %v147, 0
    %188 = vmatpush.bf16.msra.mxu0 0
    %189 = vmatpush.bf16.msra.mxu0 0
    %190 = vmatpush.bf16.msra.mxu0 0
    %191 = vmatpush.bf16.msra.mxu0 0
    %192 = vmatpush.bf16.msra.mxu0 %v179
    %193 = vmatpush.bf16.msra.mxu0 %v178
    %194 = vmatpush.bf16.msra.mxu0 %v177
    %195 = vmatpush.bf16.msra.mxu0 %v176
    %196 = vmatmul.bf16.gmra.mxu0 %v186
    %v197 = vpop.f32.mrf.mxu0
    %v198 = vadd.f32 %v158, %v197
    %v199 = vpop.f32.mrf.mxu0
    %v200 = vadd.f32 %v158, %v199
    %201 = vdwg.mxu0
    %v202 = vadd.f32 %v105, %v198
    %v203 = vadd.f32 %v106, %v200
    %v204 = vsel %vm43, %v202, 0.0
    %205 = vadd.xlane.f32.xlu0 %v204
    %v206 = vpop.xlane.xlu0 %205
    %v207 = vsel %vm43, %v203, 0.0
    %208 = vadd.xlane.f32.xlu0 %v207
    %v209 = vpop.xlane.xlu0 %208
    %v210 = vmul.f32 %v206, %v56
    %v211 = vmul.f32 %v209, %v56
    %v212 = vsub.f32 %v202, %v210
    %v213 = vsub.f32 %v203, %v211
    %v214 = vmul.f32 %v212, %v212
    %v215 = vmul.f32 %v213, %v213
    %v216 = vsel %vm43, %v214, 0.0
    %217 = vadd.xlane.f32.xlu0 %v216
    %v218 = vpop.xlane.xlu0 %217
    %v219 = vsel %vm43, %v215, 0.0
    %220 = vadd.xlane.f32.xlu0 %v219
    %v221 = vpop.xlane.xlu0 %220
    %v222 = vmul.f32 %v218, %v56
    %v223 = vmul.f32 %v221, %v56
    %v224 = vadd.f32 %v222, 1e-05
    %v225 = vadd.f32 %v223, 1e-05
    %v226 = vrsqrt.pop %v224
    %v227 = vmul.f32 %v226, %v224
    %v228 = vmul.f32 %v227, %v226
    %v229 = vmul.f32 0.5, %v228
    %v230 = vsub.f32 1.5, %v229
    %v231 = vmul.f32 %v226, %v230
    %vm232 = vweird.f32 %v224
    %vm233 = vweird.f32 %v226
    %vm234 = vmor %vm232, %vm233
    %v235 = vsel %vm234, %v226, %v231
    %v236 = vrsqrt.pop %v225
    %v237 = vmul.f32 %v236, %v225
    %v238 = vmul.f32 %v237, %v236
    %v239 = vmul.f32 0.5, %v238
    %v240 = vsub.f32 1.5, %v239
    %v241 = vmul.f32 %v236, %v240
    %vm242 = vweird.f32 %v225
    %vm243 = vweird.f32 %v236
    %vm244 = vmor %vm242, %vm243
    %v245 = vsel %vm244, %v236, %v241
    %v246 = vmul.f32 %v212, %v235
    %v247 = vmul.f32 %v213, %v245
    %v248 = vld [vmem:[%s8] sm:$0x1]
    %v250 = vperm.slane %v248, 0
    %v252 = vmul.f32 %v246, %v250
    %v253 = vmul.f32 %v247, %v250
    %v254 = vld [vmem:[%s9] sm:$0x1]
    %v256 = vperm.slane %v254, 0
    %v258 = vadd.f32 %v252, %v256
    %v259 = vadd.f32 %v253, %v256
    %260 = vst.msk [vmem:[#allocation2] sm:$0xff] %vm43, %v258
    %261 = vst.msk [vmem:[#allocation2 + $0x8] sm:$0xff] %vm43, %v259
    // Predicated region
    $region42: #{relative_transformer_forward.7} parent=1 // pred_check
      _
    $region43: #{relative_transformer_forward.7} parent=1 // pred_check_branch
      %263 = sbr.rel (0) target = $region45
    $region44: #{relative_transformer_forward.7} parent=1 // pred_region
      %265 = vsyncadd [#allocation3], 0
      %s266 = sshll.u32 [#allocation2], 4
      %s267 = int_to_ptr.vmem [resolvable:$true] %s266
      %s268 = sshll.u32 %s10, 4
      %s269 = int_to_ptr.hbm [resolvable:$true] %s268
      %274 = dma.vmem_to_hbm [thread:$0]  %s267, 256, %s269, [#allocation3], 128, 128, 8
    $region45: #{relative_transformer_forward.7} parent=1 // pred_fallthru
      _
    // Predicated region
    $region46: #{relative_transformer_forward.7} parent=1 // pred_check
      _
    $region47: #{relative_transformer_forward.7} parent=1 // pred_check_branch
      %276 = sbr.rel (0) target = $region49
    $region48: #{relative_transformer_forward.7} parent=1 // pred_region
      %278 = dma.done [#allocation3], 256
    $region49: #{relative_transformer_forward.7} parent=1 // pred_fallthru
      _
    %279 = vsyncpa [#allocation3], 1

// kernel: relative_transformer_forward.5
$region0: #{relative_transformer_forward.5}
  #allocation0 [shape = 'u32[]', space=smem, size = 0x4, offset = 0x4, fixed_abs, tag = 'smem constant byte address 0x4 - core index']
  #allocation1 [shape = 'u32[72,128]{1,0:T(1,128)}', space=vmem, size = 0x9000, scoped, tag = 'internal scratch']
  %s0 = inlined_call_operand.vmem [shape: f32[16,32], index: 0, kind: input, shape index: {}]
  %s1 = inlined_call_operand.vmem [shape: f32[16,32], index: 1, kind: input, shape index: {}]
  %s2 = inlined_call_operand.vmem [shape: f32[1,32], index: 2, kind: input, shape index: {}]
  %s3 = inlined_call_operand.vmem [shape: f32[1,32], index: 3, kind: input, shape index: {}]
  %s4 = inlined_call_operand.vmem [shape: bf16[32,64], index: 4, kind: input, shape index: {}]
  %s5 = inlined_call_operand.vmem [shape: f32[1,64], index: 5, kind: input, shape index: {}]
  %s6 = inlined_call_operand.vmem [shape: bf16[64,32], index: 6, kind: input, shape index: {}]
  %s7 = inlined_call_operand.vmem [shape: f32[1,32], index: 7, kind: input, shape index: {}]
  %s8 = inlined_call_operand.vmem [shape: f32[1,32], index: 8, kind: input, shape index: {}]
  %s9 = inlined_call_operand.hbm [shape: f32[1,32], index: 9, kind: input, shape index: {}]
  %s10 = inlined_call_operand.vmem [shape: f32[16,32], index: 10, kind: output, shape index: {}]
  %s11 = sld [smem:[#allocation0]]
  $region54: #{relative_transformer_forward.5} parent=0
    _
  %s13 = ssub.s32 1, %s11
  %s14 = scalar_select 0, %s13, %s11
  $region1: #{relative_transformer_forward.5} parent=0
    #allocation2 [shape = 'u8[512]{0}', space=vmem, size = 0x400, scoped, tag = 'input window, operand 9, single buffered']
    #allocation3 [shape = 's32[1]{0}', space=sflag, size = 0x4, scoped, tag = 'scoped memory for relative_transformer_forward.5']
    %15 = vsyncpa [#allocation3], 0
    // Predicated region
    $region2: #{relative_transformer_forward.5} parent=1 // pred_check
      _
    $region3: #{relative_transformer_forward.5} parent=1 // pred_check_branch
      %17 = sbr.rel (0) target = $region5
    $region4: #{relative_transformer_forward.5} parent=1 // pred_region
      _
    $region5: #{relative_transformer_forward.5} parent=1 // pred_fallthru
      _
    // Predicated region
    $region6: #{relative_transformer_forward.5} parent=1 // pred_check
      _
    $region7: #{relative_transformer_forward.5} parent=1 // pred_check_branch
      %19 = sbr.rel (0) target = $region9
    $region8: #{relative_transformer_forward.5} parent=1 // pred_region
      _
    $region9: #{relative_transformer_forward.5} parent=1 // pred_fallthru
      _
    // Predicated region
    $region10: #{relative_transformer_forward.5} parent=1 // pred_check
      _
    $region11: #{relative_transformer_forward.5} parent=1 // pred_check_branch
      %21 = sbr.rel (0) target = $region13
    $region12: #{relative_transformer_forward.5} parent=1 // pred_region
      _
    $region13: #{relative_transformer_forward.5} parent=1 // pred_fallthru
      _
    // Predicated region
    $region14: #{relative_transformer_forward.5} parent=1 // pred_check
      _
    $region15: #{relative_transformer_forward.5} parent=1 // pred_check_branch
      %23 = sbr.rel (0) target = $region17
    $region16: #{relative_transformer_forward.5} parent=1 // pred_region
      _
    $region17: #{relative_transformer_forward.5} parent=1 // pred_fallthru
      _
    // Predicated region
    $region18: #{relative_transformer_forward.5} parent=1 // pred_check
      _
    $region19: #{relative_transformer_forward.5} parent=1 // pred_check_branch
      %25 = sbr.rel (0) target = $region21
    $region20: #{relative_transformer_forward.5} parent=1 // pred_region
      _
    $region21: #{relative_transformer_forward.5} parent=1 // pred_fallthru
      _
    // Predicated region
    $region22: #{relative_transformer_forward.5} parent=1 // pred_check
      _
    $region23: #{relative_transformer_forward.5} parent=1 // pred_check_branch
      %27 = sbr.rel (0) target = $region25
    $region24: #{relative_transformer_forward.5} parent=1 // pred_region
      _
    $region25: #{relative_transformer_forward.5} parent=1 // pred_fallthru
      _
    // Predicated region
    $region26: #{relative_transformer_forward.5} parent=1 // pred_check
      _
    $region27: #{relative_transformer_forward.5} parent=1 // pred_check_branch
      %29 = sbr.rel (0) target = $region29
    $region28: #{relative_transformer_forward.5} parent=1 // pred_region
      _
    $region29: #{relative_transformer_forward.5} parent=1 // pred_fallthru
      _
    // Predicated region
    $region30: #{relative_transformer_forward.5} parent=1 // pred_check
      _
    $region31: #{relative_transformer_forward.5} parent=1 // pred_check_branch
      %31 = sbr.rel (0) target = $region33
    $region32: #{relative_transformer_forward.5} parent=1 // pred_region
      _
    $region33: #{relative_transformer_forward.5} parent=1 // pred_fallthru
      _
    // Predicated region
    $region34: #{relative_transformer_forward.5} parent=1 // pred_check
      _
    $region35: #{relative_transformer_forward.5} parent=1 // pred_check_branch
      %33 = sbr.rel (0) target = $region37
    $region36: #{relative_transformer_forward.5} parent=1 // pred_region
      _
    $region37: #{relative_transformer_forward.5} parent=1 // pred_fallthru
      _
    // Predicated region
    $region38: #{relative_transformer_forward.5} parent=1 // pred_check
      _
    $region39: #{relative_transformer_forward.5} parent=1 // pred_check_branch
      %35 = sbr.rel (0) target = $region41
    $region40: #{relative_transformer_forward.5} parent=1 // pred_region
      %37 = vsyncadd [#allocation3], 0
      %s39 = sshll.u32 %s9, 4
      %s40 = int_to_ptr.hbm [resolvable:$true] %s39
      %s41 = sshll.u32 [#allocation2], 4
      %s42 = int_to_ptr.vmem [resolvable:$true] %s41
      %44 = dma.hbm_to_vmem [thread:$0]  %s40, 16, %s42, [#allocation3]
    $region41: #{relative_transformer_forward.5} parent=1 // pred_fallthru
      _
    // Predicated region
    $region42: #{relative_transformer_forward.5} parent=1 // pred_check
      _
    $region43: #{relative_transformer_forward.5} parent=1 // pred_check_branch
      %46 = sbr.rel (0) target = $region45
    $region44: #{relative_transformer_forward.5} parent=1 // pred_region
      %48 = dma.done [#allocation3], 16
    $region45: #{relative_transformer_forward.5} parent=1 // pred_fallthru
      _
    %v50 = vld [vmem:[%s0] sm:$0xff]
    %v51 = vld [vmem:[%s0 + $0x8] sm:$0xff]
    %v52 = vld [vmem:[%s1] sm:$0xff]
    %v53 = vld [vmem:[%s1 + $0x8] sm:$0xff]
    %v54 = vadd.f32 %v50, %v52
    %v55 = vadd.f32 %v51, %v53
    %vm56 = vcmask 261120
    %v57 = vsel %vm56, %v54, 0.0
    %58 = vadd.xlane.f32.xlu0 %v57
    %v59 = vpop.xlane.xlu0 %58
    %v60 = vsel %vm56, %v55, 0.0
    %61 = vadd.xlane.f32.xlu0 %v60
    %v62 = vpop.xlane.xlu0 %61
    %v63 = vrcp.pop 32.0
    %v64 = vmul.f32 32.0, %v63
    %v65 = vsub.f32 1.0, %v64
    %v66 = vmul.f32 %v63, %v65
    %v67 = vadd.f32 %v63, %v66
    %vm68 = vweird.f32 %v63
    %v69 = vsel %vm68, %v63, %v67
    %v70 = vmul.f32 %v59, %v69
    %v71 = vmul.f32 %v62, %v69
    %v72 = vsub.f32 %v54, %v70
    %v73 = vsub.f32 %v55, %v71
    %v74 = vmul.f32 %v72, %v72
    %v75 = vmul.f32 %v73, %v73
    %v76 = vsel %vm56, %v74, 0.0
    %77 = vadd.xlane.f32.xlu0 %v76
    %v78 = vpop.xlane.xlu0 %77
    %v79 = vsel %vm56, %v75, 0.0
    %80 = vadd.xlane.f32.xlu0 %v79
    %v81 = vpop.xlane.xlu0 %80
    %v82 = vmul.f32 %v78, %v69
    %v83 = vmul.f32 %v81, %v69
    %v84 = vadd.f32 %v82, 1e-05
    %v85 = vadd.f32 %v83, 1e-05
    %v86 = vrsqrt.pop %v84
    %v87 = vmul.f32 %v86, %v84
    %v88 = vmul.f32 %v87, %v86
    %v89 = vmul.f32 0.5, %v88
    %v90 = vsub.f32 1.5, %v89
    %v91 = vmul.f32 %v86, %v90
    %vm92 = vweird.f32 %v84
    %vm93 = vweird.f32 %v86
    %vm94 = vmor %vm92, %vm93
    %v95 = vsel %vm94, %v86, %v91
    %v96 = vrsqrt.pop %v85
    %v97 = vmul.f32 %v96, %v85
    %v98 = vmul.f32 %v97, %v96
    %v99 = vmul.f32 0.5, %v98
    %v100 = vsub.f32 1.5, %v99
    %v101 = vmul.f32 %v96, %v100
    %vm102 = vweird.f32 %v85
    %vm103 = vweird.f32 %v96
    %vm104 = vmor %vm102, %vm103
    %v105 = vsel %vm104, %v96, %v101
    %v106 = vmul.f32 %v72, %v95
    %v107 = vmul.f32 %v73, %v105
    %v108 = vld [vmem:[%s2] sm:$0x1]
    %v110 = vperm.slane %v108, 0
    %v112 = vmul.f32 %v106, %v110
    %v113 = vmul.f32 %v107, %v110
    %v114 = vld [vmem:[%s3] sm:$0x1]
    %v116 = vperm.slane %v114, 0
    %v118 = vadd.f32 %v112, %v116
    %v119 = vadd.f32 %v113, %v116
    %v120 = vpack.c.bf16 %v119, %v118
    %v121 = vld [vmem:[%s4] sm:$0xf]
    %v122 = vld [vmem:[%s4 + $0x4] sm:$0xf]
    %v123 = vld [vmem:[%s4 + $0x8] sm:$0xf]
    %v124 = vld [vmem:[%s4 + $0xc] sm:$0xf]
    %v125 = vld [vmem:[%s5] sm:$0x1]
    %v127 = vperm.slane %v125, 0
    %v133 = vunpack.c.l.b16 %v121
    %v134 = vunpack.c.l.b16 %v122
    %v135 = vunpack.c.l.b16 %v123
    %v136 = vunpack.c.l.b16 %v124
    %v137 = vpack.c.b16 %v134, %v133
    %v138 = vpack.c.b16 %v136, %v135
    %v142 = vsel %vm56, %v120, 0
    %144 = vmatpush.bf16.msra.mxu0 0
    %145 = vmatpush.bf16.msra.mxu0 0
    %146 = vmatpush.bf16.msra.mxu0 0
    %147 = vmatpush.bf16.msra.mxu0 0
    %148 = vmatpush.bf16.msra.mxu0 0
    %149 = vmatpush.bf16.msra.mxu0 0
    %150 = vmatpush.bf16.msra.mxu0 %v138
    %151 = vmatpush.bf16.msra.mxu0 %v137
    %152 = vmatmul.bf16.gmra.mxu0 %v142
    %v153 = vpop.f32.mrf.mxu0
    %v154 = vadd.f32 %v127, %v153
    %v155 = vpop.f32.mrf.mxu0
    %v156 = vadd.f32 %v127, %v155
    %157 = vdwg.mxu0
    %v158 = vmax.f32 %v154, 0.0
    %v159 = vmax.f32 %v156, 0.0
    %v160 = vpack.c.bf16 %v159, %v158
    %v161 = vld [vmem:[%s6] sm:$0xf]
    %v162 = vld [vmem:[%s6 + $0x4] sm:$0xf]
    %v163 = vld [vmem:[%s6 + $0x8] sm:$0xf]
    %v164 = vld [vmem:[%s6 + $0xc] sm:$0xf]
    %v165 = vld [vmem:[%s6 + $0x10] sm:$0xf]
    %v166 = vld [vmem:[%s6 + $0x14] sm:$0xf]
    %v167 = vld [vmem:[%s6 + $0x18] sm:$0xf]
    %v168 = vld [vmem:[%s6 + $0x1c] sm:$0xf]
    %v169 = vld [vmem:[%s7] sm:$0x1]
    %v171 = vperm.slane %v169, 0
    %v181 = vunpack.c.l.b16 %v161
    %v182 = vunpack.c.l.b16 %v162
    %v183 = vunpack.c.l.b16 %v163
    %v184 = vunpack.c.l.b16 %v164
    %v185 = vunpack.c.l.b16 %v165
    %v186 = vunpack.c.l.b16 %v166
    %v187 = vunpack.c.l.b16 %v167
    %v188 = vunpack.c.l.b16 %v168
    %v189 = vpack.c.b16 %v182, %v181
    %v190 = vpack.c.b16 %v184, %v183
    %v191 = vpack.c.b16 %v186, %v185
    %v192 = vpack.c.b16 %v188, %v187
    %vm197 = vcmask 523264
    %v199 = vsel %vm197, %v160, 0
    %201 = vmatpush.bf16.msra.mxu0 0
    %202 = vmatpush.bf16.msra.mxu0 0
    %203 = vmatpush.bf16.msra.mxu0 0
    %204 = vmatpush.bf16.msra.mxu0 0
    %205 = vmatpush.bf16.msra.mxu0 %v192
    %206 = vmatpush.bf16.msra.mxu0 %v191
    %207 = vmatpush.bf16.msra.mxu0 %v190
    %208 = vmatpush.bf16.msra.mxu0 %v189
    %209 = vmatmul.bf16.gmra.mxu0 %v199
    %v210 = vpop.f32.mrf.mxu0
    %v211 = vadd.f32 %v171, %v210
    %v212 = vpop.f32.mrf.mxu0
    %v213 = vadd.f32 %v171, %v212
    %214 = vdwg.mxu0
    %v215 = vadd.f32 %v118, %v211
    %v216 = vadd.f32 %v119, %v213
    %v217 = vsel %vm56, %v215, 0.0
    %218 = vadd.xlane.f32.xlu0 %v217
    %v219 = vpop.xlane.xlu0 %218
    %v220 = vsel %vm56, %v216, 0.0
    %221 = vadd.xlane.f32.xlu0 %v220
    %v222 = vpop.xlane.xlu0 %221
    %v223 = vmul.f32 %v219, %v69
    %v224 = vmul.f32 %v222, %v69
    %v225 = vsub.f32 %v215, %v223
    %v226 = vsub.f32 %v216, %v224
    %v227 = vmul.f32 %v225, %v225
    %v228 = vmul.f32 %v226, %v226
    %v229 = vsel %vm56, %v227, 0.0
    %230 = vadd.xlane.f32.xlu0 %v229
    %v231 = vpop.xlane.xlu0 %230
    %v232 = vsel %vm56, %v228, 0.0
    %233 = vadd.xlane.f32.xlu0 %v232
    %v234 = vpop.xlane.xlu0 %233
    %v235 = vmul.f32 %v231, %v69
    %v236 = vmul.f32 %v234, %v69
    %v237 = vadd.f32 %v235, 1e-05
    %v238 = vadd.f32 %v236, 1e-05
    %v239 = vrsqrt.pop %v237
    %v240 = vmul.f32 %v239, %v237
    %v241 = vmul.f32 %v240, %v239
    %v242 = vmul.f32 0.5, %v241
    %v243 = vsub.f32 1.5, %v242
    %v244 = vmul.f32 %v239, %v243
    %vm245 = vweird.f32 %v237
    %vm246 = vweird.f32 %v239
    %vm247 = vmor %vm245, %vm246
    %v248 = vsel %vm247, %v239, %v244
    %v249 = vrsqrt.pop %v238
    %v250 = vmul.f32 %v249, %v238
    %v251 = vmul.f32 %v250, %v249
    %v252 = vmul.f32 0.5, %v251
    %v253 = vsub.f32 1.5, %v252
    %v254 = vmul.f32 %v249, %v253
    %vm255 = vweird.f32 %v238
    %vm256 = vweird.f32 %v249
    %vm257 = vmor %vm255, %vm256
    %v258 = vsel %vm257, %v249, %v254
    %v259 = vmul.f32 %v225, %v248
    %v260 = vmul.f32 %v226, %v258
    %v261 = vld [vmem:[%s8] sm:$0x1]
    %v263 = vperm.slane %v261, 0
    %v265 = vmul.f32 %v259, %v263
    %v266 = vmul.f32 %v260, %v263
    %v267 = vld [vmem:[#allocation2] sm:$0x1]
    %v269 = vperm.slane %v267, 0
    %v271 = vadd.f32 %v265, %v269
    %v272 = vadd.f32 %v266, %v269
    %273 = vst.msk [vmem:[%s10] sm:$0xff] %vm56, %v271
    %274 = vst.msk [vmem:[%s10 + $0x8] sm:$0xff] %vm56, %v272
    // Predicated region
    $region46: #{relative_transformer_forward.5} parent=1 // pred_check
      _
    $region47: #{relative_transformer_forward.5} parent=1 // pred_check_branch
      %276 = sbr.rel (0) target = $region49
    $region48: #{relative_transformer_forward.5} parent=1 // pred_region
      _
    $region49: #{relative_transformer_forward.5} parent=1 // pred_fallthru
      _
    // Predicated region
    $region50: #{relative_transformer_forward.5} parent=1 // pred_check
      _
    $region51: #{relative_transformer_forward.5} parent=1 // pred_check_branch
      %278 = sbr.rel (0) target = $region53
    $region52: #{relative_transformer_forward.5} parent=1 // pred_region
      _
    $region53: #{relative_transformer_forward.5} parent=1 // pred_fallthru
      _
    %279 = vsyncpa [#allocation3], 1

// kernel: relative_transformer_forward.6
$region0: #{relative_transformer_forward.6}
  #allocation0 [shape = 'u32[]', space=smem, size = 0x4, offset = 0x4, fixed_abs, tag = 'smem constant byte address 0x4 - core index']
  #allocation1 [shape = 'u32[72,128]{1,0:T(1,128)}', space=vmem, size = 0x9000, scoped, tag = 'internal scratch']
  %s0 = inlined_call_operand.vmem [shape: f32[2,8,32], index: 0, kind: input, shape index: {}]
  %s1 = inlined_call_operand.hbm [shape: bf16[32,64], index: 1, kind: input, shape index: {}]
  %s2 = inlined_call_operand.vmem [shape: f32[4,8], index: 2, kind: input, shape index: {}]
  %s3 = inlined_call_operand.vmem [shape: f32[4,8], index: 3, kind: input, shape index: {}]
  %s4 = inlined_call_operand.vmem [shape: f32[8,4], index: 4, kind: input, shape index: {}]
  %s5 = inlined_call_operand.vmem [shape: f32[8,4], index: 5, kind: input, shape index: {}]
  %s6 = inlined_call_operand.vmem [shape: bf16[4,8], index: 6, kind: input, shape index: {}]
  %s7 = inlined_call_operand.vmem [shape: bf16[4,8], index: 7, kind: input, shape index: {}]
  %s8 = inlined_call_operand.vmem [shape: f32[2,1,8], index: 8, kind: input, shape index: {}]
  %s9 = inlined_call_operand.vmem [shape: f32[2,8,32], index: 9, kind: output, shape index: {}]
  %s10 = sld [smem:[#allocation0]]
  $region73: #{relative_transformer_forward.6} parent=0
    _
  %s12 = ssub.s32 1, %s10
  %s13 = scalar_select 0, %s12, %s10
  $region1: #{relative_transformer_forward.6} parent=0
    #allocation2 [shape = 'u8[8192]{0}', space=vmem, size = 0x2000, scoped, tag = 'input window, operand 1, single buffered']
    #allocation3 [shape = 's32[2]{0}', space=sflag, size = 0x8, scoped, tag = 'scoped memory for relative_transformer_forward.6']
    %14 = vsyncpa [#allocation3], 0
    loop: start=0, step=1, limit=4
    $region2: #{relative_transformer_forward.6} parent=1 // loop_pre_header
      _
    $region3: #{relative_transformer_forward.6} parent=1 // loop_header
      %s16 = sphi 0, %s20
      %p17 = scmp.ge.s32.totalorder %s16, 4
      %s26 = sphi 0, %s28
      %s29 = sphi 0, %s26
      %s30 = sphi 0, %s29
      %s46 = sphi 0, %s30
      %s50 = sphi 0, %s50
      %s52 = sphi 0, %s50
      %s53 = sphi 0, %s52
      %s67 = sphi 0, %s53
      %s71 = sphi 0, %s71
      %s73 = sphi 0, %s71
      %s74 = sphi 0, %s73
      %s88 = sphi 0, %s74
      %s92 = sphi 0, %s92
      %s94 = sphi 0, %s92
      %s95 = sphi 0, %s94
      %s109 = sphi 0, %s95
      %s113 = sphi 0, %s113
      %s115 = sphi 0, %s113
      %s116 = sphi 0, %s115
      %s130 = sphi 0, %s116
      %s134 = sphi 0, %s134
      %s136 = sphi 0, %s134
      %s137 = sphi 0, %s136
      %s151 = sphi 0, %s137
      %s155 = sphi 0, %s155
      %s157 = sphi 0, %s155
      %s158 = sphi 0, %s157
      %s172 = sphi 0, %s158
      %s176 = sphi 0, %s176
      %s178 = sphi 0, %s176
      %s179 = sphi 0, %s178
      %s193 = sphi 0, %s179
      %s199 = sphi 0, %s201
      %s202 = sphi 0, %s199
      %s203 = sphi 0, %s202
      %s219 = sphi 0, %s203
      %s225 = sphi 0, %s227
      %s228 = sphi 0, %s225
      %s229 = sphi 0, %s228
      %s245 = sphi 0, %s229
    $region4: #{relative_transformer_forward.6} parent=1 // loop_header_branch
      %19 = sbr.rel (%p17) target = $region8
    $region5: #{relative_transformer_forward.6} parent=1 // loop_body
      %s21 = ssub.s32 %s16, 1
      %s22 = ssub.s32 %s16, 2
      %s23 = sadd.s32 %s16, 1
      %s24 = ssub.s32 %s16, %s23
      %p25 = scmp.eq.s32.totalorder %s24, 0
      %s27 = sadd.s32 %s26, 1
      %s28 = scalar_select %p25, %s26, %s27
      %p31 = pneg %p25
      %p32 = scmp.eq.s32.totalorder %s16, 1
      %p33 = por %p31, %p32
      %p34 = scmp.ne.s32.totalorder %s26, %s29
      %p35 = scmp.eq.s32.totalorder %s16, 0
      %p36 = por %p34, %p35
      %p37 = scmp.ne.s32.totalorder %s26, %s29
      %p38 = scmp.eq.s32.totalorder %s21, 1
      %p39 = por %p37, %p38
      %p40 = scmp.ne.s32.totalorder %s29, %s30
      %p41 = scmp.eq.s32.totalorder %s21, 0
      %p42 = por %p40, %p41
      %p43 = scmp.ne.s32.totalorder %s29, %s30
      %p44 = scmp.eq.s32.totalorder %s22, 1
      %p45 = por %p43, %p44
      %p47 = scmp.ne.s32.totalorder %s30, %s46
      %p48 = scmp.eq.s32.totalorder %s22, 0
      %p49 = por %p47, %p48
      %s51 = sadd.s32 %s50, 1
      %p54 = scmp.eq.s32.totalorder %s16, 1
      %p55 = scmp.ne.s32.totalorder %s50, %s52
      %p56 = scmp.eq.s32.totalorder %s16, 0
      %p57 = por %p55, %p56
      %p58 = scmp.ne.s32.totalorder %s50, %s52
      %p59 = scmp.eq.s32.totalorder %s21, 1
      %p60 = por %p58, %p59
      %p61 = scmp.ne.s32.totalorder %s52, %s53
      %p62 = scmp.eq.s32.totalorder %s21, 0
      %p63 = por %p61, %p62
      %p64 = scmp.ne.s32.totalorder %s52, %s53
      %p65 = scmp.eq.s32.totalorder %s22, 1
      %p66 = por %p64, %p65
      %p68 = scmp.ne.s32.totalorder %s53, %s67
      %p69 = scmp.eq.s32.totalorder %s22, 0
      %p70 = por %p68, %p69
      %s72 = sadd.s32 %s71, 1
      %p75 = scmp.eq.s32.totalorder %s16, 1
      %p76 = scmp.ne.s32.totalorder %s71, %s73
      %p77 = scmp.eq.s32.totalorder %s16, 0
      %p78 = por %p76, %p77
      %p79 = scmp.ne.s32.totalorder %s71, %s73
      %p80 = scmp.eq.s32.totalorder %s21, 1
      %p81 = por %p79, %p80
      %p82 = scmp.ne.s32.totalorder %s73, %s74
      %p83 = scmp.eq.s32.totalorder %s21, 0
      %p84 = por %p82, %p83
      %p85 = scmp.ne.s32.totalorder %s73, %s74
      %p86 = scmp.eq.s32.totalorder %s22, 1
      %p87 = por %p85, %p86
      %p89 = scmp.ne.s32.totalorder %s74, %s88
      %p90 = scmp.eq.s32.totalorder %s22, 0
      %p91 = por %p89, %p90
      %s93 = sadd.s32 %s92, 1
      %p96 = scmp.eq.s32.totalorder %s16, 1
      %p97 = scmp.ne.s32.totalorder %s92, %s94
      %p98 = scmp.eq.s32.totalorder %s16, 0
      %p99 = por %p97, %p98
      %p100 = scmp.ne.s32.totalorder %s92, %s94
      %p101 = scmp.eq.s32.totalorder %s21, 1
      %p102 = por %p100, %p101
      %p103 = scmp.ne.s32.totalorder %s94, %s95
      %p104 = scmp.eq.s32.totalorder %s21, 0
      %p105 = por %p103, %p104
      %p106 = scmp.ne.s32.totalorder %s94, %s95
      %p107 = scmp.eq.s32.totalorder %s22, 1
      %p108 = por %p106, %p107
      %p110 = scmp.ne.s32.totalorder %s95, %s109
      %p111 = scmp.eq.s32.totalorder %s22, 0
      %p112 = por %p110, %p111
      %s114 = sadd.s32 %s113, 1
      %p117 = scmp.eq.s32.totalorder %s16, 1
      %p118 = scmp.ne.s32.totalorder %s113, %s115
      %p119 = scmp.eq.s32.totalorder %s16, 0
      %p120 = por %p118, %p119
      %p121 = scmp.ne.s32.totalorder %s113, %s115
      %p122 = scmp.eq.s32.totalorder %s21, 1
      %p123 = por %p121, %p122
      %p124 = scmp.ne.s32.totalorder %s115, %s116
      %p125 = scmp.eq.s32.totalorder %s21, 0
      %p126 = por %p124, %p125
      %p127 = scmp.ne.s32.totalorder %s115, %s116
      %p128 = scmp.eq.s32.totalorder %s22, 1
      %p129 = por %p127, %p128
      %p131 = scmp.ne.s32.totalorder %s116, %s130
      %p132 = scmp.eq.s32.totalorder %s22, 0
      %p133 = por %p131, %p132
      %s135 = sadd.s32 %s134, 1
      %p138 = scmp.eq.s32.totalorder %s16, 1
      %p139 = scmp.ne.s32.totalorder %s134, %s136
      %p140 = scmp.eq.s32.totalorder %s16, 0
      %p141 = por %p139, %p140
      %p142 = scmp.ne.s32.totalorder %s134, %s136
      %p143 = scmp.eq.s32.totalorder %s21, 1
      %p144 = por %p142, %p143
      %p145 = scmp.ne.s32.totalorder %s136, %s137
      %p146 = scmp.eq.s32.totalorder %s21, 0
      %p147 = por %p145, %p146
      %p148 = scmp.ne.s32.totalorder %s136, %s137
      %p149 = scmp.eq.s32.totalorder %s22, 1
      %p150 = por %p148, %p149
      %p152 = scmp.ne.s32.totalorder %s137, %s151
      %p153 = scmp.eq.s32.totalorder %s22, 0
      %p154 = por %p152, %p153
      %s156 = sadd.s32 %s155, 1
      %p159 = scmp.eq.s32.totalorder %s16, 1
      %p160 = scmp.ne.s32.totalorder %s155, %s157
      %p161 = scmp.eq.s32.totalorder %s16, 0
      %p162 = por %p160, %p161
      %p163 = scmp.ne.s32.totalorder %s155, %s157
      %p164 = scmp.eq.s32.totalorder %s21, 1
      %p165 = por %p163, %p164
      %p166 = scmp.ne.s32.totalorder %s157, %s158
      %p167 = scmp.eq.s32.totalorder %s21, 0
      %p168 = por %p166, %p167
      %p169 = scmp.ne.s32.totalorder %s157, %s158
      %p170 = scmp.eq.s32.totalorder %s22, 1
      %p171 = por %p169, %p170
      %p173 = scmp.ne.s32.totalorder %s158, %s172
      %p174 = scmp.eq.s32.totalorder %s22, 0
      %p175 = por %p173, %p174
      %s177 = sadd.s32 %s176, 1
      %p180 = scmp.eq.s32.totalorder %s16, 1
      %p181 = scmp.ne.s32.totalorder %s176, %s178
      %p182 = scmp.eq.s32.totalorder %s16, 0
      %p183 = por %p181, %p182
      %p184 = scmp.ne.s32.totalorder %s176, %s178
      %p185 = scmp.eq.s32.totalorder %s21, 1
      %p186 = por %p184, %p185
      %p187 = scmp.ne.s32.totalorder %s178, %s179
      %p188 = scmp.eq.s32.totalorder %s21, 0
      %p189 = por %p187, %p188
      %p190 = scmp.ne.s32.totalorder %s178, %s179
      %p191 = scmp.eq.s32.totalorder %s22, 1
      %p192 = por %p190, %p191
      %p194 = scmp.ne.s32.totalorder %s179, %s193
      %p195 = scmp.eq.s32.totalorder %s22, 0
      %p196 = por %p194, %p195
      %s197 = ssub.s32 %s16, %s23
      %p198 = scmp.eq.s32.totalorder %s197, 0
      %s200 = sadd.s32 %s199, 1
      %s201 = scalar_select %p198, %s199, %s200
      %p204 = pneg %p198
      %p205 = scmp.eq.s32.totalorder %s16, 1
      %p206 = por %p204, %p205
      %p207 = scmp.ne.s32.totalorder %s199, %s202
      %p208 = scmp.eq.s32.totalorder %s16, 0
      %p209 = por %p207, %p208
      %p210 = scmp.ne.s32.totalorder %s199, %s202
      %p211 = scmp.eq.s32.totalorder %s21, 1
      %p212 = por %p210, %p211
      %p213 = scmp.ne.s32.totalorder %s202, %s203
      %p214 = scmp.eq.s32.totalorder %s21, 0
      %p215 = por %p213, %p214
      %p216 = scmp.ne.s32.totalorder %s202, %s203
      %p217 = scmp.eq.s32.totalorder %s22, 1
      %p218 = por %p216, %p217
      %p220 = scmp.ne.s32.totalorder %s203, %s219
      %p221 = scmp.eq.s32.totalorder %s22, 0
      %p222 = por %p220, %p221
      %s223 = ssub.s32 %s16, %s23
      %p224 = scmp.eq.s32.totalorder %s223, 0
      %s226 = sadd.s32 %s225, 1
      %s227 = scalar_select %p224, %s225, %s226
      %p230 = pneg %p224
      %p231 = scmp.eq.s32.totalorder %s16, 1
      %p232 = por %p230, %p231
      %p233 = scmp.ne.s32.totalorder %s225, %s228
      %p234 = scmp.eq.s32.totalorder %s16, 0
      %p235 = por %p233, %p234
      %p236 = scmp.ne.s32.totalorder %s225, %s228
      %p237 = scmp.eq.s32.totalorder %s21, 1
      %p238 = por %p236, %p237
      %p239 = scmp.ne.s32.totalorder %s228, %s229
      %p240 = scmp.eq.s32.totalorder %s21, 0
      %p241 = por %p239, %p240
      %p242 = scmp.ne.s32.totalorder %s228, %s229
      %p243 = scmp.eq.s32.totalorder %s22, 1
      %p244 = por %p242, %p243
      %p246 = scmp.ne.s32.totalorder %s229, %s245
      %p247 = scmp.eq.s32.totalorder %s22, 0
      %p248 = por %p246, %p247
      %p249 = scmp.le.s32.totalorder 1, %s16
      %p250 = scmp.lt.s32.totalorder %s16, 3
      %p251 = pnand %p249, %p250
      %p252 = pneg %p251
      // Predicated region
      $region9: #{relative_transformer_forward.6} parent=5 // pred_check
        _
      $region10: #{relative_transformer_forward.6} parent=5 // pred_check_branch
        %254 = sbr.rel (%p251) target = $region12
      $region11: #{relative_transformer_forward.6} parent=5 // pred_region
        %s255 = ssub.s32 %s16, 1
        // Predicated region
        $region13: #{relative_transformer_forward.6} parent=11 // pred_check
          %p256 = pneg %p63
        $region14: #{relative_transformer_forward.6} parent=11 // pred_check_branch
          %258 = sbr.rel (%p256) target = $region16
        $region15: #{relative_transformer_forward.6} parent=11 // pred_region
          %260 = vsyncadd [#allocation3], 0
          %s261 = sshll.u32 %s1, 4
          %s262 = int_to_ptr.hbm [resolvable:$true] %s261
          %s263 = sshll.u32 [#allocation2], 4
          %s264 = int_to_ptr.vmem [resolvable:$true] %s263
          %269 = dma.hbm_to_vmem [thread:$0]  %s262, 256, %s264, [#allocation3], 64, 64, 4
        $region16: #{relative_transformer_forward.6} parent=11 // pred_fallthru
          _
        // Predicated region
        $region17: #{relative_transformer_forward.6} parent=11 // pred_check
          %p270 = pneg %p84
        $region18: #{relative_transformer_forward.6} parent=11 // pred_check_branch
          %272 = sbr.rel (%p270) target = $region20
        $region19: #{relative_transformer_forward.6} parent=11 // pred_region
          _
        $region20: #{relative_transformer_forward.6} parent=11 // pred_fallthru
          _
        // Predicated region
        $region21: #{relative_transformer_forward.6} parent=11 // pred_check
          %p273 = pneg %p105
        $region22: #{relative_transformer_forward.6} parent=11 // pred_check_branch
          %275 = sbr.rel (%p273) target = $region24
        $region23: #{relative_transformer_forward.6} parent=11 // pred_region
          _
        $region24: #{relative_transformer_forward.6} parent=11 // pred_fallthru
          _
        // Predicated region
        $region25: #{relative_transformer_forward.6} parent=11 // pred_check
          %p276 = pneg %p126
        $region26: #{relative_transformer_forward.6} parent=11 // pred_check_branch
          %278 = sbr.rel (%p276) target = $region28
        $region27: #{relative_transformer_forward.6} parent=11 // pred_region
          _
        $region28: #{relative_transformer_forward.6} parent=11 // pred_fallthru
          _
        // Predicated region
        $region29: #{relative_transformer_forward.6} parent=11 // pred_check
          %p279 = pneg %p147
        $region30: #{relative_transformer_forward.6} parent=11 // pred_check_branch
          %281 = sbr.rel (%p279) target = $region32
        $region31: #{relative_transformer_forward.6} parent=11 // pred_region
          _
        $region32: #{relative_transformer_forward.6} parent=11 // pred_fallthru
          _
        // Predicated region
        $region33: #{relative_transformer_forward.6} parent=11 // pred_check
          %p282 = pneg %p168
        $region34: #{relative_transformer_forward.6} parent=11 // pred_check_branch
          %284 = sbr.rel (%p282) target = $region36
        $region35: #{relative_transformer_forward.6} parent=11 // pred_region
          _
        $region36: #{relative_transformer_forward.6} parent=11 // pred_fallthru
          _
        // Predicated region
        $region37: #{relative_transformer_forward.6} parent=11 // pred_check
          %p285 = pneg %p189
        $region38: #{relative_transformer_forward.6} parent=11 // pred_check_branch
          %287 = sbr.rel (%p285) target = $region40
        $region39: #{relative_transformer_forward.6} parent=11 // pred_region
          _
        $region40: #{relative_transformer_forward.6} parent=11 // pred_fallthru
          _
      $region12: #{relative_transformer_forward.6} parent=5 // pred_fallthru
        _
      %p288 = scmp.lt.s32.totalorder %s16, 2
      // Predicated region
      $region41: #{relative_transformer_forward.6} parent=5 // pred_check
        %p289 = pneg %p288
      $region42: #{relative_transformer_forward.6} parent=5 // pred_check_branch
        %291 = sbr.rel (%p289) target = $region44
      $region43: #{relative_transformer_forward.6} parent=5 // pred_region
        // Predicated region
        $region45: #{relative_transformer_forward.6} parent=43 // pred_check
          %p292 = pneg %p36
        $region46: #{relative_transformer_forward.6} parent=43 // pred_check_branch
          %294 = sbr.rel (%p292) target = $region48
        $region47: #{relative_transformer_forward.6} parent=43 // pred_region
          %p295 = scmp.lt.s32.totalorder %s16, 1
          %s296 = scalar_select %p295, %s16, 1
          %s297 = smul.addr %s296, 8
          %s298 = scalar_lea.vmem %s0, %s297
        $region48: #{relative_transformer_forward.6} parent=43 // pred_fallthru
          _
        // Predicated region
        $region49: #{relative_transformer_forward.6} parent=43 // pred_check
          %p299 = pneg %p209
        $region50: #{relative_transformer_forward.6} parent=43 // pred_check_branch
          %301 = sbr.rel (%p299) target = $region52
        $region51: #{relative_transformer_forward.6} parent=43 // pred_region
          %p302 = scmp.lt.s32.totalorder %s16, 1
          %s303 = scalar_select %p302, %s16, 1
          %s304 = scalar_lea.vmem %s8, %s303
        $region52: #{relative_transformer_forward.6} parent=43 // pred_fallthru
          _
      $region44: #{relative_transformer_forward.6} parent=5 // pred_fallthru
        _
      %p305 = scmp.le.s32.totalorder 1, %s16
      %p306 = scmp.lt.s32.totalorder %s16, 3
      %p307 = pnand %p305, %p306
      %p308 = pneg %p307
      // Predicated region
      $region53: #{relative_transformer_forward.6} parent=5 // pred_check
        _
      $region54: #{relative_transformer_forward.6} parent=5 // pred_check_branch
        %310 = sbr.rel (%p307) target = $region56
      $region55: #{relative_transformer_forward.6} parent=5 // pred_region
        %s311 = ssub.s32 %s16, 1
        // Predicated region
        $region57: #{relative_transformer_forward.6} parent=55 // pred_check
          %p312 = pneg %p63
        $region58: #{relative_transformer_forward.6} parent=55 // pred_check_branch
          %314 = sbr.rel (%p312) target = $region60
        $region59: #{relative_transformer_forward.6} parent=55 // pred_region
          %316 = dma.done [#allocation3], 256
        $region60: #{relative_transformer_forward.6} parent=55 // pred_fallthru
          _
        %p317 = scmp.lt.s32.totalorder %s21, 1
        %s318 = scalar_select %p317, %s21, 1
        %s319 = smul.addr %s318, 8
        %s320 = scalar_lea.vmem %s0, %s319
        %p321 = pneg %p42
        %p322 = pneg %p39
        %p323 = pneg %p63
        %p324 = pneg %p60
        %p325 = pneg %p84
        %p326 = pneg %p81
        %p327 = pneg %p105
        %p328 = pneg %p102
        %p329 = pneg %p126
        %p330 = pneg %p123
        %p331 = pneg %p147
        %p332 = pneg %p144
        %p333 = pneg %p168
        %p334 = pneg %p165
        %p335 = pneg %p189
        %p336 = pneg %p186
        %p337 = scmp.lt.s32.totalorder %s21, 1
        %s338 = scalar_select %p337, %s21, 1
        %s339 = scalar_lea.vmem %s8, %s338
        %p340 = pneg %p215
        %p341 = pneg %p212
        %p342 = pneg %p241
        %p343 = pneg %p238
        %p344 = scmp.lt.s32.totalorder %s21, 1
        %s345 = scalar_select %p344, %s21, 1
        %s346 = smul.addr %s345, 8
        %s347 = scalar_lea.vmem %s9, %s346
        %p348 = scmp.lt.s32.totalorder %s21, 1
        %s349 = scalar_select %p348, %s21, 1
        %s350 = smul.addr %s349, 8
        %s351 = scalar_lea.vmem %s0, %s350
        %p352 = scmp.lt.s32.totalorder %s21, 1
        %s353 = scalar_select %p352, %s21, 1
        %s354 = scalar_lea.vmem %s8, %s353
        %p355 = scmp.lt.s32.totalorder %s21, 1
        %s356 = scalar_select %p355, %s21, 1
        %s357 = smul.addr %s356, 8
        %s358 = scalar_lea.vmem %s9, %s357
        %v360 = vld [vmem:[%s351] sm:$0xff]
        %v361 = vpack.c.bf16 %v360, %v360
        %v362 = vld [vmem:[#allocation2] sm:$0xf]
        %v363 = vld [vmem:[#allocation2 + $0x4] sm:$0xf]
        %v364 = vld [vmem:[#allocation2 + $0x8] sm:$0xf]
        %v365 = vld [vmem:[#allocation2 + $0xc] sm:$0xf]
        %v370 = vunpack.c.l.b16 %v362
        %v371 = vunpack.c.l.b16 %v363
        %v372 = vunpack.c.l.b16 %v364
        %v373 = vunpack.c.l.b16 %v365
        %v374 = vpack.c.b16 %v371, %v370
        %v375 = vpack.c.b16 %v373, %v372
        %vm378 = vcmask 261120
        %v380 = vsel %vm378, %v361, 0
        %382 = vmatpush.bf16.msra.mxu0 0
        %383 = vmatpush.bf16.msra.mxu0 0
        %384 = vmatpush.bf16.msra.mxu0 0
        %385 = vmatpush.bf16.msra.mxu0 0
        %386 = vmatpush.bf16.msra.mxu0 0
        %387 = vmatpush.bf16.msra.mxu0 0
        %388 = vmatpush.bf16.msra.mxu0 %v375
        %389 = vmatpush.bf16.msra.mxu0 %v374
        %390 = vmatmul.bf16.gmra.mxu0 %v380
        %v391 = vpop.f32.mrf.mxu0
        %v392 = vadd.f32 0.0, %v391
        %v393 = vpop.f32.mrf.mxu0
        %394 = vdwg.mxu0
        %v395 = vld [vmem:[%s354] sm:$0x1]
        %v396 = vld [vmem:[%s4] sm:$0xff]
        %v397 = vld [vmem:[%s5] sm:$0xff]
        %v398 = vld [vmem:[%s6] sm:$0x3]
        %v399 = vld [vmem:[%s7] sm:$0x3]
        %v400 = vld [vmem:[%s2] sm:$0x1]
        %v401 = vld [vmem:[%s3] sm:$0x1]
        %v402 = vperm.slane %v400, 0
        %v403 = vadd.f32 %v392, %v402
        %v404 = vpack.c.bf16 %v403, %v403
        %v405 = vperm.slane %v401, 0
        %v406 = vadd.f32 %v392, %v405
        %v407 = vmul.f32 %v406, %v396
        %409 = vrot.lane.b32.xlu0 %v397, 4
        %v410 = vpop.permute.xlu0 %409
        %v412 = vmul.f32 %v406, %v410
        %414 = vrot.lane.b32.xlu0 %v412, 124
        %v415 = vpop.permute.xlu0 %414
        %v417 = vadd.f32 %v407, %v415
        %v418 = vpack.c.bf16 %v417, %v417
        %420 = vrot.lane.b32.xlu0 %v396, 4
        %v421 = vpop.permute.xlu0 %420
        %v423 = vmul.f32 %v406, %v421
        %v424 = vmul.f32 %v406, %v397
        %426 = vrot.lane.b32.xlu0 %v424, 4
        %v427 = vpop.permute.xlu0 %426
        %v429 = vsub.f32 %v423, %v427
        %v430 = vpack.c.bf16 %v429, %v429
        %432 = vrot.lane.b32.xlu0 %v430, 124
        %v433 = vpop.permute.xlu0 %432
        %vm434 = vcmask 31744
        %v436 = vsel %vm434, %v433, 0
        %vm438 = vcmask 1041408
        %v440 = vsel %vm438, %v399, 0
        %442 = vmatpush.bf16.msra.mxu0 0
        %443 = vmatpush.bf16.msra.mxu0 0
        %444 = vmatpush.bf16.msra.mxu0 0
        %445 = vmatpush.bf16.msra.mxu0 0
        %446 = vmatpush.bf16.msra.mxu0 0
        %447 = vmatpush.bf16.msra.mxu0 0
        %448 = vmatpush.bf16.msra.mxu0 0
        %449 = vmatpush.bf16.msra.mxu0 %v440
        %450 = vmatmul.bf16.gmra.mxu0 %v436
        %v451 = vpop.f32.mrf.mxu0
        %v452 = vadd.f32 0.0, %v451
        %v453 = vpop.f32.mrf.mxu0
        %454 = vdwg.mxu0
        %v456 = vsel %vm434, %v418, 0
        %v459 = vsel %vm438, %v398, 0
        %461 = vmatpush.bf16.msra.mxu0 0
        %462 = vmatpush.bf16.msra.mxu0 0
        %463 = vmatpush.bf16.msra.mxu0 0
        %464 = vmatpush.bf16.msra.mxu0 0
        %465 = vmatpush.bf16.msra.mxu0 0
        %466 = vmatpush.bf16.msra.mxu0 0
        %467 = vmatpush.bf16.msra.mxu0 0
        %468 = vmatpush.bf16.msra.mxu0 %v459
        %469 = vmatmul.bf16.gmra.mxu0 %v456
        %v470 = vpop.f32.mrf.mxu0
        %v471 = vadd.f32 %v452, %v470
        %v472 = vpop.f32.mrf.mxu0
        %473 = vdwg.mxu0
        %vm474 = vcmask 64512
        %v476 = vsel %vm474, %v404, 0
        %v478 = vsel %vm474, %v361, 0
        %480 = vmatpush.bf16.xpose.msra.mxu0 0
        %481 = vmatpush.bf16.xpose.msra.mxu0 0
        %482 = vmatpush.bf16.xpose.msra.mxu0 0
        %483 = vmatpush.bf16.xpose.msra.mxu0 0
        %484 = vmatpush.bf16.xpose.msra.mxu0 0
        %485 = vmatpush.bf16.xpose.msra.mxu0 0
        %486 = vmatpush.bf16.xpose.msra.mxu0 0
        %487 = vmatpush.bf16.xpose.msra.mxu0 %v478
        %488 = vmatmul.bf16.gmra.mxu0 %v476
        %v489 = vpop.f32.mrf.mxu0
        %v490 = vadd.f32 %v471, %v489
        %v491 = vpop.f32.mrf.mxu0
        %492 = vdwg.mxu0
        %v494 = vperm.slane %v395, 0
        %v496 = vadd.f32 %v490, %v494
        %v497 = vsel %vm474, %v496, -inf
        %498 = vmax.xlane.f32.xlu0 %v497
        %v499 = vpop.xlane.xlu0 %498
        %v500 = vsub.f32 %v496, %v499
        %v501 = vmul.f32 %v500, 1.442695
        %v502 = vpow.pop %v501
        %v503 = vsel %vm474, %v502, 0.0
        %504 = vadd.xlane.f32.xlu0 %v503
        %v505 = vpop.xlane.xlu0 %504
        %v506 = vrcp.pop %v505
        %v507 = vmul.f32 %v502, %v506
        %v508 = vpack.c.bf16 %v507, %v507
        %v509 = vpack.c.bf16 %v392, %v392
        %511 = vrot.lane.b32.xlu0 %v509, 96
        %v512 = vpop.permute.xlu0 %511
        %v514 = vsel %vm474, %v508, 0
        %vm516 = vcmask 1043456
        %v518 = vsel %vm516, %v512, 0
        %520 = vmatpush.bf16.msra.mxu0 0
        %521 = vmatpush.bf16.msra.mxu0 0
        %522 = vmatpush.bf16.msra.mxu0 0
        %523 = vmatpush.bf16.msra.mxu0 0
        %524 = vmatpush.bf16.msra.mxu0 0
        %525 = vmatpush.bf16.msra.mxu0 0
        %526 = vmatpush.bf16.msra.mxu0 0
        %527 = vmatpush.bf16.msra.mxu0 %v518
        %528 = vmatmul.bf16.gmra.mxu0 %v514
        %v529 = vpop.f32.mrf.mxu0
        %v530 = vadd.f32 0.0, %v529
        %v531 = vpop.f32.mrf.mxu0
        %532 = vdwg.mxu0
        %533 = vst.msk [vmem:[%s358] sm:$0xff] %vm474, %v530
        %v534 = vld [vmem:[%s2 + $0x1] sm:$0x1]
        %v535 = vld [vmem:[%s3 + $0x1] sm:$0x1]
        %v536 = vperm.slane %v534, 0
        %538 = vrot.lane.b32.xlu0 %v536, 8
        %v539 = vpop.permute.xlu0 %538
        %v541 = vadd.f32 %v392, %v539
        %v542 = vpack.c.bf16 %v541, %v541
        %v543 = vperm.slane %v535, 0
        %545 = vrot.lane.b32.xlu0 %v543, 8
        %v546 = vpop.permute.xlu0 %545
        %v548 = vadd.f32 %v392, %v546
        %549 = vrot.lane.b32.xlu0 %v396, 8
        %v550 = vpop.permute.xlu0 %549
        %v552 = vmul.f32 %v548, %v550
        %553 = vrot.lane.b32.xlu0 %v397, 12
        %v554 = vpop.permute.xlu0 %553
        %v556 = vmul.f32 %v548, %v554
        %558 = vrot.lane.b32.xlu0 %v556, 124
        %v559 = vpop.permute.xlu0 %558
        %v561 = vadd.f32 %v552, %v559
        %v562 = vpack.c.bf16 %v561, %v561
        %563 = vrot.lane.b32.xlu0 %v396, 12
        %v564 = vpop.permute.xlu0 %563
        %v566 = vmul.f32 %v548, %v564
        %567 = vrot.lane.b32.xlu0 %v397, 8
        %v568 = vpop.permute.xlu0 %567
        %v570 = vmul.f32 %v548, %v568
        %572 = vrot.lane.b32.xlu0 %v570, 4
        %v573 = vpop.permute.xlu0 %572
        %v575 = vsub.f32 %v566, %v573
        %v576 = vpack.c.bf16 %v575, %v575
        %578 = vrot.lane.b32.xlu0 %v576, 116
        %v579 = vpop.permute.xlu0 %578
        %v581 = vsel %vm434, %v579, 0
        %583 = vmatpush.bf16.msra.mxu0 0
        %584 = vmatpush.bf16.msra.mxu0 0
        %585 = vmatpush.bf16.msra.mxu0 0
        %586 = vmatpush.bf16.msra.mxu0 0
        %587 = vmatpush.bf16.msra.mxu0 0
        %588 = vmatpush.bf16.msra.mxu0 0
        %589 = vmatpush.bf16.msra.mxu0 0
        %590 = vmatpush.bf16.msra.mxu0 %v440
        %591 = vmatmul.bf16.gmra.mxu0 %v581
        %v592 = vpop.f32.mrf.mxu0
        %v593 = vadd.f32 0.0, %v592
        %v594 = vpop.f32.mrf.mxu0
        %595 = vdwg.mxu0
        %597 = vrot.lane.b32.xlu0 %v562, 120
        %v598 = vpop.permute.xlu0 %597
        %v600 = vsel %vm434, %v598, 0
        %602 = vmatpush.bf16.msra.mxu0 0
        %603 = vmatpush.bf16.msra.mxu0 0
        %604 = vmatpush.bf16.msra.mxu0 0
        %605 = vmatpush.bf16.msra.mxu0 0
        %606 = vmatpush.bf16.msra.mxu0 0
        %607 = vmatpush.bf16.msra.mxu0 0
        %608 = vmatpush.bf16.msra.mxu0 0
        %609 = vmatpush.bf16.msra.mxu0 %v459
        %610 = vmatmul.bf16.gmra.mxu0 %v600
        %v611 = vpop.f32.mrf.mxu0
        %v612 = vadd.f32 %v593, %v611
        %v613 = vpop.f32.mrf.mxu0
        %614 = vdwg.mxu0
        %616 = vrot.lane.b32.xlu0 %v542, 120
        %v617 = vpop.permute.xlu0 %616
        %v619 = vunpack.c.l.b16 %v361
        %v620 = vpack.c.b16 %v619, %v619
        %621 = vrot.lane.b32.xlu0 %v620, 120
        %v622 = vpop.permute.xlu0 %621
        %v624 = vsel %vm474, %v617, 0
        %v627 = vsel %vm474, %v622, 0
        %629 = vmatpush.bf16.xpose.msra.mxu0 0
        %630 = vmatpush.bf16.xpose.msra.mxu0 0
        %631 = vmatpush.bf16.xpose.msra.mxu0 0
        %632 = vmatpush.bf16.xpose.msra.mxu0 0
        %633 = vmatpush.bf16.xpose.msra.mxu0 0
        %634 = vmatpush.bf16.xpose.msra.mxu0 0
        %635 = vmatpush.bf16.xpose.msra.mxu0 0
        %636 = vmatpush.bf16.xpose.msra.mxu0 %v627
        %637 = vmatmul.bf16.gmra.mxu0 %v624
        %v638 = vpop.f32.mrf.mxu0
        %v639 = vadd.f32 %v612, %v638
        %v640 = vpop.f32.mrf.mxu0
        %641 = vdwg.mxu0
        %v642 = vadd.f32 %v639, %v494
        %v643 = vsel %vm474, %v642, -inf
        %644 = vmax.xlane.f32.xlu0 %v643
        %v645 = vpop.xlane.xlu0 %644
        %v646 = vsub.f32 %v642, %v645
        %v647 = vmul.f32 %v646, 1.442695
        %v648 = vpow.pop %v647
        %v649 = vsel %vm474, %v648, 0.0
        %650 = vadd.xlane.f32.xlu0 %v649
        %v651 = vpop.xlane.xlu0 %650
        %v652 = vrcp.pop %v651
        %v653 = vmul.f32 %v648, %v652
        %v654 = vpack.c.bf16 %v653, %v653
        %655 = vrot.lane.b32.xlu0 %v509, 88
        %v656 = vpop.permute.xlu0 %655
        %v658 = vsel %vm474, %v654, 0
        %v661 = vsel %vm516, %v656, 0
        %663 = vmatpush.bf16.msra.mxu0 0
        %664 = vmatpush.bf16.msra.mxu0 0
        %665 = vmatpush.bf16.msra.mxu0 0
        %666 = vmatpush.bf16.msra.mxu0 0
        %667 = vmatpush.bf16.msra.mxu0 0
        %668 = vmatpush.bf16.msra.mxu0 0
        %669 = vmatpush.bf16.msra.mxu0 0
        %670 = vmatpush.bf16.msra.mxu0 %v661
        %671 = vmatmul.bf16.gmra.mxu0 %v658
        %v672 = vpop.f32.mrf.mxu0
        %v673 = vadd.f32 0.0, %v672
        %v674 = vpop.f32.mrf.mxu0
        %675 = vdwg.mxu0
        %677 = vrot.lane.b32.xlu0 %v673, 8
        %v678 = vpop.permute.xlu0 %677
        %vm680 = vcmask 130112
        %681 = vst.msk [vmem:[%s358] sm:$0xff] %vm680, %v678
        %v682 = vld [vmem:[%s2 + $0x2] sm:$0x1]
        %v683 = vld [vmem:[%s3 + $0x2] sm:$0x1]
        %v684 = vperm.slane %v682, 0
        %686 = vrot.lane.b32.xlu0 %v684, 16
        %v687 = vpop.permute.xlu0 %686
        %v689 = vadd.f32 %v392, %v687
        %v690 = vpack.c.bf16 %v689, %v689
        %v691 = vperm.slane %v683, 0
        %693 = vrot.lane.b32.xlu0 %v691, 16
        %v694 = vpop.permute.xlu0 %693
        %v696 = vadd.f32 %v392, %v694
        %697 = vrot.lane.b32.xlu0 %v396, 16
        %v698 = vpop.permute.xlu0 %697
        %v700 = vmul.f32 %v696, %v698
        %701 = vrot.lane.b32.xlu0 %v397, 20
        %v702 = vpop.permute.xlu0 %701
        %v704 = vmul.f32 %v696, %v702
        %706 = vrot.lane.b32.xlu0 %v704, 124
        %v707 = vpop.permute.xlu0 %706
        %v709 = vadd.f32 %v700, %v707
        %v710 = vpack.c.bf16 %v709, %v709
        %711 = vrot.lane.b32.xlu0 %v396, 20
        %v712 = vpop.permute.xlu0 %711
        %v714 = vmul.f32 %v696, %v712
        %715 = vrot.lane.b32.xlu0 %v397, 16
        %v716 = vpop.permute.xlu0 %715
        %v718 = vmul.f32 %v696, %v716
        %720 = vrot.lane.b32.xlu0 %v718, 4
        %v721 = vpop.permute.xlu0 %720
        %v723 = vsub.f32 %v714, %v721
        %v724 = vpack.c.bf16 %v723, %v723
        %726 = vrot.lane.b32.xlu0 %v724, 108
        %v727 = vpop.permute.xlu0 %726
        %v729 = vsel %vm434, %v727, 0
        %731 = vmatpush.bf16.msra.mxu0 0
        %732 = vmatpush.bf16.msra.mxu0 0
        %733 = vmatpush.bf16.msra.mxu0 0
        %734 = vmatpush.bf16.msra.mxu0 0
        %735 = vmatpush.bf16.msra.mxu0 0
        %736 = vmatpush.bf16.msra.mxu0 0
        %737 = vmatpush.bf16.msra.mxu0 0
        %738 = vmatpush.bf16.msra.mxu0 %v440
        %739 = vmatmul.bf16.gmra.mxu0 %v729
        %v740 = vpop.f32.mrf.mxu0
        %v741 = vadd.f32 0.0, %v740
        %v742 = vpop.f32.mrf.mxu0
        %743 = vdwg.mxu0
        %745 = vrot.lane.b32.xlu0 %v710, 112
        %v746 = vpop.permute.xlu0 %745
        %v748 = vsel %vm434, %v746, 0
        %750 = vmatpush.bf16.msra.mxu0 0
        %751 = vmatpush.bf16.msra.mxu0 0
        %752 = vmatpush.bf16.msra.mxu0 0
        %753 = vmatpush.bf16.msra.mxu0 0
        %754 = vmatpush.bf16.msra.mxu0 0
        %755 = vmatpush.bf16.msra.mxu0 0
        %756 = vmatpush.bf16.msra.mxu0 0
        %757 = vmatpush.bf16.msra.mxu0 %v459
        %758 = vmatmul.bf16.gmra.mxu0 %v748
        %v759 = vpop.f32.mrf.mxu0
        %v760 = vadd.f32 %v741, %v759
        %v761 = vpop.f32.mrf.mxu0
        %762 = vdwg.mxu0
        %764 = vrot.lane.b32.xlu0 %v690, 112
        %v765 = vpop.permute.xlu0 %764
        %766 = vrot.lane.b32.xlu0 %v620, 112
        %v767 = vpop.permute.xlu0 %766
        %v769 = vsel %vm474, %v765, 0
        %v772 = vsel %vm474, %v767, 0
        %774 = vmatpush.bf16.xpose.msra.mxu0 0
        %775 = vmatpush.bf16.xpose.msra.mxu0 0
        %776 = vmatpush.bf16.xpose.msra.mxu0 0
        %777 = vmatpush.bf16.xpose.msra.mxu0 0
        %778 = vmatpush.bf16.xpose.msra.mxu0 0
        %779 = vmatpush.bf16.xpose.msra.mxu0 0
        %780 = vmatpush.bf16.xpose.msra.mxu0 0
        %781 = vmatpush.bf16.xpose.msra.mxu0 %v772
        %782 = vmatmul.bf16.gmra.mxu0 %v769
        %v783 = vpop.f32.mrf.mxu0
        %v784 = vadd.f32 %v760, %v783
        %v785 = vpop.f32.mrf.mxu0
        %786 = vdwg.mxu0
        %v787 = vadd.f32 %v784, %v494
        %v788 = vsel %vm474, %v787, -inf
        %789 = vmax.xlane.f32.xlu0 %v788
        %v790 = vpop.xlane.xlu0 %789
        %v791 = vsub.f32 %v787, %v790
        %v792 = vmul.f32 %v791, 1.442695
        %v793 = vpow.pop %v792
        %v794 = vsel %vm474, %v793, 0.0
        %795 = vadd.xlane.f32.xlu0 %v794
        %v796 = vpop.xlane.xlu0 %795
        %v797 = vrcp.pop %v796
        %v798 = vmul.f32 %v793, %v797
        %v799 = vpack.c.bf16 %v798, %v798
        %800 = vrot.lane.b32.xlu0 %v509, 80
        %v801 = vpop.permute.xlu0 %800
        %v803 = vsel %vm474, %v799, 0
        %v806 = vsel %vm516, %v801, 0
        %808 = vmatpush.bf16.msra.mxu0 0
        %809 = vmatpush.bf16.msra.mxu0 0
        %810 = vmatpush.bf16.msra.mxu0 0
        %811 = vmatpush.bf16.msra.mxu0 0
        %812 = vmatpush.bf16.msra.mxu0 0
        %813 = vmatpush.bf16.msra.mxu0 0
        %814 = vmatpush.bf16.msra.mxu0 0
        %815 = vmatpush.bf16.msra.mxu0 %v806
        %816 = vmatmul.bf16.gmra.mxu0 %v803
        %v817 = vpop.f32.mrf.mxu0
        %v818 = vadd.f32 0.0, %v817
        %v819 = vpop.f32.mrf.mxu0
        %820 = vdwg.mxu0
        %822 = vrot.lane.b32.xlu0 %v818, 16
        %v823 = vpop.permute.xlu0 %822
        %vm825 = vcmask 195712
        %826 = vst.msk [vmem:[%s358] sm:$0xff] %vm825, %v823
        %v827 = vld [vmem:[%s2 + $0x3] sm:$0x1]
        %v828 = vld [vmem:[%s3 + $0x3] sm:$0x1]
        %v829 = vperm.slane %v827, 0
        %831 = vrot.lane.b32.xlu0 %v829, 24
        %v832 = vpop.permute.xlu0 %831
        %v834 = vadd.f32 %v392, %v832
        %v835 = vpack.c.bf16 %v834, %v834
        %v836 = vperm.slane %v828, 0
        %838 = vrot.lane.b32.xlu0 %v836, 24
        %v839 = vpop.permute.xlu0 %838
        %v841 = vadd.f32 %v392, %v839
        %842 = vrot.lane.b32.xlu0 %v396, 24
        %v843 = vpop.permute.xlu0 %842
        %v845 = vmul.f32 %v841, %v843
        %846 = vrot.lane.b32.xlu0 %v397, 28
        %v847 = vpop.permute.xlu0 %846
        %v849 = vmul.f32 %v841, %v847
        %851 = vrot.lane.b32.xlu0 %v849, 124
        %v852 = vpop.permute.xlu0 %851
        %v854 = vadd.f32 %v845, %v852
        %v855 = vpack.c.bf16 %v854, %v854
        %856 = vrot.lane.b32.xlu0 %v396, 28
        %v857 = vpop.permute.xlu0 %856
        %v859 = vmul.f32 %v841, %v857
        %860 = vrot.lane.b32.xlu0 %v397, 24
        %v861 = vpop.permute.xlu0 %860
        %v863 = vmul.f32 %v841, %v861
        %865 = vrot.lane.b32.xlu0 %v863, 4
        %v866 = vpop.permute.xlu0 %865
        %v868 = vsub.f32 %v859, %v866
        %v869 = vpack.c.bf16 %v868, %v868
        %871 = vrot.lane.b32.xlu0 %v869, 100
        %v872 = vpop.permute.xlu0 %871
        %v874 = vsel %vm434, %v872, 0
        %876 = vmatpush.bf16.msra.mxu0 0
        %877 = vmatpush.bf16.msra.mxu0 0
        %878 = vmatpush.bf16.msra.mxu0 0
        %879 = vmatpush.bf16.msra.mxu0 0
        %880 = vmatpush.bf16.msra.mxu0 0
        %881 = vmatpush.bf16.msra.mxu0 0
        %882 = vmatpush.bf16.msra.mxu0 0
        %883 = vmatpush.bf16.msra.mxu0 %v440
        %884 = vmatmul.bf16.gmra.mxu0 %v874
        %v885 = vpop.f32.mrf.mxu0
        %v886 = vadd.f32 0.0, %v885
        %v887 = vpop.f32.mrf.mxu0
        %888 = vdwg.mxu0
        %890 = vrot.lane.b32.xlu0 %v855, 104
        %v891 = vpop.permute.xlu0 %890
        %v893 = vsel %vm434, %v891, 0
        %895 = vmatpush.bf16.msra.mxu0 0
        %896 = vmatpush.bf16.msra.mxu0 0
        %897 = vmatpush.bf16.msra.mxu0 0
        %898 = vmatpush.bf16.msra.mxu0 0
        %899 = vmatpush.bf16.msra.mxu0 0
        %900 = vmatpush.bf16.msra.mxu0 0
        %901 = vmatpush.bf16.msra.mxu0 0
        %902 = vmatpush.bf16.msra.mxu0 %v459
        %903 = vmatmul.bf16.gmra.mxu0 %v893
        %v904 = vpop.f32.mrf.mxu0
        %v905 = vadd.f32 %v886, %v904
        %v906 = vpop.f32.mrf.mxu0
        %907 = vdwg.mxu0
        %909 = vrot.lane.b32.xlu0 %v835, 104
        %v910 = vpop.permute.xlu0 %909
        %911 = vrot.lane.b32.xlu0 %v620, 104
        %v912 = vpop.permute.xlu0 %911
        %v914 = vsel %vm474, %v910, 0
        %v917 = vsel %vm474, %v912, 0
        %919 = vmatpush.bf16.xpose.msra.mxu0 0
        %920 = vmatpush.bf16.xpose.msra.mxu0 0
        %921 = vmatpush.bf16.xpose.msra.mxu0 0
        %922 = vmatpush.bf16.xpose.msra.mxu0 0
        %923 = vmatpush.bf16.xpose.msra.mxu0 0
        %924 = vmatpush.bf16.xpose.msra.mxu0 0
        %925 = vmatpush.bf16.xpose.msra.mxu0 0
        %926 = vmatpush.bf16.xpose.msra.mxu0 %v917
        %927 = vmatmul.bf16.gmra.mxu0 %v914
        %v928 = vpop.f32.mrf.mxu0
        %v929 = vadd.f32 %v905, %v928
        %v930 = vpop.f32.mrf.mxu0
        %931 = vdwg.mxu0
        %v932 = vadd.f32 %v929, %v494
        %v933 = vsel %vm474, %v932, -inf
        %934 = vmax.xlane.f32.xlu0 %v933
        %v935 = vpop.xlane.xlu0 %934
        %v936 = vsub.f32 %v932, %v935
        %v937 = vmul.f32 %v936, 1.442695
        %v938 = vpow.pop %v937
        %v939 = vsel %vm474, %v938, 0.0
        %940 = vadd.xlane.f32.xlu0 %v939
        %v941 = vpop.xlane.xlu0 %940
        %v942 = vrcp.pop %v941
        %v943 = vmul.f32 %v938, %v942
        %v944 = vpack.c.bf16 %v943, %v943
        %945 = vrot.lane.b32.xlu0 %v509, 72
        %v946 = vpop.permute.xlu0 %945
        %v948 = vsel %vm474, %v944, 0
        %v951 = vsel %vm516, %v946, 0
        %953 = vmatpush.bf16.msra.mxu0 0
        %954 = vmatpush.bf16.msra.mxu0 0
        %955 = vmatpush.bf16.msra.mxu0 0
        %956 = vmatpush.bf16.msra.mxu0 0
        %957 = vmatpush.bf16.msra.mxu0 0
        %958 = vmatpush.bf16.msra.mxu0 0
        %959 = vmatpush.bf16.msra.mxu0 0
        %960 = vmatpush.bf16.msra.mxu0 %v951
        %961 = vmatmul.bf16.gmra.mxu0 %v948
        %v962 = vpop.f32.mrf.mxu0
        %v963 = vadd.f32 0.0, %v962
        %v964 = vpop.f32.mrf.mxu0
        %965 = vdwg.mxu0
        %967 = vrot.lane.b32.xlu0 %v963, 24
        %v968 = vpop.permute.xlu0 %967
        %vm970 = vcmask 261312
        %971 = vst.msk [vmem:[%s358] sm:$0xff] %vm970, %v968
        %p972 = scmp.lt.s32.totalorder %s21, 1
        %s973 = scalar_select %p972, %s21, 1
        %s974 = smul.addr %s973, 8
        %s975 = scalar_lea.vmem %s9, %s974
        // Predicated region
        $region61: #{relative_transformer_forward.6} parent=55 // pred_check
          %p976 = pneg %p238
        $region62: #{relative_transformer_forward.6} parent=55 // pred_check_branch
          %978 = sbr.rel (%p976) target = $region64
        $region63: #{relative_transformer_forward.6} parent=55 // pred_region
          _
        $region64: #{relative_transformer_forward.6} parent=55 // pred_fallthru
          _
      $region56: #{relative_transformer_forward.6} parent=5 // pred_fallthru
        _
      %p979 = scmp.le.s32.totalorder 2, %s16
      // Predicated region
      $region65: #{relative_transformer_forward.6} parent=5 // pred_check
        %p980 = pneg %p979
      $region66: #{relative_transformer_forward.6} parent=5 // pred_check_branch
        %982 = sbr.rel (%p980) target = $region68
      $region67: #{relative_transformer_forward.6} parent=5 // pred_region
        %s983 = ssub.s32 %s16, 2
        // Predicated region
        $region69: #{relative_transformer_forward.6} parent=67 // pred_check
          %p984 = pneg %p244
        $region70: #{relative_transformer_forward.6} parent=67 // pred_check_branch
          %986 = sbr.rel (%p984) target = $region72
        $region71: #{relative_transformer_forward.6} parent=67 // pred_region
          %p987 = scmp.lt.s32.totalorder %s22, 1
          %s988 = scalar_select %p987, %s22, 1
          %s989 = smul.addr %s988, 8
          %s990 = scalar_lea.vmem %s9, %s989
        $region72: #{relative_transformer_forward.6} parent=67 // pred_fallthru
          _
      $region68: #{relative_transformer_forward.6} parent=5 // pred_fallthru
        _
    $region6: #{relative_transformer_forward.6} parent=1 // loop_footer
      %s20 = sadd.s32 1, %s16
    $region7: #{relative_transformer_forward.6} parent=1 // loop_footer_branch
      %15 = sbr.rel target = $region3
    $region8: #{relative_transformer_forward.6} parent=1 // loop_exit
      _
    %991 = vsyncpa [#allocation3], 1
    %s992 = scalar_lea.sflag [#allocation3], 1
    %993 = vsyncpa %s992, 1

// kernel: relative_transformer_forward.4
$region0: #{relative_transformer_forward.4}
  #allocation0 [shape = 'u32[]', space=smem, size = 0x4, offset = 0x4, fixed_abs, tag = 'smem constant byte address 0x4 - core index']
  #allocation1 [shape = 'u32[72,128]{1,0:T(1,128)}', space=vmem, size = 0x9000, scoped, tag = 'internal scratch']
  %s0 = inlined_call_operand.hbm [shape: f32[2,8,32], index: 0, kind: input, shape index: {}]
  %s1 = inlined_call_operand.vmem [shape: bf16[32,64], index: 1, kind: input, shape index: {}]
  %s2 = inlined_call_operand.vmem [shape: f32[4,8], index: 2, kind: input, shape index: {}]
  %s3 = inlined_call_operand.vmem [shape: f32[4,8], index: 3, kind: input, shape index: {}]
  %s4 = inlined_call_operand.vmem [shape: f32[8,4], index: 4, kind: input, shape index: {}]
  %s5 = inlined_call_operand.vmem [shape: f32[8,4], index: 5, kind: input, shape index: {}]
  %s6 = inlined_call_operand.vmem [shape: bf16[4,8], index: 6, kind: input, shape index: {}]
  %s7 = inlined_call_operand.vmem [shape: bf16[4,8], index: 7, kind: input, shape index: {}]
  %s8 = inlined_call_operand.vmem [shape: f32[2,1,8], index: 8, kind: input, shape index: {}]
  %s9 = inlined_call_operand.vmem [shape: f32[2,8,32], index: 9, kind: output, shape index: {}]
  %s10 = sld [smem:[#allocation0]]
  $region73: #{relative_transformer_forward.4} parent=0
    _
  %s12 = ssub.s32 1, %s10
  %s13 = scalar_select 0, %s12, %s10
  $region1: #{relative_transformer_forward.4} parent=0
    #allocation2 [shape = 'u8[8192]{0}', space=vmem, size = 0x2000, scoped, tag = 'input window, operand 0']
    #allocation3 [shape = 's32[2]{0}', space=sflag, size = 0x8, scoped, tag = 'scoped memory for relative_transformer_forward.4']
    %14 = vsyncpa [#allocation3], 0
    %s15 = scalar_lea.sflag [#allocation3], 1
    %16 = vsyncpa %s15, 0
    loop: start=0, step=1, limit=4
    $region2: #{relative_transformer_forward.4} parent=1 // loop_pre_header
      _
    $region3: #{relative_transformer_forward.4} parent=1 // loop_header
      %s18 = sphi 0, %s22
      %p19 = scmp.ge.s32.totalorder %s18, 4
      %s28 = sphi 0, %s30
      %s31 = sphi 0, %s28
      %s32 = sphi 0, %s31
      %s48 = sphi 0, %s32
      %s52 = sphi 0, %s52
      %s54 = sphi 0, %s52
      %s55 = sphi 0, %s54
      %s69 = sphi 0, %s55
      %s73 = sphi 0, %s73
      %s75 = sphi 0, %s73
      %s76 = sphi 0, %s75
      %s90 = sphi 0, %s76
      %s94 = sphi 0, %s94
      %s96 = sphi 0, %s94
      %s97 = sphi 0, %s96
      %s111 = sphi 0, %s97
      %s115 = sphi 0, %s115
      %s117 = sphi 0, %s115
      %s118 = sphi 0, %s117
      %s132 = sphi 0, %s118
      %s136 = sphi 0, %s136
      %s138 = sphi 0, %s136
      %s139 = sphi 0, %s138
      %s153 = sphi 0, %s139
      %s157 = sphi 0, %s157
      %s159 = sphi 0, %s157
      %s160 = sphi 0, %s159
      %s174 = sphi 0, %s160
      %s178 = sphi 0, %s178
      %s180 = sphi 0, %s178
      %s181 = sphi 0, %s180
      %s195 = sphi 0, %s181
      %s201 = sphi 0, %s203
      %s204 = sphi 0, %s201
      %s205 = sphi 0, %s204
      %s221 = sphi 0, %s205
      %s227 = sphi 0, %s229
      %s230 = sphi 0, %s227
      %s231 = sphi 0, %s230
      %s247 = sphi 0, %s231
    $region4: #{relative_transformer_forward.4} parent=1 // loop_header_branch
      %21 = sbr.rel (%p19) target = $region8
    $region5: #{relative_transformer_forward.4} parent=1 // loop_body
      %s23 = ssub.s32 %s18, 1
      %s24 = ssub.s32 %s18, 2
      %s25 = sadd.s32 %s18, 1
      %s26 = ssub.s32 %s18, %s25
      %p27 = scmp.eq.s32.totalorder %s26, 0
      %s29 = sadd.s32 %s28, 1
      %s30 = scalar_select %p27, %s28, %s29
      %p33 = pneg %p27
      %p34 = scmp.eq.s32.totalorder %s18, 1
      %p35 = por %p33, %p34
      %p36 = scmp.ne.s32.totalorder %s28, %s31
      %p37 = scmp.eq.s32.totalorder %s18, 0
      %p38 = por %p36, %p37
      %p39 = scmp.ne.s32.totalorder %s28, %s31
      %p40 = scmp.eq.s32.totalorder %s23, 1
      %p41 = por %p39, %p40
      %p42 = scmp.ne.s32.totalorder %s31, %s32
      %p43 = scmp.eq.s32.totalorder %s23, 0
      %p44 = por %p42, %p43
      %p45 = scmp.ne.s32.totalorder %s31, %s32
      %p46 = scmp.eq.s32.totalorder %s24, 1
      %p47 = por %p45, %p46
      %p49 = scmp.ne.s32.totalorder %s32, %s48
      %p50 = scmp.eq.s32.totalorder %s24, 0
      %p51 = por %p49, %p50
      %s53 = sadd.s32 %s52, 1
      %p56 = scmp.eq.s32.totalorder %s18, 1
      %p57 = scmp.ne.s32.totalorder %s52, %s54
      %p58 = scmp.eq.s32.totalorder %s18, 0
      %p59 = por %p57, %p58
      %p60 = scmp.ne.s32.totalorder %s52, %s54
      %p61 = scmp.eq.s32.totalorder %s23, 1
      %p62 = por %p60, %p61
      %p63 = scmp.ne.s32.totalorder %s54, %s55
      %p64 = scmp.eq.s32.totalorder %s23, 0
      %p65 = por %p63, %p64
      %p66 = scmp.ne.s32.totalorder %s54, %s55
      %p67 = scmp.eq.s32.totalorder %s24, 1
      %p68 = por %p66, %p67
      %p70 = scmp.ne.s32.totalorder %s55, %s69
      %p71 = scmp.eq.s32.totalorder %s24, 0
      %p72 = por %p70, %p71
      %s74 = sadd.s32 %s73, 1
      %p77 = scmp.eq.s32.totalorder %s18, 1
      %p78 = scmp.ne.s32.totalorder %s73, %s75
      %p79 = scmp.eq.s32.totalorder %s18, 0
      %p80 = por %p78, %p79
      %p81 = scmp.ne.s32.totalorder %s73, %s75
      %p82 = scmp.eq.s32.totalorder %s23, 1
      %p83 = por %p81, %p82
      %p84 = scmp.ne.s32.totalorder %s75, %s76
      %p85 = scmp.eq.s32.totalorder %s23, 0
      %p86 = por %p84, %p85
      %p87 = scmp.ne.s32.totalorder %s75, %s76
      %p88 = scmp.eq.s32.totalorder %s24, 1
      %p89 = por %p87, %p88
      %p91 = scmp.ne.s32.totalorder %s76, %s90
      %p92 = scmp.eq.s32.totalorder %s24, 0
      %p93 = por %p91, %p92
      %s95 = sadd.s32 %s94, 1
      %p98 = scmp.eq.s32.totalorder %s18, 1
      %p99 = scmp.ne.s32.totalorder %s94, %s96
      %p100 = scmp.eq.s32.totalorder %s18, 0
      %p101 = por %p99, %p100
      %p102 = scmp.ne.s32.totalorder %s94, %s96
      %p103 = scmp.eq.s32.totalorder %s23, 1
      %p104 = por %p102, %p103
      %p105 = scmp.ne.s32.totalorder %s96, %s97
      %p106 = scmp.eq.s32.totalorder %s23, 0
      %p107 = por %p105, %p106
      %p108 = scmp.ne.s32.totalorder %s96, %s97
      %p109 = scmp.eq.s32.totalorder %s24, 1
      %p110 = por %p108, %p109
      %p112 = scmp.ne.s32.totalorder %s97, %s111
      %p113 = scmp.eq.s32.totalorder %s24, 0
      %p114 = por %p112, %p113
      %s116 = sadd.s32 %s115, 1
      %p119 = scmp.eq.s32.totalorder %s18, 1
      %p120 = scmp.ne.s32.totalorder %s115, %s117
      %p121 = scmp.eq.s32.totalorder %s18, 0
      %p122 = por %p120, %p121
      %p123 = scmp.ne.s32.totalorder %s115, %s117
      %p124 = scmp.eq.s32.totalorder %s23, 1
      %p125 = por %p123, %p124
      %p126 = scmp.ne.s32.totalorder %s117, %s118
      %p127 = scmp.eq.s32.totalorder %s23, 0
      %p128 = por %p126, %p127
      %p129 = scmp.ne.s32.totalorder %s117, %s118
      %p130 = scmp.eq.s32.totalorder %s24, 1
      %p131 = por %p129, %p130
      %p133 = scmp.ne.s32.totalorder %s118, %s132
      %p134 = scmp.eq.s32.totalorder %s24, 0
      %p135 = por %p133, %p134
      %s137 = sadd.s32 %s136, 1
      %p140 = scmp.eq.s32.totalorder %s18, 1
      %p141 = scmp.ne.s32.totalorder %s136, %s138
      %p142 = scmp.eq.s32.totalorder %s18, 0
      %p143 = por %p141, %p142
      %p144 = scmp.ne.s32.totalorder %s136, %s138
      %p145 = scmp.eq.s32.totalorder %s23, 1
      %p146 = por %p144, %p145
      %p147 = scmp.ne.s32.totalorder %s138, %s139
      %p148 = scmp.eq.s32.totalorder %s23, 0
      %p149 = por %p147, %p148
      %p150 = scmp.ne.s32.totalorder %s138, %s139
      %p151 = scmp.eq.s32.totalorder %s24, 1
      %p152 = por %p150, %p151
      %p154 = scmp.ne.s32.totalorder %s139, %s153
      %p155 = scmp.eq.s32.totalorder %s24, 0
      %p156 = por %p154, %p155
      %s158 = sadd.s32 %s157, 1
      %p161 = scmp.eq.s32.totalorder %s18, 1
      %p162 = scmp.ne.s32.totalorder %s157, %s159
      %p163 = scmp.eq.s32.totalorder %s18, 0
      %p164 = por %p162, %p163
      %p165 = scmp.ne.s32.totalorder %s157, %s159
      %p166 = scmp.eq.s32.totalorder %s23, 1
      %p167 = por %p165, %p166
      %p168 = scmp.ne.s32.totalorder %s159, %s160
      %p169 = scmp.eq.s32.totalorder %s23, 0
      %p170 = por %p168, %p169
      %p171 = scmp.ne.s32.totalorder %s159, %s160
      %p172 = scmp.eq.s32.totalorder %s24, 1
      %p173 = por %p171, %p172
      %p175 = scmp.ne.s32.totalorder %s160, %s174
      %p176 = scmp.eq.s32.totalorder %s24, 0
      %p177 = por %p175, %p176
      %s179 = sadd.s32 %s178, 1
      %p182 = scmp.eq.s32.totalorder %s18, 1
      %p183 = scmp.ne.s32.totalorder %s178, %s180
      %p184 = scmp.eq.s32.totalorder %s18, 0
      %p185 = por %p183, %p184
      %p186 = scmp.ne.s32.totalorder %s178, %s180
      %p187 = scmp.eq.s32.totalorder %s23, 1
      %p188 = por %p186, %p187
      %p189 = scmp.ne.s32.totalorder %s180, %s181
      %p190 = scmp.eq.s32.totalorder %s23, 0
      %p191 = por %p189, %p190
      %p192 = scmp.ne.s32.totalorder %s180, %s181
      %p193 = scmp.eq.s32.totalorder %s24, 1
      %p194 = por %p192, %p193
      %p196 = scmp.ne.s32.totalorder %s181, %s195
      %p197 = scmp.eq.s32.totalorder %s24, 0
      %p198 = por %p196, %p197
      %s199 = ssub.s32 %s18, %s25
      %p200 = scmp.eq.s32.totalorder %s199, 0
      %s202 = sadd.s32 %s201, 1
      %s203 = scalar_select %p200, %s201, %s202
      %p206 = pneg %p200
      %p207 = scmp.eq.s32.totalorder %s18, 1
      %p208 = por %p206, %p207
      %p209 = scmp.ne.s32.totalorder %s201, %s204
      %p210 = scmp.eq.s32.totalorder %s18, 0
      %p211 = por %p209, %p210
      %p212 = scmp.ne.s32.totalorder %s201, %s204
      %p213 = scmp.eq.s32.totalorder %s23, 1
      %p214 = por %p212, %p213
      %p215 = scmp.ne.s32.totalorder %s204, %s205
      %p216 = scmp.eq.s32.totalorder %s23, 0
      %p217 = por %p215, %p216
      %p218 = scmp.ne.s32.totalorder %s204, %s205
      %p219 = scmp.eq.s32.totalorder %s24, 1
      %p220 = por %p218, %p219
      %p222 = scmp.ne.s32.totalorder %s205, %s221
      %p223 = scmp.eq.s32.totalorder %s24, 0
      %p224 = por %p222, %p223
      %s225 = ssub.s32 %s18, %s25
      %p226 = scmp.eq.s32.totalorder %s225, 0
      %s228 = sadd.s32 %s227, 1
      %s229 = scalar_select %p226, %s227, %s228
      %p232 = pneg %p226
      %p233 = scmp.eq.s32.totalorder %s18, 1
      %p234 = por %p232, %p233
      %p235 = scmp.ne.s32.totalorder %s227, %s230
      %p236 = scmp.eq.s32.totalorder %s18, 0
      %p237 = por %p235, %p236
      %p238 = scmp.ne.s32.totalorder %s227, %s230
      %p239 = scmp.eq.s32.totalorder %s23, 1
      %p240 = por %p238, %p239
      %p241 = scmp.ne.s32.totalorder %s230, %s231
      %p242 = scmp.eq.s32.totalorder %s23, 0
      %p243 = por %p241, %p242
      %p244 = scmp.ne.s32.totalorder %s230, %s231
      %p245 = scmp.eq.s32.totalorder %s24, 1
      %p246 = por %p244, %p245
      %p248 = scmp.ne.s32.totalorder %s231, %s247
      %p249 = scmp.eq.s32.totalorder %s24, 0
      %p250 = por %p248, %p249
      %p251 = scmp.le.s32.totalorder 1, %s18
      %p252 = scmp.lt.s32.totalorder %s18, 3
      %p253 = pnand %p251, %p252
      %p254 = pneg %p253
      // Predicated region
      $region9: #{relative_transformer_forward.4} parent=5 // pred_check
        _
      $region10: #{relative_transformer_forward.4} parent=5 // pred_check_branch
        %256 = sbr.rel (%p253) target = $region12
      $region11: #{relative_transformer_forward.4} parent=5 // pred_region
        %s257 = ssub.s32 %s18, 1
        // Predicated region
        $region13: #{relative_transformer_forward.4} parent=11 // pred_check
          %p258 = pneg %p65
        $region14: #{relative_transformer_forward.4} parent=11 // pred_check_branch
          %260 = sbr.rel (%p258) target = $region16
        $region15: #{relative_transformer_forward.4} parent=11 // pred_region
          _
        $region16: #{relative_transformer_forward.4} parent=11 // pred_fallthru
          _
        // Predicated region
        $region17: #{relative_transformer_forward.4} parent=11 // pred_check
          %p261 = pneg %p86
        $region18: #{relative_transformer_forward.4} parent=11 // pred_check_branch
          %263 = sbr.rel (%p261) target = $region20
        $region19: #{relative_transformer_forward.4} parent=11 // pred_region
          _
        $region20: #{relative_transformer_forward.4} parent=11 // pred_fallthru
          _
        // Predicated region
        $region21: #{relative_transformer_forward.4} parent=11 // pred_check
          %p264 = pneg %p107
        $region22: #{relative_transformer_forward.4} parent=11 // pred_check_branch
          %266 = sbr.rel (%p264) target = $region24
        $region23: #{relative_transformer_forward.4} parent=11 // pred_region
          _
        $region24: #{relative_transformer_forward.4} parent=11 // pred_fallthru
          _
        // Predicated region
        $region25: #{relative_transformer_forward.4} parent=11 // pred_check
          %p267 = pneg %p128
        $region26: #{relative_transformer_forward.4} parent=11 // pred_check_branch
          %269 = sbr.rel (%p267) target = $region28
        $region27: #{relative_transformer_forward.4} parent=11 // pred_region
          _
        $region28: #{relative_transformer_forward.4} parent=11 // pred_fallthru
          _
        // Predicated region
        $region29: #{relative_transformer_forward.4} parent=11 // pred_check
          %p270 = pneg %p149
        $region30: #{relative_transformer_forward.4} parent=11 // pred_check_branch
          %272 = sbr.rel (%p270) target = $region32
        $region31: #{relative_transformer_forward.4} parent=11 // pred_region
          _
        $region32: #{relative_transformer_forward.4} parent=11 // pred_fallthru
          _
        // Predicated region
        $region33: #{relative_transformer_forward.4} parent=11 // pred_check
          %p273 = pneg %p170
        $region34: #{relative_transformer_forward.4} parent=11 // pred_check_branch
          %275 = sbr.rel (%p273) target = $region36
        $region35: #{relative_transformer_forward.4} parent=11 // pred_region
          _
        $region36: #{relative_transformer_forward.4} parent=11 // pred_fallthru
          _
        // Predicated region
        $region37: #{relative_transformer_forward.4} parent=11 // pred_check
          %p276 = pneg %p191
        $region38: #{relative_transformer_forward.4} parent=11 // pred_check_branch
          %278 = sbr.rel (%p276) target = $region40
        $region39: #{relative_transformer_forward.4} parent=11 // pred_region
          _
        $region40: #{relative_transformer_forward.4} parent=11 // pred_fallthru
          _
      $region12: #{relative_transformer_forward.4} parent=5 // pred_fallthru
        _
      %p279 = scmp.lt.s32.totalorder %s18, 2
      // Predicated region
      $region41: #{relative_transformer_forward.4} parent=5 // pred_check
        %p280 = pneg %p279
      $region42: #{relative_transformer_forward.4} parent=5 // pred_check_branch
        %282 = sbr.rel (%p280) target = $region44
      $region43: #{relative_transformer_forward.4} parent=5 // pred_region
        // Predicated region
        $region45: #{relative_transformer_forward.4} parent=43 // pred_check
          %p283 = pneg %p38
        $region46: #{relative_transformer_forward.4} parent=43 // pred_check_branch
          %285 = sbr.rel (%p283) target = $region48
        $region47: #{relative_transformer_forward.4} parent=43 // pred_region
          %s286 = sand.u32 %s28, 1
          %s287 = scalar_lea.sflag [#allocation3], %s286
          %s288 = sand.u32 %s28, 1
          %s289 = smul.addr %s288, 8
          %s290 = scalar_lea.vmem [#allocation2], %s289
          %292 = vsyncadd %s287, 0
          %s293 = smul.addr %s18, 8
          %s294 = scalar_lea.hbm %s0, %s293
          %s296 = sshll.u32 %s294, 4
          %s297 = int_to_ptr.hbm [resolvable:$true] %s296
          %s298 = sshll.u32 %s290, 4
          %s299 = int_to_ptr.vmem [resolvable:$true] %s298
          %301 = dma.hbm_to_vmem [thread:$0]  %s297, 128, %s299, %s287
        $region48: #{relative_transformer_forward.4} parent=43 // pred_fallthru
          _
        // Predicated region
        $region49: #{relative_transformer_forward.4} parent=43 // pred_check
          %p302 = pneg %p211
        $region50: #{relative_transformer_forward.4} parent=43 // pred_check_branch
          %304 = sbr.rel (%p302) target = $region52
        $region51: #{relative_transformer_forward.4} parent=43 // pred_region
          %p305 = scmp.lt.s32.totalorder %s18, 1
          %s306 = scalar_select %p305, %s18, 1
          %s307 = scalar_lea.vmem %s8, %s306
        $region52: #{relative_transformer_forward.4} parent=43 // pred_fallthru
          _
      $region44: #{relative_transformer_forward.4} parent=5 // pred_fallthru
        _
      %p308 = scmp.le.s32.totalorder 1, %s18
      %p309 = scmp.lt.s32.totalorder %s18, 3
      %p310 = pnand %p308, %p309
      %p311 = pneg %p310
      // Predicated region
      $region53: #{relative_transformer_forward.4} parent=5 // pred_check
        _
      $region54: #{relative_transformer_forward.4} parent=5 // pred_check_branch
        %313 = sbr.rel (%p310) target = $region56
      $region55: #{relative_transformer_forward.4} parent=5 // pred_region
        %s314 = ssub.s32 %s18, 1
        %s315 = sand.u32 %s31, 1
        %s316 = scalar_lea.sflag [#allocation3], %s315
        %s317 = sand.u32 %s31, 1
        %s318 = smul.addr %s317, 8
        %s319 = scalar_lea.vmem [#allocation2], %s318
        // Predicated region
        $region57: #{relative_transformer_forward.4} parent=55 // pred_check
          %p320 = pneg %p44
        $region58: #{relative_transformer_forward.4} parent=55 // pred_check_branch
          %322 = sbr.rel (%p320) target = $region60
        $region59: #{relative_transformer_forward.4} parent=55 // pred_region
          %324 = dma.done %s316, 128
        $region60: #{relative_transformer_forward.4} parent=55 // pred_fallthru
          _
        %s325 = sand.u32 %s31, 1
        %s326 = scalar_lea.sflag [#allocation3], %s325
        %s327 = sand.u32 %s31, 1
        %s328 = smul.addr %s327, 8
        %s329 = scalar_lea.vmem [#allocation2], %s328
        %p330 = pneg %p44
        %p331 = pneg %p41
        %p332 = pneg %p65
        %p333 = pneg %p62
        %p334 = pneg %p86
        %p335 = pneg %p83
        %p336 = pneg %p107
        %p337 = pneg %p104
        %p338 = pneg %p128
        %p339 = pneg %p125
        %p340 = pneg %p149
        %p341 = pneg %p146
        %p342 = pneg %p170
        %p343 = pneg %p167
        %p344 = pneg %p191
        %p345 = pneg %p188
        %p346 = scmp.lt.s32.totalorder %s23, 1
        %s347 = scalar_select %p346, %s23, 1
        %s348 = scalar_lea.vmem %s8, %s347
        %p349 = pneg %p217
        %p350 = pneg %p214
        %p351 = pneg %p243
        %p352 = pneg %p240
        %p353 = scmp.lt.s32.totalorder %s23, 1
        %s354 = scalar_select %p353, %s23, 1
        %s355 = smul.addr %s354, 8
        %s356 = scalar_lea.vmem %s9, %s355
        %p357 = scmp.lt.s32.totalorder %s23, 1
        %s358 = scalar_select %p357, %s23, 1
        %s359 = scalar_lea.vmem %s8, %s358
        %p360 = scmp.lt.s32.totalorder %s23, 1
        %s361 = scalar_select %p360, %s23, 1
        %s362 = smul.addr %s361, 8
        %s363 = scalar_lea.vmem %s9, %s362
        %v365 = vld [vmem:[%s319] sm:$0xff]
        %v366 = vpack.c.bf16 %v365, %v365
        %v367 = vld [vmem:[%s1] sm:$0xf]
        %v368 = vld [vmem:[%s1 + $0x4] sm:$0xf]
        %v369 = vld [vmem:[%s1 + $0x8] sm:$0xf]
        %v370 = vld [vmem:[%s1 + $0xc] sm:$0xf]
        %v375 = vunpack.c.l.b16 %v367
        %v376 = vunpack.c.l.b16 %v368
        %v377 = vunpack.c.l.b16 %v369
        %v378 = vunpack.c.l.b16 %v370
        %v379 = vpack.c.b16 %v376, %v375
        %v380 = vpack.c.b16 %v378, %v377
        %vm383 = vcmask 261120
        %v385 = vsel %vm383, %v366, 0
        %387 = vmatpush.bf16.msra.mxu0 0
        %388 = vmatpush.bf16.msra.mxu0 0
        %389 = vmatpush.bf16.msra.mxu0 0
        %390 = vmatpush.bf16.msra.mxu0 0
        %391 = vmatpush.bf16.msra.mxu0 0
        %392 = vmatpush.bf16.msra.mxu0 0
        %393 = vmatpush.bf16.msra.mxu0 %v380
        %394 = vmatpush.bf16.msra.mxu0 %v379
        %395 = vmatmul.bf16.gmra.mxu0 %v385
        %v396 = vpop.f32.mrf.mxu0
        %v397 = vadd.f32 0.0, %v396
        %v398 = vpop.f32.mrf.mxu0
        %399 = vdwg.mxu0
        %v400 = vld [vmem:[%s359] sm:$0x1]
        %v401 = vld [vmem:[%s4] sm:$0xff]
        %v402 = vld [vmem:[%s5] sm:$0xff]
        %v403 = vld [vmem:[%s6] sm:$0x3]
        %v404 = vld [vmem:[%s7] sm:$0x3]
        %v405 = vld [vmem:[%s2] sm:$0x1]
        %v406 = vld [vmem:[%s3] sm:$0x1]
        %v407 = vperm.slane %v405, 0
        %v408 = vadd.f32 %v397, %v407
        %v409 = vpack.c.bf16 %v408, %v408
        %v410 = vperm.slane %v406, 0
        %v411 = vadd.f32 %v397, %v410
        %v412 = vmul.f32 %v411, %v401
        %414 = vrot.lane.b32.xlu0 %v402, 4
        %v415 = vpop.permute.xlu0 %414
        %v417 = vmul.f32 %v411, %v415
        %419 = vrot.lane.b32.xlu0 %v417, 124
        %v420 = vpop.permute.xlu0 %419
        %v422 = vadd.f32 %v412, %v420
        %v423 = vpack.c.bf16 %v422, %v422
        %425 = vrot.lane.b32.xlu0 %v401, 4
        %v426 = vpop.permute.xlu0 %425
        %v428 = vmul.f32 %v411, %v426
        %v429 = vmul.f32 %v411, %v402
        %431 = vrot.lane.b32.xlu0 %v429, 4
        %v432 = vpop.permute.xlu0 %431
        %v434 = vsub.f32 %v428, %v432
        %v435 = vpack.c.bf16 %v434, %v434
        %437 = vrot.lane.b32.xlu0 %v435, 124
        %v438 = vpop.permute.xlu0 %437
        %vm439 = vcmask 31744
        %v441 = vsel %vm439, %v438, 0
        %vm443 = vcmask 1041408
        %v445 = vsel %vm443, %v404, 0
        %447 = vmatpush.bf16.msra.mxu0 0
        %448 = vmatpush.bf16.msra.mxu0 0
        %449 = vmatpush.bf16.msra.mxu0 0
        %450 = vmatpush.bf16.msra.mxu0 0
        %451 = vmatpush.bf16.msra.mxu0 0
        %452 = vmatpush.bf16.msra.mxu0 0
        %453 = vmatpush.bf16.msra.mxu0 0
        %454 = vmatpush.bf16.msra.mxu0 %v445
        %455 = vmatmul.bf16.gmra.mxu0 %v441
        %v456 = vpop.f32.mrf.mxu0
        %v457 = vadd.f32 0.0, %v456
        %v458 = vpop.f32.mrf.mxu0
        %459 = vdwg.mxu0
        %v461 = vsel %vm439, %v423, 0
        %v464 = vsel %vm443, %v403, 0
        %466 = vmatpush.bf16.msra.mxu0 0
        %467 = vmatpush.bf16.msra.mxu0 0
        %468 = vmatpush.bf16.msra.mxu0 0
        %469 = vmatpush.bf16.msra.mxu0 0
        %470 = vmatpush.bf16.msra.mxu0 0
        %471 = vmatpush.bf16.msra.mxu0 0
        %472 = vmatpush.bf16.msra.mxu0 0
        %473 = vmatpush.bf16.msra.mxu0 %v464
        %474 = vmatmul.bf16.gmra.mxu0 %v461
        %v475 = vpop.f32.mrf.mxu0
        %v476 = vadd.f32 %v457, %v475
        %v477 = vpop.f32.mrf.mxu0
        %478 = vdwg.mxu0
        %vm479 = vcmask 64512
        %v481 = vsel %vm479, %v409, 0
        %v483 = vsel %vm479, %v366, 0
        %485 = vmatpush.bf16.xpose.msra.mxu0 0
        %486 = vmatpush.bf16.xpose.msra.mxu0 0
        %487 = vmatpush.bf16.xpose.msra.mxu0 0
        %488 = vmatpush.bf16.xpose.msra.mxu0 0
        %489 = vmatpush.bf16.xpose.msra.mxu0 0
        %490 = vmatpush.bf16.xpose.msra.mxu0 0
        %491 = vmatpush.bf16.xpose.msra.mxu0 0
        %492 = vmatpush.bf16.xpose.msra.mxu0 %v483
        %493 = vmatmul.bf16.gmra.mxu0 %v481
        %v494 = vpop.f32.mrf.mxu0
        %v495 = vadd.f32 %v476, %v494
        %v496 = vpop.f32.mrf.mxu0
        %497 = vdwg.mxu0
        %v499 = vperm.slane %v400, 0
        %v501 = vadd.f32 %v495, %v499
        %v502 = vsel %vm479, %v501, -inf
        %503 = vmax.xlane.f32.xlu0 %v502
        %v504 = vpop.xlane.xlu0 %503
        %v505 = vsub.f32 %v501, %v504
        %v506 = vmul.f32 %v505, 1.442695
        %v507 = vpow.pop %v506
        %v508 = vsel %vm479, %v507, 0.0
        %509 = vadd.xlane.f32.xlu0 %v508
        %v510 = vpop.xlane.xlu0 %509
        %v511 = vrcp.pop %v510
        %v512 = vmul.f32 %v507, %v511
        %v513 = vpack.c.bf16 %v512, %v512
        %v514 = vpack.c.bf16 %v397, %v397
        %516 = vrot.lane.b32.xlu0 %v514, 96
        %v517 = vpop.permute.xlu0 %516
        %v519 = vsel %vm479, %v513, 0
        %vm521 = vcmask 1043456
        %v523 = vsel %vm521, %v517, 0
        %525 = vmatpush.bf16.msra.mxu0 0
        %526 = vmatpush.bf16.msra.mxu0 0
        %527 = vmatpush.bf16.msra.mxu0 0
        %528 = vmatpush.bf16.msra.mxu0 0
        %529 = vmatpush.bf16.msra.mxu0 0
        %530 = vmatpush.bf16.msra.mxu0 0
        %531 = vmatpush.bf16.msra.mxu0 0
        %532 = vmatpush.bf16.msra.mxu0 %v523
        %533 = vmatmul.bf16.gmra.mxu0 %v519
        %v534 = vpop.f32.mrf.mxu0
        %v535 = vadd.f32 0.0, %v534
        %v536 = vpop.f32.mrf.mxu0
        %537 = vdwg.mxu0
        %538 = vst.msk [vmem:[%s363] sm:$0xff] %vm479, %v535
        %v539 = vld [vmem:[%s2 + $0x1] sm:$0x1]
        %v540 = vld [vmem:[%s3 + $0x1] sm:$0x1]
        %v541 = vperm.slane %v539, 0
        %543 = vrot.lane.b32.xlu0 %v541, 8
        %v544 = vpop.permute.xlu0 %543
        %v546 = vadd.f32 %v397, %v544
        %v547 = vpack.c.bf16 %v546, %v546
        %v548 = vperm.slane %v540, 0
        %550 = vrot.lane.b32.xlu0 %v548, 8
        %v551 = vpop.permute.xlu0 %550
        %v553 = vadd.f32 %v397, %v551
        %554 = vrot.lane.b32.xlu0 %v401, 8
        %v555 = vpop.permute.xlu0 %554
        %v557 = vmul.f32 %v553, %v555
        %558 = vrot.lane.b32.xlu0 %v402, 12
        %v559 = vpop.permute.xlu0 %558
        %v561 = vmul.f32 %v553, %v559
        %563 = vrot.lane.b32.xlu0 %v561, 124
        %v564 = vpop.permute.xlu0 %563
        %v566 = vadd.f32 %v557, %v564
        %v567 = vpack.c.bf16 %v566, %v566
        %568 = vrot.lane.b32.xlu0 %v401, 12
        %v569 = vpop.permute.xlu0 %568
        %v571 = vmul.f32 %v553, %v569
        %572 = vrot.lane.b32.xlu0 %v402, 8
        %v573 = vpop.permute.xlu0 %572
        %v575 = vmul.f32 %v553, %v573
        %577 = vrot.lane.b32.xlu0 %v575, 4
        %v578 = vpop.permute.xlu0 %577
        %v580 = vsub.f32 %v571, %v578
        %v581 = vpack.c.bf16 %v580, %v580
        %583 = vrot.lane.b32.xlu0 %v581, 116
        %v584 = vpop.permute.xlu0 %583
        %v586 = vsel %vm439, %v584, 0
        %588 = vmatpush.bf16.msra.mxu0 0
        %589 = vmatpush.bf16.msra.mxu0 0
        %590 = vmatpush.bf16.msra.mxu0 0
        %591 = vmatpush.bf16.msra.mxu0 0
        %592 = vmatpush.bf16.msra.mxu0 0
        %593 = vmatpush.bf16.msra.mxu0 0
        %594 = vmatpush.bf16.msra.mxu0 0
        %595 = vmatpush.bf16.msra.mxu0 %v445
        %596 = vmatmul.bf16.gmra.mxu0 %v586
        %v597 = vpop.f32.mrf.mxu0
        %v598 = vadd.f32 0.0, %v597
        %v599 = vpop.f32.mrf.mxu0
        %600 = vdwg.mxu0
        %602 = vrot.lane.b32.xlu0 %v567, 120
        %v603 = vpop.permute.xlu0 %602
        %v605 = vsel %vm439, %v603, 0
        %607 = vmatpush.bf16.msra.mxu0 0
        %608 = vmatpush.bf16.msra.mxu0 0
        %609 = vmatpush.bf16.msra.mxu0 0
        %610 = vmatpush.bf16.msra.mxu0 0
        %611 = vmatpush.bf16.msra.mxu0 0
        %612 = vmatpush.bf16.msra.mxu0 0
        %613 = vmatpush.bf16.msra.mxu0 0
        %614 = vmatpush.bf16.msra.mxu0 %v464
        %615 = vmatmul.bf16.gmra.mxu0 %v605
        %v616 = vpop.f32.mrf.mxu0
        %v617 = vadd.f32 %v598, %v616
        %v618 = vpop.f32.mrf.mxu0
        %619 = vdwg.mxu0
        %621 = vrot.lane.b32.xlu0 %v547, 120
        %v622 = vpop.permute.xlu0 %621
        %v624 = vunpack.c.l.b16 %v366
        %v625 = vpack.c.b16 %v624, %v624
        %626 = vrot.lane.b32.xlu0 %v625, 120
        %v627 = vpop.permute.xlu0 %626
        %v629 = vsel %vm479, %v622, 0
        %v632 = vsel %vm479, %v627, 0
        %634 = vmatpush.bf16.xpose.msra.mxu0 0
        %635 = vmatpush.bf16.xpose.msra.mxu0 0
        %636 = vmatpush.bf16.xpose.msra.mxu0 0
        %637 = vmatpush.bf16.xpose.msra.mxu0 0
        %638 = vmatpush.bf16.xpose.msra.mxu0 0
        %639 = vmatpush.bf16.xpose.msra.mxu0 0
        %640 = vmatpush.bf16.xpose.msra.mxu0 0
        %641 = vmatpush.bf16.xpose.msra.mxu0 %v632
        %642 = vmatmul.bf16.gmra.mxu0 %v629
        %v643 = vpop.f32.mrf.mxu0
        %v644 = vadd.f32 %v617, %v643
        %v645 = vpop.f32.mrf.mxu0
        %646 = vdwg.mxu0
        %v647 = vadd.f32 %v644, %v499
        %v648 = vsel %vm479, %v647, -inf
        %649 = vmax.xlane.f32.xlu0 %v648
        %v650 = vpop.xlane.xlu0 %649
        %v651 = vsub.f32 %v647, %v650
        %v652 = vmul.f32 %v651, 1.442695
        %v653 = vpow.pop %v652
        %v654 = vsel %vm479, %v653, 0.0
        %655 = vadd.xlane.f32.xlu0 %v654
        %v656 = vpop.xlane.xlu0 %655
        %v657 = vrcp.pop %v656
        %v658 = vmul.f32 %v653, %v657
        %v659 = vpack.c.bf16 %v658, %v658
        %660 = vrot.lane.b32.xlu0 %v514, 88
        %v661 = vpop.permute.xlu0 %660
        %v663 = vsel %vm479, %v659, 0
        %v666 = vsel %vm521, %v661, 0
        %668 = vmatpush.bf16.msra.mxu0 0
        %669 = vmatpush.bf16.msra.mxu0 0
        %670 = vmatpush.bf16.msra.mxu0 0
        %671 = vmatpush.bf16.msra.mxu0 0
        %672 = vmatpush.bf16.msra.mxu0 0
        %673 = vmatpush.bf16.msra.mxu0 0
        %674 = vmatpush.bf16.msra.mxu0 0
        %675 = vmatpush.bf16.msra.mxu0 %v666
        %676 = vmatmul.bf16.gmra.mxu0 %v663
        %v677 = vpop.f32.mrf.mxu0
        %v678 = vadd.f32 0.0, %v677
        %v679 = vpop.f32.mrf.mxu0
        %680 = vdwg.mxu0
        %682 = vrot.lane.b32.xlu0 %v678, 8
        %v683 = vpop.permute.xlu0 %682
        %vm685 = vcmask 130112
        %686 = vst.msk [vmem:[%s363] sm:$0xff] %vm685, %v683
        %v687 = vld [vmem:[%s2 + $0x2] sm:$0x1]
        %v688 = vld [vmem:[%s3 + $0x2] sm:$0x1]
        %v689 = vperm.slane %v687, 0
        %691 = vrot.lane.b32.xlu0 %v689, 16
        %v692 = vpop.permute.xlu0 %691
        %v694 = vadd.f32 %v397, %v692
        %v695 = vpack.c.bf16 %v694, %v694
        %v696 = vperm.slane %v688, 0
        %698 = vrot.lane.b32.xlu0 %v696, 16
        %v699 = vpop.permute.xlu0 %698
        %v701 = vadd.f32 %v397, %v699
        %702 = vrot.lane.b32.xlu0 %v401, 16
        %v703 = vpop.permute.xlu0 %702
        %v705 = vmul.f32 %v701, %v703
        %706 = vrot.lane.b32.xlu0 %v402, 20
        %v707 = vpop.permute.xlu0 %706
        %v709 = vmul.f32 %v701, %v707
        %711 = vrot.lane.b32.xlu0 %v709, 124
        %v712 = vpop.permute.xlu0 %711
        %v714 = vadd.f32 %v705, %v712
        %v715 = vpack.c.bf16 %v714, %v714
        %716 = vrot.lane.b32.xlu0 %v401, 20
        %v717 = vpop.permute.xlu0 %716
        %v719 = vmul.f32 %v701, %v717
        %720 = vrot.lane.b32.xlu0 %v402, 16
        %v721 = vpop.permute.xlu0 %720
        %v723 = vmul.f32 %v701, %v721
        %725 = vrot.lane.b32.xlu0 %v723, 4
        %v726 = vpop.permute.xlu0 %725
        %v728 = vsub.f32 %v719, %v726
        %v729 = vpack.c.bf16 %v728, %v728
        %731 = vrot.lane.b32.xlu0 %v729, 108
        %v732 = vpop.permute.xlu0 %731
        %v734 = vsel %vm439, %v732, 0
        %736 = vmatpush.bf16.msra.mxu0 0
        %737 = vmatpush.bf16.msra.mxu0 0
        %738 = vmatpush.bf16.msra.mxu0 0
        %739 = vmatpush.bf16.msra.mxu0 0
        %740 = vmatpush.bf16.msra.mxu0 0
        %741 = vmatpush.bf16.msra.mxu0 0
        %742 = vmatpush.bf16.msra.mxu0 0
        %743 = vmatpush.bf16.msra.mxu0 %v445
        %744 = vmatmul.bf16.gmra.mxu0 %v734
        %v745 = vpop.f32.mrf.mxu0
        %v746 = vadd.f32 0.0, %v745
        %v747 = vpop.f32.mrf.mxu0
        %748 = vdwg.mxu0
        %750 = vrot.lane.b32.xlu0 %v715, 112
        %v751 = vpop.permute.xlu0 %750
        %v753 = vsel %vm439, %v751, 0
        %755 = vmatpush.bf16.msra.mxu0 0
        %756 = vmatpush.bf16.msra.mxu0 0
        %757 = vmatpush.bf16.msra.mxu0 0
        %758 = vmatpush.bf16.msra.mxu0 0
        %759 = vmatpush.bf16.msra.mxu0 0
        %760 = vmatpush.bf16.msra.mxu0 0
        %761 = vmatpush.bf16.msra.mxu0 0
        %762 = vmatpush.bf16.msra.mxu0 %v464
        %763 = vmatmul.bf16.gmra.mxu0 %v753
        %v764 = vpop.f32.mrf.mxu0
        %v765 = vadd.f32 %v746, %v764
        %v766 = vpop.f32.mrf.mxu0
        %767 = vdwg.mxu0
        %769 = vrot.lane.b32.xlu0 %v695, 112
        %v770 = vpop.permute.xlu0 %769
        %771 = vrot.lane.b32.xlu0 %v625, 112
        %v772 = vpop.permute.xlu0 %771
        %v774 = vsel %vm479, %v770, 0
        %v777 = vsel %vm479, %v772, 0
        %779 = vmatpush.bf16.xpose.msra.mxu0 0
        %780 = vmatpush.bf16.xpose.msra.mxu0 0
        %781 = vmatpush.bf16.xpose.msra.mxu0 0
        %782 = vmatpush.bf16.xpose.msra.mxu0 0
        %783 = vmatpush.bf16.xpose.msra.mxu0 0
        %784 = vmatpush.bf16.xpose.msra.mxu0 0
        %785 = vmatpush.bf16.xpose.msra.mxu0 0
        %786 = vmatpush.bf16.xpose.msra.mxu0 %v777
        %787 = vmatmul.bf16.gmra.mxu0 %v774
        %v788 = vpop.f32.mrf.mxu0
        %v789 = vadd.f32 %v765, %v788
        %v790 = vpop.f32.mrf.mxu0
        %791 = vdwg.mxu0
        %v792 = vadd.f32 %v789, %v499
        %v793 = vsel %vm479, %v792, -inf
        %794 = vmax.xlane.f32.xlu0 %v793
        %v795 = vpop.xlane.xlu0 %794
        %v796 = vsub.f32 %v792, %v795
        %v797 = vmul.f32 %v796, 1.442695
        %v798 = vpow.pop %v797
        %v799 = vsel %vm479, %v798, 0.0
        %800 = vadd.xlane.f32.xlu0 %v799
        %v801 = vpop.xlane.xlu0 %800
        %v802 = vrcp.pop %v801
        %v803 = vmul.f32 %v798, %v802
        %v804 = vpack.c.bf16 %v803, %v803
        %805 = vrot.lane.b32.xlu0 %v514, 80
        %v806 = vpop.permute.xlu0 %805
        %v808 = vsel %vm479, %v804, 0
        %v811 = vsel %vm521, %v806, 0
        %813 = vmatpush.bf16.msra.mxu0 0
        %814 = vmatpush.bf16.msra.mxu0 0
        %815 = vmatpush.bf16.msra.mxu0 0
        %816 = vmatpush.bf16.msra.mxu0 0
        %817 = vmatpush.bf16.msra.mxu0 0
        %818 = vmatpush.bf16.msra.mxu0 0
        %819 = vmatpush.bf16.msra.mxu0 0
        %820 = vmatpush.bf16.msra.mxu0 %v811
        %821 = vmatmul.bf16.gmra.mxu0 %v808
        %v822 = vpop.f32.mrf.mxu0
        %v823 = vadd.f32 0.0, %v822
        %v824 = vpop.f32.mrf.mxu0
        %825 = vdwg.mxu0
        %827 = vrot.lane.b32.xlu0 %v823, 16
        %v828 = vpop.permute.xlu0 %827
        %vm830 = vcmask 195712
        %831 = vst.msk [vmem:[%s363] sm:$0xff] %vm830, %v828
        %v832 = vld [vmem:[%s2 + $0x3] sm:$0x1]
        %v833 = vld [vmem:[%s3 + $0x3] sm:$0x1]
        %v834 = vperm.slane %v832, 0
        %836 = vrot.lane.b32.xlu0 %v834, 24
        %v837 = vpop.permute.xlu0 %836
        %v839 = vadd.f32 %v397, %v837
        %v840 = vpack.c.bf16 %v839, %v839
        %v841 = vperm.slane %v833, 0
        %843 = vrot.lane.b32.xlu0 %v841, 24
        %v844 = vpop.permute.xlu0 %843
        %v846 = vadd.f32 %v397, %v844
        %847 = vrot.lane.b32.xlu0 %v401, 24
        %v848 = vpop.permute.xlu0 %847
        %v850 = vmul.f32 %v846, %v848
        %851 = vrot.lane.b32.xlu0 %v402, 28
        %v852 = vpop.permute.xlu0 %851
        %v854 = vmul.f32 %v846, %v852
        %856 = vrot.lane.b32.xlu0 %v854, 124
        %v857 = vpop.permute.xlu0 %856
        %v859 = vadd.f32 %v850, %v857
        %v860 = vpack.c.bf16 %v859, %v859
        %861 = vrot.lane.b32.xlu0 %v401, 28
        %v862 = vpop.permute.xlu0 %861
        %v864 = vmul.f32 %v846, %v862
        %865 = vrot.lane.b32.xlu0 %v402, 24
        %v866 = vpop.permute.xlu0 %865
        %v868 = vmul.f32 %v846, %v866
        %870 = vrot.lane.b32.xlu0 %v868, 4
        %v871 = vpop.permute.xlu0 %870
        %v873 = vsub.f32 %v864, %v871
        %v874 = vpack.c.bf16 %v873, %v873
        %876 = vrot.lane.b32.xlu0 %v874, 100
        %v877 = vpop.permute.xlu0 %876
        %v879 = vsel %vm439, %v877, 0
        %881 = vmatpush.bf16.msra.mxu0 0
        %882 = vmatpush.bf16.msra.mxu0 0
        %883 = vmatpush.bf16.msra.mxu0 0
        %884 = vmatpush.bf16.msra.mxu0 0
        %885 = vmatpush.bf16.msra.mxu0 0
        %886 = vmatpush.bf16.msra.mxu0 0
        %887 = vmatpush.bf16.msra.mxu0 0
        %888 = vmatpush.bf16.msra.mxu0 %v445
        %889 = vmatmul.bf16.gmra.mxu0 %v879
        %v890 = vpop.f32.mrf.mxu0
        %v891 = vadd.f32 0.0, %v890
        %v892 = vpop.f32.mrf.mxu0
        %893 = vdwg.mxu0
        %895 = vrot.lane.b32.xlu0 %v860, 104
        %v896 = vpop.permute.xlu0 %895
        %v898 = vsel %vm439, %v896, 0
        %900 = vmatpush.bf16.msra.mxu0 0
        %901 = vmatpush.bf16.msra.mxu0 0
        %902 = vmatpush.bf16.msra.mxu0 0
        %903 = vmatpush.bf16.msra.mxu0 0
        %904 = vmatpush.bf16.msra.mxu0 0
        %905 = vmatpush.bf16.msra.mxu0 0
        %906 = vmatpush.bf16.msra.mxu0 0
        %907 = vmatpush.bf16.msra.mxu0 %v464
        %908 = vmatmul.bf16.gmra.mxu0 %v898
        %v909 = vpop.f32.mrf.mxu0
        %v910 = vadd.f32 %v891, %v909
        %v911 = vpop.f32.mrf.mxu0
        %912 = vdwg.mxu0
        %914 = vrot.lane.b32.xlu0 %v840, 104
        %v915 = vpop.permute.xlu0 %914
        %916 = vrot.lane.b32.xlu0 %v625, 104
        %v917 = vpop.permute.xlu0 %916
        %v919 = vsel %vm479, %v915, 0
        %v922 = vsel %vm479, %v917, 0
        %924 = vmatpush.bf16.xpose.msra.mxu0 0
        %925 = vmatpush.bf16.xpose.msra.mxu0 0
        %926 = vmatpush.bf16.xpose.msra.mxu0 0
        %927 = vmatpush.bf16.xpose.msra.mxu0 0
        %928 = vmatpush.bf16.xpose.msra.mxu0 0
        %929 = vmatpush.bf16.xpose.msra.mxu0 0
        %930 = vmatpush.bf16.xpose.msra.mxu0 0
        %931 = vmatpush.bf16.xpose.msra.mxu0 %v922
        %932 = vmatmul.bf16.gmra.mxu0 %v919
        %v933 = vpop.f32.mrf.mxu0
        %v934 = vadd.f32 %v910, %v933
        %v935 = vpop.f32.mrf.mxu0
        %936 = vdwg.mxu0
        %v937 = vadd.f32 %v934, %v499
        %v938 = vsel %vm479, %v937, -inf
        %939 = vmax.xlane.f32.xlu0 %v938
        %v940 = vpop.xlane.xlu0 %939
        %v941 = vsub.f32 %v937, %v940
        %v942 = vmul.f32 %v941, 1.442695
        %v943 = vpow.pop %v942
        %v944 = vsel %vm479, %v943, 0.0
        %945 = vadd.xlane.f32.xlu0 %v944
        %v946 = vpop.xlane.xlu0 %945
        %v947 = vrcp.pop %v946
        %v948 = vmul.f32 %v943, %v947
        %v949 = vpack.c.bf16 %v948, %v948
        %950 = vrot.lane.b32.xlu0 %v514, 72
        %v951 = vpop.permute.xlu0 %950
        %v953 = vsel %vm479, %v949, 0
        %v956 = vsel %vm521, %v951, 0
        %958 = vmatpush.bf16.msra.mxu0 0
        %959 = vmatpush.bf16.msra.mxu0 0
        %960 = vmatpush.bf16.msra.mxu0 0
        %961 = vmatpush.bf16.msra.mxu0 0
        %962 = vmatpush.bf16.msra.mxu0 0
        %963 = vmatpush.bf16.msra.mxu0 0
        %964 = vmatpush.bf16.msra.mxu0 0
        %965 = vmatpush.bf16.msra.mxu0 %v956
        %966 = vmatmul.bf16.gmra.mxu0 %v953
        %v967 = vpop.f32.mrf.mxu0
        %v968 = vadd.f32 0.0, %v967
        %v969 = vpop.f32.mrf.mxu0
        %970 = vdwg.mxu0
        %972 = vrot.lane.b32.xlu0 %v968, 24
        %v973 = vpop.permute.xlu0 %972
        %vm975 = vcmask 261312
        %976 = vst.msk [vmem:[%s363] sm:$0xff] %vm975, %v973
        %p977 = scmp.lt.s32.totalorder %s23, 1
        %s978 = scalar_select %p977, %s23, 1
        %s979 = smul.addr %s978, 8
        %s980 = scalar_lea.vmem %s9, %s979
        // Predicated region
        $region61: #{relative_transformer_forward.4} parent=55 // pred_check
          %p981 = pneg %p240
        $region62: #{relative_transformer_forward.4} parent=55 // pred_check_branch
          %983 = sbr.rel (%p981) target = $region64
        $region63: #{relative_transformer_forward.4} parent=55 // pred_region
          _
        $region64: #{relative_transformer_forward.4} parent=55 // pred_fallthru
          _
      $region56: #{relative_transformer_forward.4} parent=5 // pred_fallthru
        _
      %p984 = scmp.le.s32.totalorder 2, %s18
      // Predicated region
      $region65: #{relative_transformer_forward.4} parent=5 // pred_check
        %p985 = pneg %p984
      $region66: #{relative_transformer_forward.4} parent=5 // pred_check_branch
        %987 = sbr.rel (%p985) target = $region68
      $region67: #{relative_transformer_forward.4} parent=5 // pred_region
        %s988 = ssub.s32 %s18, 2
        // Predicated region
        $region69: #{relative_transformer_forward.4} parent=67 // pred_check
          %p989 = pneg %p246
        $region70: #{relative_transformer_forward.4} parent=67 // pred_check_branch
          %991 = sbr.rel (%p989) target = $region72
        $region71: #{relative_transformer_forward.4} parent=67 // pred_region
          %p992 = scmp.lt.s32.totalorder %s24, 1
          %s993 = scalar_select %p992, %s24, 1
          %s994 = smul.addr %s993, 8
          %s995 = scalar_lea.vmem %s9, %s994
        $region72: #{relative_transformer_forward.4} parent=67 // pred_fallthru
          _
      $region68: #{relative_transformer_forward.4} parent=5 // pred_fallthru
        _
    $region6: #{relative_transformer_forward.4} parent=1 // loop_footer
      %s22 = sadd.s32 1, %s18
    $region7: #{relative_transformer_forward.4} parent=1 // loop_footer_branch
      %17 = sbr.rel target = $region3
    $region8: #{relative_transformer_forward.4} parent=1 // loop_exit
      _
    %996 = vsyncpa [#allocation3], 1
    %s997 = scalar_lea.sflag [#allocation3], 1
    %998 = vsyncpa %s997, 1

</llo_original>
